<compile_context>
chip_gen: v7x
topology: tpu7x:2x2x1
jax: 0.10.0
libtpu: 0.0.40
codegen_flags: <defaults>
</compile_context>

<pallas_src>
import functools

import jax
import jax.numpy as jnp
from jax import lax
from jax.experimental import pallas as pl
from jax.experimental.pallas import tpu as pltpu

TM_MAX = 512  # rows (M) per grid step; every layer at this size fits in one.


# ------------------------------ Pallas kernel ------------------------------- #
def _matmul_bias_act_kernel(x_ref, w_ref, b_ref, o_ref, *, relu):
    """(TM, K) @ (K, Cout) on the MXU; f32 accumulate, bias (+ReLU) epilogue.

    The whole conv arrives as one lane-dense 2-D block, so the store is a
    dense (rows, Cout) slab.  If M % TM != 0 the padded tail rows only flow
    through matmul + bias + ReLU (no non-finite-producing ops) and their
    writes are masked by Pallas, so the tail is safe.
    """
    acc = jnp.dot(x_ref[...], w_ref[...], preferred_element_type=jnp.float32)
    acc = acc + b_ref[...]
    if relu:
        acc = jnp.maximum(acc, 0.0)
    o_ref[...] = acc.astype(o_ref.dtype)


def _matmul(xm, w, b, relu):
    """Fused matmul+bias(+ReLU): xm (M, K) @ w (K, Cout) + b -> bf16 (M, Cout)."""
    M, K = xm.shape
    cout = w.shape[1]
    tm = M if M <= TM_MAX else TM_MAX
    return pl.pallas_call(
        functools.partial(_matmul_bias_act_kernel, relu=relu),
        out_shape=jax.ShapeDtypeStruct((M, cout), jnp.bfloat16),
        grid=(pl.cdiv(M, tm),),
        in_specs=[
            pl.BlockSpec((tm, K), lambda i: (i, 0)),
            pl.BlockSpec((K, cout), lambda i: (0, 0)),
            pl.BlockSpec((1, cout), lambda i: (0, 0)),
        ],
        out_specs=pl.BlockSpec((tm, cout), lambda i: (i, 0)),
        compiler_params=pltpu.CompilerParams(dimension_semantics=("parallel",)),
    )(xm, w, b)


# --------------------------- conv building blocks --------------------------- #
def _extract_patches(x, kh, kw, stride, pad):
    """NHWC -> (N, OH, OW, KH*KW*C) tap-stacked patches (tap-major order).

    Pure XLA strided slices + one channel concat that fuse under jit;
    negligible traffic at these spatial sizes (moves in-kernel at scale)."""
    N, H, W, C = x.shape
    OH = (H + 2 * pad - kh) // stride + 1
    OW = (W + 2 * pad - kw) // stride + 1
    xp = jnp.pad(x, ((0, 0), (pad, pad), (pad, pad), (0, 0)))
    cols = []
    for di in range(kh):
        for dj in range(kw):
            win = xp[:, di:di + (OH - 1) * stride + 1:stride,
                     dj:dj + (OW - 1) * stride + 1:stride, :]
            cols.append(win)                       # (N, OH, OW, C)
    patches = jnp.concatenate(cols, axis=-1)       # (N, OH, OW, KH*KW*C)
    return patches, OH, OW


def conv2d(x, packed, stride, pad, relu):
    """Conv + folded-BN bias + optional ReLU as ONE single-step MXU matmul."""
    N, H, W, C = x.shape
    kh, kw = packed["kh"], packed["kw"]
    cout = packed["w"].shape[-1]
    if kh == 1 and kw == 1 and stride == 1 and pad == 0:
        xm = x.reshape(N * H * W, C)
        OH, OW = H, W
    else:
        patches, OH, OW = _extract_patches(x, kh, kw, stride, pad)
        xm = patches.reshape(N * OH * OW, kh * kw * C)
    out = _matmul(xm, packed["w"], packed["b"], relu)
    return out.reshape(N, OH, OW, cout)


# TODO(synk): the two ceil-mode 3x3/s2 max pools stay on XLA's reduce_window
# (memory-bound, tiny, no MXU work) rather than a Pallas kernel.
def max_pool_3x3_s2_ceil(x):
    N, H, W, C = x.shape
    k, s = 3, 2
    OH = -(-(H - k) // s) + 1
    OW = -(-(W - k) // s) + 1
    pad_h = (OH - 1) * s + k - H
    pad_w = (OW - 1) * s + k - W
    init = jnp.array(-jnp.inf, x.dtype)
    return lax.reduce_window(x, init, lax.max, (1, k, k, 1), (1, s, s, 1),
                             ((0, 0), (0, pad_h), (0, pad_w), (0, 0)))


# ------------------------------- parameters --------------------------------- #
def _raw_conv_bn(key, cin, cout, k):
    # train-phase init: conv weight ~ N(0, 0.01); BN eval stats (mean 0, var 1)
    w = jax.random.normal(key, (cout, cin, k, k), jnp.float32) * 0.01
    eps = 1e-5
    gamma = jnp.ones((cout,), jnp.float32)
    beta = jnp.zeros((cout,), jnp.float32)
    mean = jnp.zeros((cout,), jnp.float32)
    var = jnp.ones((cout,), jnp.float32)
    scale = gamma / jnp.sqrt(var + eps)
    bias = beta - mean * scale
    return {"w": w, "scale": scale, "bias": bias}


def _raw_conv_bias(key, cin, cout, k):
    # loc/conf heads: xavier-normal weight, bias filled with 0.02
    fan = cin * k * k + cout * k * k
    std = (2.0 / fan) ** 0.5
    w = jax.random.normal(key, (cout, cin, k, k), jnp.float32) * std
    return {"w": w,
            "scale": jnp.ones((cout,), jnp.float32),
            "bias": jnp.full((cout,), 0.02, jnp.float32)}


def _fold(raw):
    """BN-folded weight as (KH, KW, Cin, Cout) f32 plus bias (Cout,) f32."""
    w = jnp.transpose(raw["w"], (2, 3, 1, 0)) * raw["scale"][None, None, None, :]
    return w, raw["bias"]


def _pack_wb(w, bias):
    """Pack to kernel layout: (KH*KW*Cin, Cout) bf16 weight, (1, Cout) f32 bias."""
    kh, kw, cin, cout = w.shape
    return {"w": w.reshape(kh * kw * cin, cout).astype(jnp.bfloat16),
            "b": bias.reshape(1, cout).astype(jnp.float32),
            "kh": int(kh), "kw": int(kw)}


def _pack_single(raw):
    w, b = _fold(raw)
    return _pack_wb(w, b)


def _pack_incep_stage1(branch1x1, branch1x1_2, reduce3, reduce4):
    """Fuse the four convs reading the 96-ch inception input into one 3x3 conv.

    * branch1x1 o avg_pool(3x3, s1, p1, count_include_pad=True) is exactly a
      3x3 conv whose nine taps are all W_1x1 / 9 (bias unchanged).
    * The three 1x1 convs are 3x3 convs whose only nonzero tap is the center.
    Output channel layout: [branch1x1 | branch1x1_2 | reduce3 | reduce4].
    """
    w1, b1 = _fold(branch1x1)                      # (1,1,96,24)
    w_avg = jnp.tile(w1, (3, 3, 1, 1)) / 9.0       # (3,3,96,24)
    centers, biases = [], [b1]
    for raw in (branch1x1_2, reduce3, reduce4):
        w, b = _fold(raw)
        centers.append(w[0, 0])                    # (96,24)
        biases.append(b)
    w_center = jnp.concatenate(centers, axis=-1)   # (96,72)
    w_1x1_as_3x3 = jnp.zeros((3, 3, 96, 72), jnp.float32).at[1, 1].set(w_center)
    w_full = jnp.concatenate([w_avg, w_1x1_as_3x3], axis=-1)   # (3,3,96,96)
    return _pack_wb(w_full, jnp.concatenate(biases))


def _pack_incep_stage2(branch3x3, branch3x3_2):
    """Fuse the two parallel 24->24 3x3 convs via a block-diagonal weight.

    Input channel layout [r3 | r4] (the 48-ch slice of stage1's output);
    output layout [branch3x3 | branch3x3_2]."""
    w_a, b_a = _fold(branch3x3)                    # (3,3,24,24)
    w_b, b_b = _fold(branch3x3_2)
    w = jnp.zeros((3, 3, 48, 48), jnp.float32)
    w = w.at[:, :, :24, :24].set(w_a).at[:, :, 24:, 24:].set(w_b)
    return _pack_wb(w, jnp.concatenate([b_a, b_b]))


def _pack_heads(head_raws):
    """Fuse all loc/conf heads along Cout: one (864, 144) weight, 3 sources."""
    ws, bs, widths, loc_chs = [], [], [], []
    for loc_raw, conf_raw in head_raws:
        wl, bl = _fold(loc_raw)
        wc, bc = _fold(conf_raw)
        ws += [wl, wc]
        bs += [bl, bc]
        widths.append(int(wl.shape[-1]) + int(wc.shape[-1]))
        loc_chs.append(int(wl.shape[-1]))
    w = jnp.concatenate(ws, axis=-1)               # (3,3,96,144)
    return {"packed": _pack_wb(w, jnp.concatenate(bs)),
            "widths": widths, "loc_chs": loc_chs}


def init_params(key, num_classes=2):
    keys = iter(jax.random.split(key, 64))
    p = {}
    p["conv1_1"] = _pack_single(_raw_conv_bn(next(keys), 3, 16, 5))
    p["conv1_2"] = _pack_single(_raw_conv_bn(next(keys), 16, 32, 5))
    p["conv2"] = _pack_single(_raw_conv_bn(next(keys), 32, 96, 3))

    def incep():
        branch1x1 = _raw_conv_bn(next(keys), 96, 24, 1)
        branch1x1_2 = _raw_conv_bn(next(keys), 96, 24, 1)
        reduce3 = _raw_conv_bn(next(keys), 96, 24, 1)
        branch3x3 = _raw_conv_bn(next(keys), 24, 24, 3)
        reduce4 = _raw_conv_bn(next(keys), 96, 24, 1)
        branch3x3_2 = _raw_conv_bn(next(keys), 24, 24, 3)
        branch3x3_3 = _raw_conv_bn(next(keys), 24, 24, 3)
        return {"stage1": _pack_incep_stage1(branch1x1, branch1x1_2,
                                             reduce3, reduce4),
                "stage2": _pack_incep_stage2(branch3x3, branch3x3_2),
                "stage3": _pack_single(branch3x3_3)}

    p["inception1"] = incep()
    p["incep_2"] = _pack_single(_raw_conv_bn(next(keys), 96, 96, 3))
    p["inception2"] = incep()
    p["conv3_2"] = _pack_single(_raw_conv_bn(next(keys), 96, 96, 3))

    head_raws = []
    for anchors in (1, 21, 2):
        loc = _raw_conv_bias(next(keys), 96, anchors * 4, 3)
        conf = _raw_conv_bias(next(keys), 96, anchors * num_classes, 3)
        head_raws.append((loc, conf))
    p["heads"] = _pack_heads(head_raws)
    return p


# --------------------------------- forward ---------------------------------- #
def _inception(x, p):
    # stage1: [branch1x1(avgpool) | branch1x1_2 | r3 | r4] in one matmul
    s1 = conv2d(x, p["stage1"], 1, 1, True)                  # (N,H,W,96)
    # stage2: branch3x3(r3) and branch3x3_2(r4) via a block-diagonal weight
    s2 = conv2d(s1[..., 48:96], p["stage2"], 1, 1, True)     # (N,H,W,48)
    # stage3: branch3x3_3(branch3x3_2)
    s3 = conv2d(s2[..., 24:48], p["stage3"], 1, 1, True)     # (N,H,W,24)
    # torch.cat([branch1x1, branch1x1_2, branch3x3, branch3x3_3], dim=1)
    return jnp.concatenate([s1[..., :48], s2[..., :24], s3], axis=-1)


def _multibox(sources, heads, num_classes):
    """All loc/conf heads of all sources as ONE (12, 864) @ (864, 144) matmul."""
    packed = heads["packed"]
    rows, shapes = [], []
    for src in sources:
        patches, OH, OW = _extract_patches(src, 3, 3, 1, 1)
        rows.append(patches.reshape(src.shape[0] * OH * OW, 9 * src.shape[-1]))
        shapes.append((src.shape[0], OH, OW))
    y = _matmul(jnp.concatenate(rows, axis=0), packed["w"], packed["b"],
                relu=False)                                   # (M_total, 144)
    loc_list, conf_list, roff, coff = [], [], 0, 0
    for (N, OH, OW), width, lc in zip(shapes, heads["widths"], heads["loc_chs"]):
        m = N * OH * OW
        blk = y[roff:roff + m, coff:coff + width].reshape(N, OH, OW, width)
        # NHWC layout already matches .permute(0, 2, 3, 1).contiguous().view(N,-1)
        loc_list.append(blk[..., :lc].reshape(N, -1))
        conf_list.append(blk[..., lc:].reshape(N, -1))
        roff += m
        coff += width
    loc = jnp.concatenate(loc_list, axis=1).astype(jnp.float32)
    conf = jnp.concatenate(conf_list, axis=1).astype(jnp.float32)
    return loc, conf


def faceboxes_forward(x_nchw, params, num_classes=2, phase="train"):
    x = jnp.transpose(x_nchw, (0, 2, 3, 1)).astype(jnp.bfloat16)  # NCHW->NHWC

    x = conv2d(x, params["conv1_1"], 2, 2, True)   # 3 -> 16,  k5 s2 p2
    x = conv2d(x, params["conv1_2"], 2, 2, True)   # 16 -> 32, k5 s2 p2
    x = max_pool_3x3_s2_ceil(x)
    x = conv2d(x, params["conv2"], 1, 1, True)     # 32 -> 96, k3 s1 p1
    x = max_pool_3x3_s2_ceil(x)

    x = _inception(x, params["inception1"])
    sources = [x]
    det_dims = [(x.shape[1], x.shape[2])]

    x = conv2d(x, params["incep_2"], 2, 1, True)   # 96 -> 96, k3 s2 p1
    x = _inception(x, params["inception2"])
    sources.append(x)
    det_dims.append((x.shape[1], x.shape[2]))

    x = conv2d(x, params["conv3_2"], 2, 1, True)   # 96 -> 96, k3 s2 p1
    sources.append(x)
    det_dims.append((x.shape[1], x.shape[2]))

    detection_dimension = jnp.array(det_dims, dtype=jnp.int32)

    loc, conf = _multibox(sources, params["heads"], num_classes)
    N = loc.shape[0]
    if phase == "test":
        conf_out = jax.nn.softmax(conf.reshape(-1, num_classes), axis=-1)
    else:
        conf_out = conf.reshape(N, -1, num_classes)
    return loc.reshape(N, -1, 4), conf_out, detection_dimension


# ----------------------------------- main ------------------------------------ #
if __name__ == "__main__":
    num_classes = 2
    key = jax.random.PRNGKey(0)
    k_params, k_x = jax.random.split(key)
    params = init_params(k_params, num_classes=num_classes)

    # Small input consistent with the module: batch=2, 3 channels, 32x32 NCHW.
    x = jax.random.normal(k_x, (2, 3, 32, 32), jnp.float32)

    fwd = jax.jit(functools.partial(faceboxes_forward, params=params,
                                    num_classes=num_classes, phase="train"))
    loc, conf, det_dims = fwd(x)
    jax.block_until_ready((loc, conf, det_dims))

    # Sanity: 2x2*1 + 1x1*21 + 1x1*2 = 27 anchors.
    assert loc.shape == (2, 27, 4), loc.shape
    assert conf.shape == (2, 27, 2), conf.shape
    assert det_dims.shape == (3, 2), det_dims.shape
    assert bool(jnp.isfinite(loc).all()) and bool(jnp.isfinite(conf).all())
    print("KERNEL_OK")
</pallas_src>

<mosaic_0001>
module attributes {stable_mosaic.version = 11 : i64} {
  func.func @_matmul_bias_act_kernel(%arg0: i32, %arg1: memref<512x75xbf16, #tpu.memory_space<vmem>>, %arg2: memref<75x16xbf16, #tpu.memory_space<vmem>>, %arg3: memref<1x16xf32, #tpu.memory_space<vmem>>, %arg4: memref<512x16xbf16, #tpu.memory_space<vmem>>) attributes {dimension_semantics = [#tpu.dimension_semantics<parallel>], iteration_bounds = array<i64: 1>, scalar_prefetch = 0 : i64, scratch_operands = 0 : i64, tpu.core_type = #tpu.core_type<tc>, window_params = [{transform_indices = @transform_0, window_bounds = array<i64: 512, 75>}, {pipeline_mode = #tpu.pipeline_mode<synchronous>, transform_indices = @transform_1, window_bounds = array<i64: 75, 16>}, {pipeline_mode = #tpu.pipeline_mode<synchronous>, transform_indices = @transform_2, window_bounds = array<i64: 1, 16>}, {transform_indices = @transform_3, window_bounds = array<i64: 512, 16>}]} {
    %c0 = arith.constant 0 : index
    %c0_0 = arith.constant 0 : index
    %0 = vector.load %arg1[%c0, %c0_0] : memref<512x75xbf16, #tpu.memory_space<vmem>>, vector<512x75xbf16>
    %c0_1 = arith.constant 0 : index
    %c0_2 = arith.constant 0 : index
    %1 = vector.load %arg2[%c0_1, %c0_2] : memref<75x16xbf16, #tpu.memory_space<vmem>>, vector<75x16xbf16>
    %cst = arith.constant dense<0.000000e+00> : vector<512x16xf32>
    %2 = tpu.matmul %0, %1, %cst {dimension_numbers = #tpu.dot_dimension_numbers<[1], [0], [0], [1], [0, 0, 1, 1], [], []>} : vector<512x75xbf16>, vector<75x16xbf16>, vector<512x16xf32> -> vector<512x16xf32>
    %c0_3 = arith.constant 0 : index
    %c0_4 = arith.constant 0 : index
    %3 = vector.load %arg3[%c0_3, %c0_4] : memref<1x16xf32, #tpu.memory_space<vmem>>, vector<1x16xf32>
    %4 = vector.broadcast %3 : vector<1x16xf32> to vector<512x16xf32>
    %5 = arith.addf %2, %4 : vector<512x16xf32>
    %cst_5 = arith.constant 0.000000e+00 : f32
    %6 = vector.broadcast %cst_5 : f32 to vector<512x16xf32>
    %7 = arith.maximumf %5, %6 : vector<512x16xf32>
    %8 = arith.truncf %7 : vector<512x16xf32> to vector<512x16xbf16>
    %c0_6 = arith.constant 0 : index
    %c0_7 = arith.constant 0 : index
    %9 = vector.load %arg4[%c0_6, %c0_7] : memref<512x16xbf16, #tpu.memory_space<vmem>>, vector<512x16xbf16>
    tpu.vector_store %arg4[%c0_6, %c0_7], %8 {strides = array<i32>} : memref<512x16xbf16, #tpu.memory_space<vmem>>, vector<512x16xbf16>,
    return
  }
  func.func @transform_0(%arg0: i32) -> (i32, i32) {
    %c0_i32 = arith.constant 0 : i32
    %c0_i32_0 = arith.constant 0 : i32
    return %arg0, %c0_i32 : i32, i32
  }
  func.func @transform_1(%arg0: i32) -> (i32, i32) {
    %c0_i32 = arith.constant 0 : i32
    %c0_i32_0 = arith.constant 0 : i32
    %c0_i32_1 = arith.constant 0 : i32
    return %c0_i32, %c0_i32_0 : i32, i32
  }
  func.func @transform_2(%arg0: i32) -> (i32, i32) {
    %c0_i32 = arith.constant 0 : i32
    %c0_i32_0 = arith.constant 0 : i32
    %c0_i32_1 = arith.constant 0 : i32
    return %c0_i32, %c0_i32_0 : i32, i32
  }
  func.func @transform_3(%arg0: i32) -> (i32, i32) {
    %c0_i32 = arith.constant 0 : i32
    %c0_i32_0 = arith.constant 0 : i32
    return %arg0, %c0_i32 : i32, i32
  }
}

module attributes {stable_mosaic.version = 11 : i64} {
  func.func @_matmul_bias_act_kernel(%arg0: i32, %arg1: memref<128x400xbf16, #tpu.memory_space<vmem>>, %arg2: memref<400x32xbf16, #tpu.memory_space<vmem>>, %arg3: memref<1x32xf32, #tpu.memory_space<vmem>>, %arg4: memref<128x32xbf16, #tpu.memory_space<vmem>>) attributes {dimension_semantics = [#tpu.dimension_semantics<parallel>], iteration_bounds = array<i64: 1>, scalar_prefetch = 0 : i64, scratch_operands = 0 : i64, tpu.core_type = #tpu.core_type<tc>, window_params = [{transform_indices = @transform_0, window_bounds = array<i64: 128, 400>}, {pipeline_mode = #tpu.pipeline_mode<synchronous>, transform_indices = @transform_1, window_bounds = array<i64: 400, 32>}, {pipeline_mode = #tpu.pipeline_mode<synchronous>, transform_indices = @transform_2, window_bounds = array<i64: 1, 32>}, {transform_indices = @transform_3, window_bounds = array<i64: 128, 32>}]} {
    %c0 = arith.constant 0 : index
    %c0_0 = arith.constant 0 : index
    %0 = vector.load %arg1[%c0, %c0_0] : memref<128x400xbf16, #tpu.memory_space<vmem>>, vector<128x400xbf16>
    %c0_1 = arith.constant 0 : index
    %c0_2 = arith.constant 0 : index
    %1 = vector.load %arg2[%c0_1, %c0_2] : memref<400x32xbf16, #tpu.memory_space<vmem>>, vector<400x32xbf16>
    %cst = arith.constant dense<0.000000e+00> : vector<128x32xf32>
    %2 = tpu.matmul %0, %1, %cst {dimension_numbers = #tpu.dot_dimension_numbers<[1], [0], [0], [1], [0, 0, 1, 1], [], []>} : vector<128x400xbf16>, vector<400x32xbf16>, vector<128x32xf32> -> vector<128x32xf32>
    %c0_3 = arith.constant 0 : index
    %c0_4 = arith.constant 0 : index
    %3 = vector.load %arg3[%c0_3, %c0_4] : memref<1x32xf32, #tpu.memory_space<vmem>>, vector<1x32xf32>
    %4 = vector.broadcast %3 : vector<1x32xf32> to vector<128x32xf32>
    %5 = arith.addf %2, %4 : vector<128x32xf32>
    %cst_5 = arith.constant 0.000000e+00 : f32
    %6 = vector.broadcast %cst_5 : f32 to vector<128x32xf32>
    %7 = arith.maximumf %5, %6 : vector<128x32xf32>
    %8 = arith.truncf %7 : vector<128x32xf32> to vector<128x32xbf16>
    %c0_6 = arith.constant 0 : index
    %c0_7 = arith.constant 0 : index
    %9 = vector.load %arg4[%c0_6, %c0_7] : memref<128x32xbf16, #tpu.memory_space<vmem>>, vector<128x32xbf16>
    tpu.vector_store %arg4[%c0_6, %c0_7], %8 {strides = array<i32>} : memref<128x32xbf16, #tpu.memory_space<vmem>>, vector<128x32xbf16>,
    return
  }
  func.func @transform_0(%arg0: i32) -> (i32, i32) {
    %c0_i32 = arith.constant 0 : i32
    %c0_i32_0 = arith.constant 0 : i32
    return %arg0, %c0_i32 : i32, i32
  }
  func.func @transform_1(%arg0: i32) -> (i32, i32) {
    %c0_i32 = arith.constant 0 : i32
    %c0_i32_0 = arith.constant 0 : i32
    %c0_i32_1 = arith.constant 0 : i32
    return %c0_i32, %c0_i32_0 : i32, i32
  }
  func.func @transform_2(%arg0: i32) -> (i32, i32) {
    %c0_i32 = arith.constant 0 : i32
    %c0_i32_0 = arith.constant 0 : i32
    %c0_i32_1 = arith.constant 0 : i32
    return %c0_i32, %c0_i32_0 : i32, i32
  }
  func.func @transform_3(%arg0: i32) -> (i32, i32) {
    %c0_i32 = arith.constant 0 : i32
    %c0_i32_0 = arith.constant 0 : i32
    return %arg0, %c0_i32 : i32, i32
  }
}

module attributes {stable_mosaic.version = 11 : i64} {
  func.func @_matmul_bias_act_kernel(%arg0: i32, %arg1: memref<32x288xbf16, #tpu.memory_space<vmem>>, %arg2: memref<288x96xbf16, #tpu.memory_space<vmem>>, %arg3: memref<1x96xf32, #tpu.memory_space<vmem>>, %arg4: memref<32x96xbf16, #tpu.memory_space<vmem>>) attributes {dimension_semantics = [#tpu.dimension_semantics<parallel>], iteration_bounds = array<i64: 1>, scalar_prefetch = 0 : i64, scratch_operands = 0 : i64, tpu.core_type = #tpu.core_type<tc>, window_params = [{transform_indices = @transform_0, window_bounds = array<i64: 32, 288>}, {pipeline_mode = #tpu.pipeline_mode<synchronous>, transform_indices = @transform_1, window_bounds = array<i64: 288, 96>}, {pipeline_mode = #tpu.pipeline_mode<synchronous>, transform_indices = @transform_2, window_bounds = array<i64: 1, 96>}, {transform_indices = @transform_3, window_bounds = array<i64: 32, 96>}]} {
    %c0 = arith.constant 0 : index
    %c0_0 = arith.constant 0 : index
    %0 = vector.load %arg1[%c0, %c0_0] : memref<32x288xbf16, #tpu.memory_space<vmem>>, vector<32x288xbf16>
    %c0_1 = arith.constant 0 : index
    %c0_2 = arith.constant 0 : index
    %1 = vector.load %arg2[%c0_1, %c0_2] : memref<288x96xbf16, #tpu.memory_space<vmem>>, vector<288x96xbf16>
    %cst = arith.constant dense<0.000000e+00> : vector<32x96xf32>
    %2 = tpu.matmul %0, %1, %cst {dimension_numbers = #tpu.dot_dimension_numbers<[1], [0], [0], [1], [0, 0, 1, 1], [], []>} : vector<32x288xbf16>, vector<288x96xbf16>, vector<32x96xf32> -> vector<32x96xf32>
    %c0_3 = arith.constant 0 : index
    %c0_4 = arith.constant 0 : index
    %3 = vector.load %arg3[%c0_3, %c0_4] : memref<1x96xf32, #tpu.memory_space<vmem>>, vector<1x96xf32>
    %4 = vector.broadcast %3 : vector<1x96xf32> to vector<32x96xf32>
    %5 = arith.addf %2, %4 : vector<32x96xf32>
    %cst_5 = arith.constant 0.000000e+00 : f32
    %6 = vector.broadcast %cst_5 : f32 to vector<32x96xf32>
    %7 = arith.maximumf %5, %6 : vector<32x96xf32>
    %8 = arith.truncf %7 : vector<32x96xf32> to vector<32x96xbf16>
    %c0_6 = arith.constant 0 : index
    %c0_7 = arith.constant 0 : index
    %9 = vector.load %arg4[%c0_6, %c0_7] : memref<32x96xbf16, #tpu.memory_space<vmem>>, vector<32x96xbf16>
    tpu.vector_store %arg4[%c0_6, %c0_7], %8 {strides = array<i32>} : memref<32x96xbf16, #tpu.memory_space<vmem>>, vector<32x96xbf16>,
    return
  }
  func.func @transform_0(%arg0: i32) -> (i32, i32) {
    %c0_i32 = arith.constant 0 : i32
    %c0_i32_0 = arith.constant 0 : i32
    return %arg0, %c0_i32 : i32, i32
  }
  func.func @transform_1(%arg0: i32) -> (i32, i32) {
    %c0_i32 = arith.constant 0 : i32
    %c0_i32_0 = arith.constant 0 : i32
    %c0_i32_1 = arith.constant 0 : i32
    return %c0_i32, %c0_i32_0 : i32, i32
  }
  func.func @transform_2(%arg0: i32) -> (i32, i32) {
    %c0_i32 = arith.constant 0 : i32
    %c0_i32_0 = arith.constant 0 : i32
    %c0_i32_1 = arith.constant 0 : i32
    return %c0_i32, %c0_i32_0 : i32, i32
  }
  func.func @transform_3(%arg0: i32) -> (i32, i32) {
    %c0_i32 = arith.constant 0 : i32
    %c0_i32_0 = arith.constant 0 : i32
    return %arg0, %c0_i32 : i32, i32
  }
}

module attributes {stable_mosaic.version = 11 : i64} {
  func.func @_matmul_bias_act_kernel(%arg0: i32, %arg1: memref<8x864xbf16, #tpu.memory_space<vmem>>, %arg2: memref<864x96xbf16, #tpu.memory_space<vmem>>, %arg3: memref<1x96xf32, #tpu.memory_space<vmem>>, %arg4: memref<8x96xbf16, #tpu.memory_space<vmem>>) attributes {dimension_semantics = [#tpu.dimension_semantics<parallel>], iteration_bounds = array<i64: 1>, scalar_prefetch = 0 : i64, scratch_operands = 0 : i64, tpu.core_type = #tpu.core_type<tc>, window_params = [{transform_indices = @transform_0, window_bounds = array<i64: 8, 864>}, {pipeline_mode = #tpu.pipeline_mode<synchronous>, transform_indices = @transform_1, window_bounds = array<i64: 864, 96>}, {pipeline_mode = #tpu.pipeline_mode<synchronous>, transform_indices = @transform_2, window_bounds = array<i64: 1, 96>}, {transform_indices = @transform_3, window_bounds = array<i64: 8, 96>}]} {
    %c0 = arith.constant 0 : index
    %c0_0 = arith.constant 0 : index
    %0 = vector.load %arg1[%c0, %c0_0] : memref<8x864xbf16, #tpu.memory_space<vmem>>, vector<8x864xbf16>
    %c0_1 = arith.constant 0 : index
    %c0_2 = arith.constant 0 : index
    %1 = vector.load %arg2[%c0_1, %c0_2] : memref<864x96xbf16, #tpu.memory_space<vmem>>, vector<864x96xbf16>
    %cst = arith.constant dense<0.000000e+00> : vector<8x96xf32>
    %2 = tpu.matmul %0, %1, %cst {dimension_numbers = #tpu.dot_dimension_numbers<[1], [0], [0], [1], [0, 0, 1, 1], [], []>} : vector<8x864xbf16>, vector<864x96xbf16>, vector<8x96xf32> -> vector<8x96xf32>
    %c0_3 = arith.constant 0 : index
    %c0_4 = arith.constant 0 : index
    %3 = vector.load %arg3[%c0_3, %c0_4] : memref<1x96xf32, #tpu.memory_space<vmem>>, vector<1x96xf32>
    %4 = vector.broadcast %3 : vector<1x96xf32> to vector<8x96xf32>
    %5 = arith.addf %2, %4 : vector<8x96xf32>
    %cst_5 = arith.constant 0.000000e+00 : f32
    %6 = vector.broadcast %cst_5 : f32 to vector<8x96xf32>
    %7 = arith.maximumf %5, %6 : vector<8x96xf32>
    %8 = arith.truncf %7 : vector<8x96xf32> to vector<8x96xbf16>
    %c0_6 = arith.constant 0 : index
    %c0_7 = arith.constant 0 : index
    %9 = vector.load %arg4[%c0_6, %c0_7] : memref<8x96xbf16, #tpu.memory_space<vmem>>, vector<8x96xbf16>
    tpu.vector_store %arg4[%c0_6, %c0_7], %8 {strides = array<i32>} : memref<8x96xbf16, #tpu.memory_space<vmem>>, vector<8x96xbf16>,
    return
  }
  func.func @transform_0(%arg0: i32) -> (i32, i32) {
    %c0_i32 = arith.constant 0 : i32
    %c0_i32_0 = arith.constant 0 : i32
    return %arg0, %c0_i32 : i32, i32
  }
  func.func @transform_1(%arg0: i32) -> (i32, i32) {
    %c0_i32 = arith.constant 0 : i32
    %c0_i32_0 = arith.constant 0 : i32
    %c0_i32_1 = arith.constant 0 : i32
    return %c0_i32, %c0_i32_0 : i32, i32
  }
  func.func @transform_2(%arg0: i32) -> (i32, i32) {
    %c0_i32 = arith.constant 0 : i32
    %c0_i32_0 = arith.constant 0 : i32
    %c0_i32_1 = arith.constant 0 : i32
    return %c0_i32, %c0_i32_0 : i32, i32
  }
  func.func @transform_3(%arg0: i32) -> (i32, i32) {
    %c0_i32 = arith.constant 0 : i32
    %c0_i32_0 = arith.constant 0 : i32
    return %arg0, %c0_i32 : i32, i32
  }
}

module attributes {stable_mosaic.version = 11 : i64} {
  func.func @_matmul_bias_act_kernel(%arg0: i32, %arg1: memref<8x432xbf16, #tpu.memory_space<vmem>>, %arg2: memref<432x48xbf16, #tpu.memory_space<vmem>>, %arg3: memref<1x48xf32, #tpu.memory_space<vmem>>, %arg4: memref<8x48xbf16, #tpu.memory_space<vmem>>) attributes {dimension_semantics = [#tpu.dimension_semantics<parallel>], iteration_bounds = array<i64: 1>, scalar_prefetch = 0 : i64, scratch_operands = 0 : i64, tpu.core_type = #tpu.core_type<tc>, window_params = [{transform_indices = @transform_0, window_bounds = array<i64: 8, 432>}, {pipeline_mode = #tpu.pipeline_mode<synchronous>, transform_indices = @transform_1, window_bounds = array<i64: 432, 48>}, {pipeline_mode = #tpu.pipeline_mode<synchronous>, transform_indices = @transform_2, window_bounds = array<i64: 1, 48>}, {transform_indices = @transform_3, window_bounds = array<i64: 8, 48>}]} {
    %c0 = arith.constant 0 : index
    %c0_0 = arith.constant 0 : index
    %0 = vector.load %arg1[%c0, %c0_0] : memref<8x432xbf16, #tpu.memory_space<vmem>>, vector<8x432xbf16>
    %c0_1 = arith.constant 0 : index
    %c0_2 = arith.constant 0 : index
    %1 = vector.load %arg2[%c0_1, %c0_2] : memref<432x48xbf16, #tpu.memory_space<vmem>>, vector<432x48xbf16>
    %cst = arith.constant dense<0.000000e+00> : vector<8x48xf32>
    %2 = tpu.matmul %0, %1, %cst {dimension_numbers = #tpu.dot_dimension_numbers<[1], [0], [0], [1], [0, 0, 1, 1], [], []>} : vector<8x432xbf16>, vector<432x48xbf16>, vector<8x48xf32> -> vector<8x48xf32>
    %c0_3 = arith.constant 0 : index
    %c0_4 = arith.constant 0 : index
    %3 = vector.load %arg3[%c0_3, %c0_4] : memref<1x48xf32, #tpu.memory_space<vmem>>, vector<1x48xf32>
    %4 = vector.broadcast %3 : vector<1x48xf32> to vector<8x48xf32>
    %5 = arith.addf %2, %4 : vector<8x48xf32>
    %cst_5 = arith.constant 0.000000e+00 : f32
    %6 = vector.broadcast %cst_5 : f32 to vector<8x48xf32>
    %7 = arith.maximumf %5, %6 : vector<8x48xf32>
    %8 = arith.truncf %7 : vector<8x48xf32> to vector<8x48xbf16>
    %c0_6 = arith.constant 0 : index
    %c0_7 = arith.constant 0 : index
    %9 = vector.load %arg4[%c0_6, %c0_7] : memref<8x48xbf16, #tpu.memory_space<vmem>>, vector<8x48xbf16>
    tpu.vector_store %arg4[%c0_6, %c0_7], %8 {strides = array<i32>} : memref<8x48xbf16, #tpu.memory_space<vmem>>, vector<8x48xbf16>,
    return
  }
  func.func @transform_0(%arg0: i32) -> (i32, i32) {
    %c0_i32 = arith.constant 0 : i32
    %c0_i32_0 = arith.constant 0 : i32
    return %arg0, %c0_i32 : i32, i32
  }
  func.func @transform_1(%arg0: i32) -> (i32, i32) {
    %c0_i32 = arith.constant 0 : i32
    %c0_i32_0 = arith.constant 0 : i32
    %c0_i32_1 = arith.constant 0 : i32
    return %c0_i32, %c0_i32_0 : i32, i32
  }
  func.func @transform_2(%arg0: i32) -> (i32, i32) {
    %c0_i32 = arith.constant 0 : i32
    %c0_i32_0 = arith.constant 0 : i32
    %c0_i32_1 = arith.constant 0 : i32
    return %c0_i32, %c0_i32_0 : i32, i32
  }
  func.func @transform_3(%arg0: i32) -> (i32, i32) {
    %c0_i32 = arith.constant 0 : i32
    %c0_i32_0 = arith.constant 0 : i32
    return %arg0, %c0_i32 : i32, i32
  }
}

module attributes {stable_mosaic.version = 11 : i64} {
  func.func @_matmul_bias_act_kernel(%arg0: i32, %arg1: memref<8x216xbf16, #tpu.memory_space<vmem>>, %arg2: memref<216x24xbf16, #tpu.memory_space<vmem>>, %arg3: memref<1x24xf32, #tpu.memory_space<vmem>>, %arg4: memref<8x24xbf16, #tpu.memory_space<vmem>>) attributes {dimension_semantics = [#tpu.dimension_semantics<parallel>], iteration_bounds = array<i64: 1>, scalar_prefetch = 0 : i64, scratch_operands = 0 : i64, tpu.core_type = #tpu.core_type<tc>, window_params = [{transform_indices = @transform_0, window_bounds = array<i64: 8, 216>}, {pipeline_mode = #tpu.pipeline_mode<synchronous>, transform_indices = @transform_1, window_bounds = array<i64: 216, 24>}, {pipeline_mode = #tpu.pipeline_mode<synchronous>, transform_indices = @transform_2, window_bounds = array<i64: 1, 24>}, {transform_indices = @transform_3, window_bounds = array<i64: 8, 24>}]} {
    %c0 = arith.constant 0 : index
    %c0_0 = arith.constant 0 : index
    %0 = vector.load %arg1[%c0, %c0_0] : memref<8x216xbf16, #tpu.memory_space<vmem>>, vector<8x216xbf16>
    %c0_1 = arith.constant 0 : index
    %c0_2 = arith.constant 0 : index
    %1 = vector.load %arg2[%c0_1, %c0_2] : memref<216x24xbf16, #tpu.memory_space<vmem>>, vector<216x24xbf16>
    %cst = arith.constant dense<0.000000e+00> : vector<8x24xf32>
    %2 = tpu.matmul %0, %1, %cst {dimension_numbers = #tpu.dot_dimension_numbers<[1], [0], [0], [1], [0, 0, 1, 1], [], []>} : vector<8x216xbf16>, vector<216x24xbf16>, vector<8x24xf32> -> vector<8x24xf32>
    %c0_3 = arith.constant 0 : index
    %c0_4 = arith.constant 0 : index
    %3 = vector.load %arg3[%c0_3, %c0_4] : memref<1x24xf32, #tpu.memory_space<vmem>>, vector<1x24xf32>
    %4 = vector.broadcast %3 : vector<1x24xf32> to vector<8x24xf32>
    %5 = arith.addf %2, %4 : vector<8x24xf32>
    %cst_5 = arith.constant 0.000000e+00 : f32
    %6 = vector.broadcast %cst_5 : f32 to vector<8x24xf32>
    %7 = arith.maximumf %5, %6 : vector<8x24xf32>
    %8 = arith.truncf %7 : vector<8x24xf32> to vector<8x24xbf16>
    %c0_6 = arith.constant 0 : index
    %c0_7 = arith.constant 0 : index
    %9 = vector.load %arg4[%c0_6, %c0_7] : memref<8x24xbf16, #tpu.memory_space<vmem>>, vector<8x24xbf16>
    tpu.vector_store %arg4[%c0_6, %c0_7], %8 {strides = array<i32>} : memref<8x24xbf16, #tpu.memory_space<vmem>>, vector<8x24xbf16>,
    return
  }
  func.func @transform_0(%arg0: i32) -> (i32, i32) {
    %c0_i32 = arith.constant 0 : i32
    %c0_i32_0 = arith.constant 0 : i32
    return %arg0, %c0_i32 : i32, i32
  }
  func.func @transform_1(%arg0: i32) -> (i32, i32) {
    %c0_i32 = arith.constant 0 : i32
    %c0_i32_0 = arith.constant 0 : i32
    %c0_i32_1 = arith.constant 0 : i32
    return %c0_i32, %c0_i32_0 : i32, i32
  }
  func.func @transform_2(%arg0: i32) -> (i32, i32) {
    %c0_i32 = arith.constant 0 : i32
    %c0_i32_0 = arith.constant 0 : i32
    %c0_i32_1 = arith.constant 0 : i32
    return %c0_i32, %c0_i32_0 : i32, i32
  }
  func.func @transform_3(%arg0: i32) -> (i32, i32) {
    %c0_i32 = arith.constant 0 : i32
    %c0_i32_0 = arith.constant 0 : i32
    return %arg0, %c0_i32 : i32, i32
  }
}

module attributes {stable_mosaic.version = 11 : i64} {
  func.func @_matmul_bias_act_kernel(%arg0: i32, %arg1: memref<2x864xbf16, #tpu.memory_space<vmem>>, %arg2: memref<864x96xbf16, #tpu.memory_space<vmem>>, %arg3: memref<1x96xf32, #tpu.memory_space<vmem>>, %arg4: memref<2x96xbf16, #tpu.memory_space<vmem>>) attributes {dimension_semantics = [#tpu.dimension_semantics<parallel>], iteration_bounds = array<i64: 1>, scalar_prefetch = 0 : i64, scratch_operands = 0 : i64, tpu.core_type = #tpu.core_type<tc>, window_params = [{transform_indices = @transform_0, window_bounds = array<i64: 2, 864>}, {pipeline_mode = #tpu.pipeline_mode<synchronous>, transform_indices = @transform_1, window_bounds = array<i64: 864, 96>}, {pipeline_mode = #tpu.pipeline_mode<synchronous>, transform_indices = @transform_2, window_bounds = array<i64: 1, 96>}, {transform_indices = @transform_3, window_bounds = array<i64: 2, 96>}]} {
    %c0 = arith.constant 0 : index
    %c0_0 = arith.constant 0 : index
    %0 = vector.load %arg1[%c0, %c0_0] : memref<2x864xbf16, #tpu.memory_space<vmem>>, vector<2x864xbf16>
    %c0_1 = arith.constant 0 : index
    %c0_2 = arith.constant 0 : index
    %1 = vector.load %arg2[%c0_1, %c0_2] : memref<864x96xbf16, #tpu.memory_space<vmem>>, vector<864x96xbf16>
    %cst = arith.constant dense<0.000000e+00> : vector<2x96xf32>
    %2 = tpu.matmul %0, %1, %cst {dimension_numbers = #tpu.dot_dimension_numbers<[1], [0], [0], [1], [0, 0, 1, 1], [], []>} : vector<2x864xbf16>, vector<864x96xbf16>, vector<2x96xf32> -> vector<2x96xf32>
    %c0_3 = arith.constant 0 : index
    %c0_4 = arith.constant 0 : index
    %3 = vector.load %arg3[%c0_3, %c0_4] : memref<1x96xf32, #tpu.memory_space<vmem>>, vector<1x96xf32>
    %4 = vector.broadcast %3 : vector<1x96xf32> to vector<2x96xf32>
    %5 = arith.addf %2, %4 : vector<2x96xf32>
    %cst_5 = arith.constant 0.000000e+00 : f32
    %6 = vector.broadcast %cst_5 : f32 to vector<2x96xf32>
    %7 = arith.maximumf %5, %6 : vector<2x96xf32>
    %8 = arith.truncf %7 : vector<2x96xf32> to vector<2x96xbf16>
    %c0_6 = arith.constant 0 : index
    %c0_7 = arith.constant 0 : index
    %9 = vector.load %arg4[%c0_6, %c0_7] : memref<2x96xbf16, #tpu.memory_space<vmem>>, vector<2x96xbf16>
    tpu.vector_store %arg4[%c0_6, %c0_7], %8 {strides = array<i32>} : memref<2x96xbf16, #tpu.memory_space<vmem>>, vector<2x96xbf16>,
    return
  }
  func.func @transform_0(%arg0: i32) -> (i32, i32) {
    %c0_i32 = arith.constant 0 : i32
    %c0_i32_0 = arith.constant 0 : i32
    return %arg0, %c0_i32 : i32, i32
  }
  func.func @transform_1(%arg0: i32) -> (i32, i32) {
    %c0_i32 = arith.constant 0 : i32
    %c0_i32_0 = arith.constant 0 : i32
    %c0_i32_1 = arith.constant 0 : i32
    return %c0_i32, %c0_i32_0 : i32, i32
  }
  func.func @transform_2(%arg0: i32) -> (i32, i32) {
    %c0_i32 = arith.constant 0 : i32
    %c0_i32_0 = arith.constant 0 : i32
    %c0_i32_1 = arith.constant 0 : i32
    return %c0_i32, %c0_i32_0 : i32, i32
  }
  func.func @transform_3(%arg0: i32) -> (i32, i32) {
    %c0_i32 = arith.constant 0 : i32
    %c0_i32_0 = arith.constant 0 : i32
    return %arg0, %c0_i32 : i32, i32
  }
}

module attributes {stable_mosaic.version = 11 : i64} {
  func.func @_matmul_bias_act_kernel(%arg0: i32, %arg1: memref<2x216xbf16, #tpu.memory_space<vmem>>, %arg2: memref<216x24xbf16, #tpu.memory_space<vmem>>, %arg3: memref<1x24xf32, #tpu.memory_space<vmem>>, %arg4: memref<2x24xbf16, #tpu.memory_space<vmem>>) attributes {dimension_semantics = [#tpu.dimension_semantics<parallel>], iteration_bounds = array<i64: 1>, scalar_prefetch = 0 : i64, scratch_operands = 0 : i64, tpu.core_type = #tpu.core_type<tc>, window_params = [{transform_indices = @transform_0, window_bounds = array<i64: 2, 216>}, {pipeline_mode = #tpu.pipeline_mode<synchronous>, transform_indices = @transform_1, window_bounds = array<i64: 216, 24>}, {pipeline_mode = #tpu.pipeline_mode<synchronous>, transform_indices = @transform_2, window_bounds = array<i64: 1, 24>}, {transform_indices = @transform_3, window_bounds = array<i64: 2, 24>}]} {
    %c0 = arith.constant 0 : index
    %c0_0 = arith.constant 0 : index
    %0 = vector.load %arg1[%c0, %c0_0] : memref<2x216xbf16, #tpu.memory_space<vmem>>, vector<2x216xbf16>
    %c0_1 = arith.constant 0 : index
    %c0_2 = arith.constant 0 : index
    %1 = vector.load %arg2[%c0_1, %c0_2] : memref<216x24xbf16, #tpu.memory_space<vmem>>, vector<216x24xbf16>
    %cst = arith.constant dense<0.000000e+00> : vector<2x24xf32>
    %2 = tpu.matmul %0, %1, %cst {dimension_numbers = #tpu.dot_dimension_numbers<[1], [0], [0], [1], [0, 0, 1, 1], [], []>} : vector<2x216xbf16>, vector<216x24xbf16>, vector<2x24xf32> -> vector<2x24xf32>
    %c0_3 = arith.constant 0 : index
    %c0_4 = arith.constant 0 : index
    %3 = vector.load %arg3[%c0_3, %c0_4] : memref<1x24xf32, #tpu.memory_space<vmem>>, vector<1x24xf32>
    %4 = vector.broadcast %3 : vector<1x24xf32> to vector<2x24xf32>
    %5 = arith.addf %2, %4 : vector<2x24xf32>
    %cst_5 = arith.constant 0.000000e+00 : f32
    %6 = vector.broadcast %cst_5 : f32 to vector<2x24xf32>
    %7 = arith.maximumf %5, %6 : vector<2x24xf32>
    %8 = arith.truncf %7 : vector<2x24xf32> to vector<2x24xbf16>
    %c0_6 = arith.constant 0 : index
    %c0_7 = arith.constant 0 : index
    %9 = vector.load %arg4[%c0_6, %c0_7] : memref<2x24xbf16, #tpu.memory_space<vmem>>, vector<2x24xbf16>
    tpu.vector_store %arg4[%c0_6, %c0_7], %8 {strides = array<i32>} : memref<2x24xbf16, #tpu.memory_space<vmem>>, vector<2x24xbf16>,
    return
  }
  func.func @transform_0(%arg0: i32) -> (i32, i32) {
    %c0_i32 = arith.constant 0 : i32
    %c0_i32_0 = arith.constant 0 : i32
    return %arg0, %c0_i32 : i32, i32
  }
  func.func @transform_1(%arg0: i32) -> (i32, i32) {
    %c0_i32 = arith.constant 0 : i32
    %c0_i32_0 = arith.constant 0 : i32
    %c0_i32_1 = arith.constant 0 : i32
    return %c0_i32, %c0_i32_0 : i32, i32
  }
  func.func @transform_2(%arg0: i32) -> (i32, i32) {
    %c0_i32 = arith.constant 0 : i32
    %c0_i32_0 = arith.constant 0 : i32
    %c0_i32_1 = arith.constant 0 : i32
    return %c0_i32, %c0_i32_0 : i32, i32
  }
  func.func @transform_3(%arg0: i32) -> (i32, i32) {
    %c0_i32 = arith.constant 0 : i32
    %c0_i32_0 = arith.constant 0 : i32
    return %arg0, %c0_i32 : i32, i32
  }
}

module attributes {stable_mosaic.version = 11 : i64} {
  func.func @_matmul_bias_act_kernel(%arg0: i32, %arg1: memref<2x432xbf16, #tpu.memory_space<vmem>>, %arg2: memref<432x48xbf16, #tpu.memory_space<vmem>>, %arg3: memref<1x48xf32, #tpu.memory_space<vmem>>, %arg4: memref<2x48xbf16, #tpu.memory_space<vmem>>) attributes {dimension_semantics = [#tpu.dimension_semantics<parallel>], iteration_bounds = array<i64: 1>, scalar_prefetch = 0 : i64, scratch_operands = 0 : i64, tpu.core_type = #tpu.core_type<tc>, window_params = [{transform_indices = @transform_0, window_bounds = array<i64: 2, 432>}, {pipeline_mode = #tpu.pipeline_mode<synchronous>, transform_indices = @transform_1, window_bounds = array<i64: 432, 48>}, {pipeline_mode = #tpu.pipeline_mode<synchronous>, transform_indices = @transform_2, window_bounds = array<i64: 1, 48>}, {transform_indices = @transform_3, window_bounds = array<i64: 2, 48>}]} {
    %c0 = arith.constant 0 : index
    %c0_0 = arith.constant 0 : index
    %0 = vector.load %arg1[%c0, %c0_0] : memref<2x432xbf16, #tpu.memory_space<vmem>>, vector<2x432xbf16>
    %c0_1 = arith.constant 0 : index
    %c0_2 = arith.constant 0 : index
    %1 = vector.load %arg2[%c0_1, %c0_2] : memref<432x48xbf16, #tpu.memory_space<vmem>>, vector<432x48xbf16>
    %cst = arith.constant dense<0.000000e+00> : vector<2x48xf32>
    %2 = tpu.matmul %0, %1, %cst {dimension_numbers = #tpu.dot_dimension_numbers<[1], [0], [0], [1], [0, 0, 1, 1], [], []>} : vector<2x432xbf16>, vector<432x48xbf16>, vector<2x48xf32> -> vector<2x48xf32>
    %c0_3 = arith.constant 0 : index
    %c0_4 = arith.constant 0 : index
    %3 = vector.load %arg3[%c0_3, %c0_4] : memref<1x48xf32, #tpu.memory_space<vmem>>, vector<1x48xf32>
    %4 = vector.broadcast %3 : vector<1x48xf32> to vector<2x48xf32>
    %5 = arith.addf %2, %4 : vector<2x48xf32>
    %cst_5 = arith.constant 0.000000e+00 : f32
    %6 = vector.broadcast %cst_5 : f32 to vector<2x48xf32>
    %7 = arith.maximumf %5, %6 : vector<2x48xf32>
    %8 = arith.truncf %7 : vector<2x48xf32> to vector<2x48xbf16>
    %c0_6 = arith.constant 0 : index
    %c0_7 = arith.constant 0 : index
    %9 = vector.load %arg4[%c0_6, %c0_7] : memref<2x48xbf16, #tpu.memory_space<vmem>>, vector<2x48xbf16>
    tpu.vector_store %arg4[%c0_6, %c0_7], %8 {strides = array<i32>} : memref<2x48xbf16, #tpu.memory_space<vmem>>, vector<2x48xbf16>,
    return
  }
  func.func @transform_0(%arg0: i32) -> (i32, i32) {
    %c0_i32 = arith.constant 0 : i32
    %c0_i32_0 = arith.constant 0 : i32
    return %arg0, %c0_i32 : i32, i32
  }
  func.func @transform_1(%arg0: i32) -> (i32, i32) {
    %c0_i32 = arith.constant 0 : i32
    %c0_i32_0 = arith.constant 0 : i32
    %c0_i32_1 = arith.constant 0 : i32
    return %c0_i32, %c0_i32_0 : i32, i32
  }
  func.func @transform_2(%arg0: i32) -> (i32, i32) {
    %c0_i32 = arith.constant 0 : i32
    %c0_i32_0 = arith.constant 0 : i32
    %c0_i32_1 = arith.constant 0 : i32
    return %c0_i32, %c0_i32_0 : i32, i32
  }
  func.func @transform_3(%arg0: i32) -> (i32, i32) {
    %c0_i32 = arith.constant 0 : i32
    %c0_i32_0 = arith.constant 0 : i32
    return %arg0, %c0_i32 : i32, i32
  }
}

module attributes {stable_mosaic.version = 11 : i64} {
  func.func @_matmul_bias_act_kernel(%arg0: i32, %arg1: memref<12x864xbf16, #tpu.memory_space<vmem>>, %arg2: memref<864x144xbf16, #tpu.memory_space<vmem>>, %arg3: memref<1x144xf32, #tpu.memory_space<vmem>>, %arg4: memref<12x144xbf16, #tpu.memory_space<vmem>>) attributes {dimension_semantics = [#tpu.dimension_semantics<parallel>], iteration_bounds = array<i64: 1>, scalar_prefetch = 0 : i64, scratch_operands = 0 : i64, tpu.core_type = #tpu.core_type<tc>, window_params = [{transform_indices = @transform_0, window_bounds = array<i64: 12, 864>}, {pipeline_mode = #tpu.pipeline_mode<synchronous>, transform_indices = @transform_1, window_bounds = array<i64: 864, 144>}, {pipeline_mode = #tpu.pipeline_mode<synchronous>, transform_indices = @transform_2, window_bounds = array<i64: 1, 144>}, {transform_indices = @transform_3, window_bounds = array<i64: 12, 144>}]} {
    %c0 = arith.constant 0 : index
    %c0_0 = arith.constant 0 : index
    %0 = vector.load %arg1[%c0, %c0_0] : memref<12x864xbf16, #tpu.memory_space<vmem>>, vector<12x864xbf16>
    %c0_1 = arith.constant 0 : index
    %c0_2 = arith.constant 0 : index
    %1 = vector.load %arg2[%c0_1, %c0_2] : memref<864x144xbf16, #tpu.memory_space<vmem>>, vector<864x144xbf16>
    %cst = arith.constant dense<0.000000e+00> : vector<12x144xf32>
    %2 = tpu.matmul %0, %1, %cst {dimension_numbers = #tpu.dot_dimension_numbers<[1], [0], [0], [1], [0, 0, 1, 1], [], []>} : vector<12x864xbf16>, vector<864x144xbf16>, vector<12x144xf32> -> vector<12x144xf32>
    %c0_3 = arith.constant 0 : index
    %c0_4 = arith.constant 0 : index
    %3 = vector.load %arg3[%c0_3, %c0_4] : memref<1x144xf32, #tpu.memory_space<vmem>>, vector<1x144xf32>
    %4 = vector.broadcast %3 : vector<1x144xf32> to vector<12x144xf32>
    %5 = arith.addf %2, %4 : vector<12x144xf32>
    %6 = arith.truncf %5 : vector<12x144xf32> to vector<12x144xbf16>
    %c0_5 = arith.constant 0 : index
    %c0_6 = arith.constant 0 : index
    %7 = vector.load %arg4[%c0_5, %c0_6] : memref<12x144xbf16, #tpu.memory_space<vmem>>, vector<12x144xbf16>
    tpu.vector_store %arg4[%c0_5, %c0_6], %6 {strides = array<i32>} : memref<12x144xbf16, #tpu.memory_space<vmem>>, vector<12x144xbf16>,
    return
  }
  func.func @transform_0(%arg0: i32) -> (i32, i32) {
    %c0_i32 = arith.constant 0 : i32
    %c0_i32_0 = arith.constant 0 : i32
    return %arg0, %c0_i32 : i32, i32
  }
  func.func @transform_1(%arg0: i32) -> (i32, i32) {
    %c0_i32 = arith.constant 0 : i32
    %c0_i32_0 = arith.constant 0 : i32
    %c0_i32_1 = arith.constant 0 : i32
    return %c0_i32, %c0_i32_0 : i32, i32
  }
  func.func @transform_2(%arg0: i32) -> (i32, i32) {
    %c0_i32 = arith.constant 0 : i32
    %c0_i32_0 = arith.constant 0 : i32
    %c0_i32_1 = arith.constant 0 : i32
    return %c0_i32, %c0_i32_0 : i32, i32
  }
  func.func @transform_3(%arg0: i32) -> (i32, i32) {
    %c0_i32 = arith.constant 0 : i32
    %c0_i32_0 = arith.constant 0 : i32
    return %arg0, %c0_i32 : i32, i32
  }
}

</mosaic_0001>

<llo_original>
// kernel: faceboxes_forward.12
$region0: #{faceboxes_forward.12}
  #allocation0 [shape = 'u32[]', space=smem, size = 0x4, offset = 0x4, fixed_abs, tag = 'smem constant byte address 0x4 - core index']
  #allocation1 [shape = 'u32[144,128]{1,0:T(1,128)}', space=vmem, size = 0x12000, scoped, tag = 'internal scratch']
  %s0 = inlined_call_operand.vmem [shape: bf16[512,75], index: 0, kind: input, shape index: {}]
  %s1 = inlined_call_operand.vmem [shape: bf16[75,16], index: 1, kind: input, shape index: {}]
  %s2 = inlined_call_operand.vmem [shape: f32[1,16], index: 2, kind: input, shape index: {}]
  %s3 = inlined_call_operand.vmem [shape: bf16[512,16], index: 3, kind: output, shape index: {}]
  %s4 = sld [smem:[#allocation0]]
  $region22: #{faceboxes_forward.12} parent=0
    _
  %s6 = ssub.s32 1, %s4
  %s7 = scalar_select 0, %s6, %s4
  // Predicated region
  $region2: #{faceboxes_forward.12} parent=0 // pred_check
    _
  $region3: #{faceboxes_forward.12} parent=0 // pred_check_branch
    %9 = sbr.rel (0) target = $region5
  $region4: #{faceboxes_forward.12} parent=0 // pred_region
    _
  $region5: #{faceboxes_forward.12} parent=0 // pred_fallthru
    _
  // Predicated region
  $region6: #{faceboxes_forward.12} parent=0 // pred_check
    _
  $region7: #{faceboxes_forward.12} parent=0 // pred_check_branch
    %11 = sbr.rel (0) target = $region9
  $region8: #{faceboxes_forward.12} parent=0 // pred_region
    _
  $region9: #{faceboxes_forward.12} parent=0 // pred_fallthru
    _
  // Predicated region
  $region10: #{faceboxes_forward.12} parent=0 // pred_check
    _
  $region11: #{faceboxes_forward.12} parent=0 // pred_check_branch
    %13 = sbr.rel (0) target = $region13
  $region12: #{faceboxes_forward.12} parent=0 // pred_region
    _
  $region13: #{faceboxes_forward.12} parent=0 // pred_fallthru
    _
  %v15 = vld [vmem:[%s0] sm:$0xf]
  %v16 = vld [vmem:[%s0 + $0x4] sm:$0xf]
  %v17 = vld [vmem:[%s0 + $0x8] sm:$0xf]
  %v18 = vld [vmem:[%s0 + $0xc] sm:$0xf]
  %v19 = vld [vmem:[%s0 + $0x10] sm:$0xf]
  %v20 = vld [vmem:[%s0 + $0x14] sm:$0xf]
  %v21 = vld [vmem:[%s0 + $0x18] sm:$0xf]
  %v22 = vld [vmem:[%s0 + $0x1c] sm:$0xf]
  %v23 = vld [vmem:[%s0 + $0x20] sm:$0xf]
  %v24 = vld [vmem:[%s0 + $0x24] sm:$0xf]
  %v25 = vld [vmem:[%s0 + $0x28] sm:$0xf]
  %v26 = vld [vmem:[%s0 + $0x2c] sm:$0xf]
  %v27 = vld [vmem:[%s0 + $0x30] sm:$0xf]
  %v28 = vld [vmem:[%s0 + $0x34] sm:$0xf]
  %v29 = vld [vmem:[%s0 + $0x38] sm:$0xf]
  %v30 = vld [vmem:[%s0 + $0x3c] sm:$0xf]
  %v31 = vld [vmem:[%s0 + $0x40] sm:$0xf]
  %v32 = vld [vmem:[%s0 + $0x44] sm:$0xf]
  %v33 = vld [vmem:[%s0 + $0x48] sm:$0xf]
  %v34 = vld [vmem:[%s0 + $0x4c] sm:$0xf]
  %v35 = vld [vmem:[%s0 + $0x50] sm:$0xf]
  %v36 = vld [vmem:[%s0 + $0x54] sm:$0xf]
  %v37 = vld [vmem:[%s0 + $0x58] sm:$0xf]
  %v38 = vld [vmem:[%s0 + $0x5c] sm:$0xf]
  %v39 = vld [vmem:[%s0 + $0x60] sm:$0xf]
  %v40 = vld [vmem:[%s0 + $0x64] sm:$0xf]
  %v41 = vld [vmem:[%s0 + $0x68] sm:$0xf]
  %v42 = vld [vmem:[%s0 + $0x6c] sm:$0xf]
  %v43 = vld [vmem:[%s0 + $0x70] sm:$0xf]
  %v44 = vld [vmem:[%s0 + $0x74] sm:$0xf]
  %v45 = vld [vmem:[%s0 + $0x78] sm:$0xf]
  %v46 = vld [vmem:[%s0 + $0x7c] sm:$0xf]
  %v47 = vld [vmem:[%s0 + $0x80] sm:$0xf]
  %v48 = vld [vmem:[%s0 + $0x84] sm:$0xf]
  %v49 = vld [vmem:[%s0 + $0x88] sm:$0xf]
  %v50 = vld [vmem:[%s0 + $0x8c] sm:$0xf]
  %v51 = vld [vmem:[%s0 + $0x90] sm:$0xf]
  %v52 = vld [vmem:[%s0 + $0x94] sm:$0xf]
  %v53 = vld [vmem:[%s0 + $0x98] sm:$0xf]
  %v54 = vld [vmem:[%s0 + $0x9c] sm:$0xf]
  %v55 = vld [vmem:[%s0 + $0xa0] sm:$0xf]
  %v56 = vld [vmem:[%s0 + $0xa4] sm:$0xf]
  %v57 = vld [vmem:[%s0 + $0xa8] sm:$0xf]
  %v58 = vld [vmem:[%s0 + $0xac] sm:$0xf]
  %v59 = vld [vmem:[%s0 + $0xb0] sm:$0xf]
  %v60 = vld [vmem:[%s0 + $0xb4] sm:$0xf]
  %v61 = vld [vmem:[%s0 + $0xb8] sm:$0xf]
  %v62 = vld [vmem:[%s0 + $0xbc] sm:$0xf]
  %v63 = vld [vmem:[%s0 + $0xc0] sm:$0xf]
  %v64 = vld [vmem:[%s0 + $0xc4] sm:$0xf]
  %v65 = vld [vmem:[%s0 + $0xc8] sm:$0xf]
  %v66 = vld [vmem:[%s0 + $0xcc] sm:$0xf]
  %v67 = vld [vmem:[%s0 + $0xd0] sm:$0xf]
  %v68 = vld [vmem:[%s0 + $0xd4] sm:$0xf]
  %v69 = vld [vmem:[%s0 + $0xd8] sm:$0xf]
  %v70 = vld [vmem:[%s0 + $0xdc] sm:$0xf]
  %v71 = vld [vmem:[%s0 + $0xe0] sm:$0xf]
  %v72 = vld [vmem:[%s0 + $0xe4] sm:$0xf]
  %v73 = vld [vmem:[%s0 + $0xe8] sm:$0xf]
  %v74 = vld [vmem:[%s0 + $0xec] sm:$0xf]
  %v75 = vld [vmem:[%s0 + $0xf0] sm:$0xf]
  %v76 = vld [vmem:[%s0 + $0xf4] sm:$0xf]
  %v77 = vld [vmem:[%s0 + $0xf8] sm:$0xf]
  %v78 = vld [vmem:[%s0 + $0xfc] sm:$0xf]
  %v79 = vld [vmem:[%s1] sm:$0xf]
  %v80 = vld [vmem:[%s1 + $0x4] sm:$0xf]
  %v81 = vld [vmem:[%s1 + $0x8] sm:$0xf]
  %v82 = vld [vmem:[%s1 + $0xc] sm:$0xf]
  %v83 = vld [vmem:[%s1 + $0x10] sm:$0xf]
  %v84 = vld [vmem:[%s1 + $0x14] sm:$0xf]
  %v85 = vld [vmem:[%s1 + $0x18] sm:$0xf]
  %v86 = vld [vmem:[%s1 + $0x1c] sm:$0xf]
  %v87 = vld [vmem:[%s1 + $0x20] sm:$0xf]
  %v88 = vld [vmem:[%s1 + $0x24] sm:$0x3]
  %v89 = vld [vmem:[%s2] sm:$0x1]
  %v91 = vlaneseq
  %v92 = vshrl.u32 %v91, 7
  %v93 = vsub.s32 0, %v92
  %v94 = vrot.slane %v89, %v93
  %v160 = vunpack.c.l.b16 %v15
  %v161 = vunpack.c.l.b16 %v16
  %v162 = vunpack.c.l.b16 %v17
  %v163 = vunpack.c.l.b16 %v18
  %v164 = vunpack.c.l.b16 %v19
  %v165 = vunpack.c.l.b16 %v20
  %v166 = vunpack.c.l.b16 %v21
  %v167 = vunpack.c.l.b16 %v22
  %v168 = vunpack.c.l.b16 %v23
  %v169 = vunpack.c.l.b16 %v24
  %v170 = vunpack.c.l.b16 %v25
  %v171 = vunpack.c.l.b16 %v26
  %v172 = vunpack.c.l.b16 %v27
  %v173 = vunpack.c.l.b16 %v28
  %v174 = vunpack.c.l.b16 %v29
  %v175 = vunpack.c.l.b16 %v30
  %v176 = vunpack.c.l.b16 %v31
  %v177 = vunpack.c.l.b16 %v32
  %v178 = vunpack.c.l.b16 %v33
  %v179 = vunpack.c.l.b16 %v34
  %v180 = vunpack.c.l.b16 %v35
  %v181 = vunpack.c.l.b16 %v36
  %v182 = vunpack.c.l.b16 %v37
  %v183 = vunpack.c.l.b16 %v38
  %v184 = vunpack.c.l.b16 %v39
  %v185 = vunpack.c.l.b16 %v40
  %v186 = vunpack.c.l.b16 %v41
  %v187 = vunpack.c.l.b16 %v42
  %v188 = vunpack.c.l.b16 %v43
  %v189 = vunpack.c.l.b16 %v44
  %v190 = vunpack.c.l.b16 %v45
  %v191 = vunpack.c.l.b16 %v46
  %v192 = vunpack.c.l.b16 %v47
  %v193 = vunpack.c.l.b16 %v48
  %v194 = vunpack.c.l.b16 %v49
  %v195 = vunpack.c.l.b16 %v50
  %v196 = vunpack.c.l.b16 %v51
  %v197 = vunpack.c.l.b16 %v52
  %v198 = vunpack.c.l.b16 %v53
  %v199 = vunpack.c.l.b16 %v54
  %v200 = vunpack.c.l.b16 %v55
  %v201 = vunpack.c.l.b16 %v56
  %v202 = vunpack.c.l.b16 %v57
  %v203 = vunpack.c.l.b16 %v58
  %v204 = vunpack.c.l.b16 %v59
  %v205 = vunpack.c.l.b16 %v60
  %v206 = vunpack.c.l.b16 %v61
  %v207 = vunpack.c.l.b16 %v62
  %v208 = vunpack.c.l.b16 %v63
  %v209 = vunpack.c.l.b16 %v64
  %v210 = vunpack.c.l.b16 %v65
  %v211 = vunpack.c.l.b16 %v66
  %v212 = vunpack.c.l.b16 %v67
  %v213 = vunpack.c.l.b16 %v68
  %v214 = vunpack.c.l.b16 %v69
  %v215 = vunpack.c.l.b16 %v70
  %v216 = vunpack.c.l.b16 %v71
  %v217 = vunpack.c.l.b16 %v72
  %v218 = vunpack.c.l.b16 %v73
  %v219 = vunpack.c.l.b16 %v74
  %v220 = vunpack.c.l.b16 %v75
  %v221 = vunpack.c.l.b16 %v76
  %v222 = vunpack.c.l.b16 %v77
  %v223 = vunpack.c.l.b16 %v78
  %v224 = vpack.c.b16 %v161, %v160
  %v225 = vpack.c.b16 %v163, %v162
  %v226 = vpack.c.b16 %v165, %v164
  %v227 = vpack.c.b16 %v167, %v166
  %v228 = vpack.c.b16 %v169, %v168
  %v229 = vpack.c.b16 %v171, %v170
  %v230 = vpack.c.b16 %v173, %v172
  %v231 = vpack.c.b16 %v175, %v174
  %v232 = vpack.c.b16 %v177, %v176
  %v233 = vpack.c.b16 %v179, %v178
  %v234 = vpack.c.b16 %v181, %v180
  %v235 = vpack.c.b16 %v183, %v182
  %v236 = vpack.c.b16 %v185, %v184
  %v237 = vpack.c.b16 %v187, %v186
  %v238 = vpack.c.b16 %v189, %v188
  %v239 = vpack.c.b16 %v191, %v190
  %v240 = vpack.c.b16 %v193, %v192
  %v241 = vpack.c.b16 %v195, %v194
  %v242 = vpack.c.b16 %v197, %v196
  %v243 = vpack.c.b16 %v199, %v198
  %v244 = vpack.c.b16 %v201, %v200
  %v245 = vpack.c.b16 %v203, %v202
  %v246 = vpack.c.b16 %v205, %v204
  %v247 = vpack.c.b16 %v207, %v206
  %v248 = vpack.c.b16 %v209, %v208
  %v249 = vpack.c.b16 %v211, %v210
  %v250 = vpack.c.b16 %v213, %v212
  %v251 = vpack.c.b16 %v215, %v214
  %v252 = vpack.c.b16 %v217, %v216
  %v253 = vpack.c.b16 %v219, %v218
  %v254 = vpack.c.b16 %v221, %v220
  %v255 = vpack.c.b16 %v223, %v222
  %v266 = vunpack.c.l.b16 %v79
  %v267 = vunpack.c.l.b16 %v80
  %v268 = vunpack.c.l.b16 %v81
  %v269 = vunpack.c.l.b16 %v82
  %v270 = vunpack.c.l.b16 %v83
  %v271 = vunpack.c.l.b16 %v84
  %v272 = vunpack.c.l.b16 %v85
  %v273 = vunpack.c.l.b16 %v86
  %v274 = vunpack.c.l.b16 %v87
  %v275 = vunpack.c.l.b16 %v88
  %v276 = vpack.c.b16 %v267, %v266
  %v277 = vpack.c.b16 %v269, %v268
  %v278 = vpack.c.b16 %v271, %v270
  %v279 = vpack.c.b16 %v273, %v272
  %v280 = vpack.c.b16 %v275, %v274
  %vm285 = vcmask 613376
  %v287 = vsel %vm285, %v224, 0
  %v290 = vsel %vm285, %v225, 0
  %v293 = vsel %vm285, %v226, 0
  %v296 = vsel %vm285, %v227, 0
  %v299 = vsel %vm285, %v228, 0
  %v302 = vsel %vm285, %v229, 0
  %v305 = vsel %vm285, %v230, 0
  %v308 = vsel %vm285, %v231, 0
  %v311 = vsel %vm285, %v232, 0
  %v314 = vsel %vm285, %v233, 0
  %v317 = vsel %vm285, %v234, 0
  %v320 = vsel %vm285, %v235, 0
  %v323 = vsel %vm285, %v236, 0
  %v326 = vsel %vm285, %v237, 0
  %v329 = vsel %vm285, %v238, 0
  %v332 = vsel %vm285, %v239, 0
  %v335 = vsel %vm285, %v240, 0
  %v338 = vsel %vm285, %v241, 0
  %v341 = vsel %vm285, %v242, 0
  %v344 = vsel %vm285, %v243, 0
  %v347 = vsel %vm285, %v244, 0
  %v350 = vsel %vm285, %v245, 0
  %v353 = vsel %vm285, %v246, 0
  %v356 = vsel %vm285, %v247, 0
  %v359 = vsel %vm285, %v248, 0
  %v362 = vsel %vm285, %v249, 0
  %v365 = vsel %vm285, %v250, 0
  %v368 = vsel %vm285, %v251, 0
  %v371 = vsel %vm285, %v252, 0
  %v374 = vsel %vm285, %v253, 0
  %v377 = vsel %vm285, %v254, 0
  %v380 = vsel %vm285, %v255, 0
  %vm382 = vcmask 1044480
  %vm383 = vcmask 1045504
  %v384 = vsel %vm382, 4294967295, 65535
  %v385 = vsel %vm383, %v384, 0
  %v387 = vand.u32 %v280, %v385
  %389 = vmatprep.subr.bf16.mxu0 0
  %390 = vmatpush1.bf16.msra.mxu0 %v276
  %391 = vmatprep.subr.bf16.mxu0 0
  %392 = vmatpush1.bf16.msra.mxu0 %v277
  %393 = vmatprep.subr.bf16.mxu0 0
  %394 = vmatpush1.bf16.msra.mxu0 %v278
  %395 = vmatprep.subr.bf16.mxu0 0
  %396 = vmatpush1.bf16.msra.mxu0 %v279
  %397 = vmatprep.subr.bf16.mxu0 0
  %398 = vmatpush1.bf16.msra.mxu0 %v387
  %399 = vmatprep.subr.bf16.mxu0 0
  %400 = vmatpush1.bf16.msra.mxu0 0
  %401 = vmatprep.subr.bf16.mxu0 0
  %402 = vmatpush1.bf16.msra.mxu0 0
  %403 = vmatprep.subr.bf16.mxu0 0
  %404 = vmatpush1.bf16.msra.mxu0 0
  %405 = vmatprep.subr.bf16.mxu0 0
  %406 = vmatpush1.bf16.msra.mxu0 0
  %407 = vmatprep.subr.bf16.mxu0 0
  %408 = vmatpush1.bf16.msra.mxu0 0
  %409 = vmatprep.subr.bf16.mxu0 0
  %410 = vmatpush1.bf16.msra.mxu0 0
  %411 = vmatprep.subr.bf16.mxu0 0
  %412 = vmatpush1.bf16.msra.mxu0 0
  %413 = vmatprep.subr.bf16.mxu0 0
  %414 = vmatpush1.bf16.msra.mxu0 0
  %415 = vmatprep.subr.bf16.mxu0 0
  %416 = vmatpush1.bf16.msra.mxu0 0
  %417 = vmatprep.subr.bf16.mxu0 0
  %418 = vmatpush1.bf16.msra.mxu0 0
  %419 = vmatprep.subr.bf16.mxu0 0
  %420 = vmatpush1.bf16.msra.mxu0 0
  %421 = vmatprep.mubr.bf16.mxu0 0
  %422 = vmatmul.mubr.bf16.gmra.mrb[0].mxu0 %v287
  %v423 = vpop.f32.mrb[0].mxu0
  %v424 = vadd.f32 %v94, %v423
  %v425 = vpop.f32.mrb[0].mxu0
  %v426 = vpop.f32.mrb[0].mxu0
  %v427 = vadd.f32 %v94, %v426
  %v428 = vpop.f32.mrb[0].mxu0
  %429 = vmatprep.mubr.bf16.mxu0 0
  %430 = vmatmul.mubr.bf16.gmra.mrb[0].mxu0 %v290
  %v431 = vpop.f32.mrb[0].mxu0
  %v432 = vadd.f32 %v94, %v431
  %v433 = vpop.f32.mrb[0].mxu0
  %v434 = vpop.f32.mrb[0].mxu0
  %v435 = vadd.f32 %v94, %v434
  %v436 = vpop.f32.mrb[0].mxu0
  %437 = vmatprep.mubr.bf16.mxu0 0
  %438 = vmatmul.mubr.bf16.gmra.mrb[0].mxu0 %v293
  %v439 = vpop.f32.mrb[0].mxu0
  %v440 = vadd.f32 %v94, %v439
  %v441 = vpop.f32.mrb[0].mxu0
  %v442 = vpop.f32.mrb[0].mxu0
  %v443 = vadd.f32 %v94, %v442
  %v444 = vpop.f32.mrb[0].mxu0
  %445 = vmatprep.mubr.bf16.mxu0 0
  %446 = vmatmul.mubr.bf16.gmra.mrb[0].mxu0 %v296
  %v447 = vpop.f32.mrb[0].mxu0
  %v448 = vadd.f32 %v94, %v447
  %v449 = vpop.f32.mrb[0].mxu0
  %v450 = vpop.f32.mrb[0].mxu0
  %v451 = vadd.f32 %v94, %v450
  %v452 = vpop.f32.mrb[0].mxu0
  %453 = vmatprep.mubr.bf16.mxu0 0
  %454 = vmatmul.mubr.bf16.gmra.mrb[0].mxu0 %v299
  %v455 = vpop.f32.mrb[0].mxu0
  %v456 = vadd.f32 %v94, %v455
  %v457 = vpop.f32.mrb[0].mxu0
  %v458 = vpop.f32.mrb[0].mxu0
  %v459 = vadd.f32 %v94, %v458
  %v460 = vpop.f32.mrb[0].mxu0
  %461 = vmatprep.mubr.bf16.mxu0 0
  %462 = vmatmul.mubr.bf16.gmra.mrb[0].mxu0 %v302
  %v463 = vpop.f32.mrb[0].mxu0
  %v464 = vadd.f32 %v94, %v463
  %v465 = vpop.f32.mrb[0].mxu0
  %v466 = vpop.f32.mrb[0].mxu0
  %v467 = vadd.f32 %v94, %v466
  %v468 = vpop.f32.mrb[0].mxu0
  %469 = vmatprep.mubr.bf16.mxu0 0
  %470 = vmatmul.mubr.bf16.gmra.mrb[0].mxu0 %v305
  %v471 = vpop.f32.mrb[0].mxu0
  %v472 = vadd.f32 %v94, %v471
  %v473 = vpop.f32.mrb[0].mxu0
  %v474 = vpop.f32.mrb[0].mxu0
  %v475 = vadd.f32 %v94, %v474
  %v476 = vpop.f32.mrb[0].mxu0
  %477 = vmatprep.mubr.bf16.mxu0 0
  %478 = vmatmul.mubr.bf16.gmra.mrb[0].mxu0 %v308
  %v479 = vpop.f32.mrb[0].mxu0
  %v480 = vadd.f32 %v94, %v479
  %v481 = vpop.f32.mrb[0].mxu0
  %v482 = vpop.f32.mrb[0].mxu0
  %v483 = vadd.f32 %v94, %v482
  %v484 = vpop.f32.mrb[0].mxu0
  %485 = vmatprep.mubr.bf16.mxu0 0
  %486 = vmatmul.mubr.bf16.gmra.mrb[0].mxu0 %v311
  %v487 = vpop.f32.mrb[0].mxu0
  %v488 = vadd.f32 %v94, %v487
  %v489 = vpop.f32.mrb[0].mxu0
  %v490 = vpop.f32.mrb[0].mxu0
  %v491 = vadd.f32 %v94, %v490
  %v492 = vpop.f32.mrb[0].mxu0
  %493 = vmatprep.mubr.bf16.mxu0 0
  %494 = vmatmul.mubr.bf16.gmra.mrb[0].mxu0 %v314
  %v495 = vpop.f32.mrb[0].mxu0
  %v496 = vadd.f32 %v94, %v495
  %v497 = vpop.f32.mrb[0].mxu0
  %v498 = vpop.f32.mrb[0].mxu0
  %v499 = vadd.f32 %v94, %v498
  %v500 = vpop.f32.mrb[0].mxu0
  %501 = vmatprep.mubr.bf16.mxu0 0
  %502 = vmatmul.mubr.bf16.gmra.mrb[0].mxu0 %v317
  %v503 = vpop.f32.mrb[0].mxu0
  %v504 = vadd.f32 %v94, %v503
  %v505 = vpop.f32.mrb[0].mxu0
  %v506 = vpop.f32.mrb[0].mxu0
  %v507 = vadd.f32 %v94, %v506
  %v508 = vpop.f32.mrb[0].mxu0
  %509 = vmatprep.mubr.bf16.mxu0 0
  %510 = vmatmul.mubr.bf16.gmra.mrb[0].mxu0 %v320
  %v511 = vpop.f32.mrb[0].mxu0
  %v512 = vadd.f32 %v94, %v511
  %v513 = vpop.f32.mrb[0].mxu0
  %v514 = vpop.f32.mrb[0].mxu0
  %v515 = vadd.f32 %v94, %v514
  %v516 = vpop.f32.mrb[0].mxu0
  %517 = vmatprep.mubr.bf16.mxu0 0
  %518 = vmatmul.mubr.bf16.gmra.mrb[0].mxu0 %v323
  %v519 = vpop.f32.mrb[0].mxu0
  %v520 = vadd.f32 %v94, %v519
  %v521 = vpop.f32.mrb[0].mxu0
  %v522 = vpop.f32.mrb[0].mxu0
  %v523 = vadd.f32 %v94, %v522
  %v524 = vpop.f32.mrb[0].mxu0
  %525 = vmatprep.mubr.bf16.mxu0 0
  %526 = vmatmul.mubr.bf16.gmra.mrb[0].mxu0 %v326
  %v527 = vpop.f32.mrb[0].mxu0
  %v528 = vadd.f32 %v94, %v527
  %v529 = vpop.f32.mrb[0].mxu0
  %v530 = vpop.f32.mrb[0].mxu0
  %v531 = vadd.f32 %v94, %v530
  %v532 = vpop.f32.mrb[0].mxu0
  %533 = vmatprep.mubr.bf16.mxu0 0
  %534 = vmatmul.mubr.bf16.gmra.mrb[0].mxu0 %v329
  %v535 = vpop.f32.mrb[0].mxu0
  %v536 = vadd.f32 %v94, %v535
  %v537 = vpop.f32.mrb[0].mxu0
  %v538 = vpop.f32.mrb[0].mxu0
  %v539 = vadd.f32 %v94, %v538
  %v540 = vpop.f32.mrb[0].mxu0
  %541 = vmatprep.mubr.bf16.mxu0 0
  %542 = vmatmul.mubr.bf16.gmra.mrb[0].mxu0 %v332
  %v543 = vpop.f32.mrb[0].mxu0
  %v544 = vadd.f32 %v94, %v543
  %v545 = vpop.f32.mrb[0].mxu0
  %v546 = vpop.f32.mrb[0].mxu0
  %v547 = vadd.f32 %v94, %v546
  %v548 = vpop.f32.mrb[0].mxu0
  %549 = vmatprep.mubr.bf16.mxu0 0
  %550 = vmatmul.mubr.bf16.gmra.mrb[0].mxu0 %v335
  %v551 = vpop.f32.mrb[0].mxu0
  %v552 = vadd.f32 %v94, %v551
  %v553 = vpop.f32.mrb[0].mxu0
  %v554 = vpop.f32.mrb[0].mxu0
  %v555 = vadd.f32 %v94, %v554
  %v556 = vpop.f32.mrb[0].mxu0
  %557 = vmatprep.mubr.bf16.mxu0 0
  %558 = vmatmul.mubr.bf16.gmra.mrb[0].mxu0 %v338
  %v559 = vpop.f32.mrb[0].mxu0
  %v560 = vadd.f32 %v94, %v559
  %v561 = vpop.f32.mrb[0].mxu0
  %v562 = vpop.f32.mrb[0].mxu0
  %v563 = vadd.f32 %v94, %v562
  %v564 = vpop.f32.mrb[0].mxu0
  %565 = vmatprep.mubr.bf16.mxu0 0
  %566 = vmatmul.mubr.bf16.gmra.mrb[0].mxu0 %v341
  %v567 = vpop.f32.mrb[0].mxu0
  %v568 = vadd.f32 %v94, %v567
  %v569 = vpop.f32.mrb[0].mxu0
  %v570 = vpop.f32.mrb[0].mxu0
  %v571 = vadd.f32 %v94, %v570
  %v572 = vpop.f32.mrb[0].mxu0
  %573 = vmatprep.mubr.bf16.mxu0 0
  %574 = vmatmul.mubr.bf16.gmra.mrb[0].mxu0 %v344
  %v575 = vpop.f32.mrb[0].mxu0
  %v576 = vadd.f32 %v94, %v575
  %v577 = vpop.f32.mrb[0].mxu0
  %v578 = vpop.f32.mrb[0].mxu0
  %v579 = vadd.f32 %v94, %v578
  %v580 = vpop.f32.mrb[0].mxu0
  %581 = vmatprep.mubr.bf16.mxu0 0
  %582 = vmatmul.mubr.bf16.gmra.mrb[0].mxu0 %v347
  %v583 = vpop.f32.mrb[0].mxu0
  %v584 = vadd.f32 %v94, %v583
  %v585 = vpop.f32.mrb[0].mxu0
  %v586 = vpop.f32.mrb[0].mxu0
  %v587 = vadd.f32 %v94, %v586
  %v588 = vpop.f32.mrb[0].mxu0
  %589 = vmatprep.mubr.bf16.mxu0 0
  %590 = vmatmul.mubr.bf16.gmra.mrb[0].mxu0 %v350
  %v591 = vpop.f32.mrb[0].mxu0
  %v592 = vadd.f32 %v94, %v591
  %v593 = vpop.f32.mrb[0].mxu0
  %v594 = vpop.f32.mrb[0].mxu0
  %v595 = vadd.f32 %v94, %v594
  %v596 = vpop.f32.mrb[0].mxu0
  %597 = vmatprep.mubr.bf16.mxu0 0
  %598 = vmatmul.mubr.bf16.gmra.mrb[0].mxu0 %v353
  %v599 = vpop.f32.mrb[0].mxu0
  %v600 = vadd.f32 %v94, %v599
  %v601 = vpop.f32.mrb[0].mxu0
  %v602 = vpop.f32.mrb[0].mxu0
  %v603 = vadd.f32 %v94, %v602
  %v604 = vpop.f32.mrb[0].mxu0
  %605 = vmatprep.mubr.bf16.mxu0 0
  %606 = vmatmul.mubr.bf16.gmra.mrb[0].mxu0 %v356
  %v607 = vpop.f32.mrb[0].mxu0
  %v608 = vadd.f32 %v94, %v607
  %v609 = vpop.f32.mrb[0].mxu0
  %v610 = vpop.f32.mrb[0].mxu0
  %v611 = vadd.f32 %v94, %v610
  %v612 = vpop.f32.mrb[0].mxu0
  %613 = vmatprep.mubr.bf16.mxu0 0
  %614 = vmatmul.mubr.bf16.gmra.mrb[0].mxu0 %v359
  %v615 = vpop.f32.mrb[0].mxu0
  %v616 = vadd.f32 %v94, %v615
  %v617 = vpop.f32.mrb[0].mxu0
  %v618 = vpop.f32.mrb[0].mxu0
  %v619 = vadd.f32 %v94, %v618
  %v620 = vpop.f32.mrb[0].mxu0
  %621 = vmatprep.mubr.bf16.mxu0 0
  %622 = vmatmul.mubr.bf16.gmra.mrb[0].mxu0 %v362
  %v623 = vpop.f32.mrb[0].mxu0
  %v624 = vadd.f32 %v94, %v623
  %v625 = vpop.f32.mrb[0].mxu0
  %v626 = vpop.f32.mrb[0].mxu0
  %v627 = vadd.f32 %v94, %v626
  %v628 = vpop.f32.mrb[0].mxu0
  %629 = vmatprep.mubr.bf16.mxu0 0
  %630 = vmatmul.mubr.bf16.gmra.mrb[0].mxu0 %v365
  %v631 = vpop.f32.mrb[0].mxu0
  %v632 = vadd.f32 %v94, %v631
  %v633 = vpop.f32.mrb[0].mxu0
  %v634 = vpop.f32.mrb[0].mxu0
  %v635 = vadd.f32 %v94, %v634
  %v636 = vpop.f32.mrb[0].mxu0
  %637 = vmatprep.mubr.bf16.mxu0 0
  %638 = vmatmul.mubr.bf16.gmra.mrb[0].mxu0 %v368
  %v639 = vpop.f32.mrb[0].mxu0
  %v640 = vadd.f32 %v94, %v639
  %v641 = vpop.f32.mrb[0].mxu0
  %v642 = vpop.f32.mrb[0].mxu0
  %v643 = vadd.f32 %v94, %v642
  %v644 = vpop.f32.mrb[0].mxu0
  %645 = vmatprep.mubr.bf16.mxu0 0
  %646 = vmatmul.mubr.bf16.gmra.mrb[0].mxu0 %v371
  %v647 = vpop.f32.mrb[0].mxu0
  %v648 = vadd.f32 %v94, %v647
  %v649 = vpop.f32.mrb[0].mxu0
  %v650 = vpop.f32.mrb[0].mxu0
  %v651 = vadd.f32 %v94, %v650
  %v652 = vpop.f32.mrb[0].mxu0
  %653 = vmatprep.mubr.bf16.mxu0 0
  %654 = vmatmul.mubr.bf16.gmra.mrb[0].mxu0 %v374
  %v655 = vpop.f32.mrb[0].mxu0
  %v656 = vadd.f32 %v94, %v655
  %v657 = vpop.f32.mrb[0].mxu0
  %v658 = vpop.f32.mrb[0].mxu0
  %v659 = vadd.f32 %v94, %v658
  %v660 = vpop.f32.mrb[0].mxu0
  %661 = vmatprep.mubr.bf16.mxu0 0
  %662 = vmatmul.mubr.bf16.gmra.mrb[0].mxu0 %v377
  %v663 = vpop.f32.mrb[0].mxu0
  %v664 = vadd.f32 %v94, %v663
  %v665 = vpop.f32.mrb[0].mxu0
  %v666 = vpop.f32.mrb[0].mxu0
  %v667 = vadd.f32 %v94, %v666
  %v668 = vpop.f32.mrb[0].mxu0
  %669 = vmatprep.mubr.bf16.mxu0 0
  %670 = vmatmul.mubr.bf16.gmra.mrb[0].mxu0 %v380
  %v671 = vpop.f32.mrb[0].mxu0
  %v672 = vadd.f32 %v94, %v671
  %v673 = vpop.f32.mrb[0].mxu0
  %v674 = vpop.f32.mrb[0].mxu0
  %v675 = vadd.f32 %v94, %v674
  %v676 = vpop.f32.mrb[0].mxu0
  %677 = vdwg.mxu0
  %v678 = vmax.f32 %v424, 0.0
  %v679 = vmax.f32 %v427, 0.0
  %v680 = vmax.f32 %v432, 0.0
  %v681 = vmax.f32 %v435, 0.0
  %v682 = vmax.f32 %v440, 0.0
  %v683 = vmax.f32 %v443, 0.0
  %v684 = vmax.f32 %v448, 0.0
  %v685 = vmax.f32 %v451, 0.0
  %v686 = vmax.f32 %v456, 0.0
  %v687 = vmax.f32 %v459, 0.0
  %v688 = vmax.f32 %v464, 0.0
  %v689 = vmax.f32 %v467, 0.0
  %v690 = vmax.f32 %v472, 0.0
  %v691 = vmax.f32 %v475, 0.0
  %v692 = vmax.f32 %v480, 0.0
  %v693 = vmax.f32 %v483, 0.0
  %v694 = vmax.f32 %v488, 0.0
  %v695 = vmax.f32 %v491, 0.0
  %v696 = vmax.f32 %v496, 0.0
  %v697 = vmax.f32 %v499, 0.0
  %v698 = vmax.f32 %v504, 0.0
  %v699 = vmax.f32 %v507, 0.0
  %v700 = vmax.f32 %v512, 0.0
  %v701 = vmax.f32 %v515, 0.0
  %v702 = vmax.f32 %v520, 0.0
  %v703 = vmax.f32 %v523, 0.0
  %v704 = vmax.f32 %v528, 0.0
  %v705 = vmax.f32 %v531, 0.0
  %v706 = vmax.f32 %v536, 0.0
  %v707 = vmax.f32 %v539, 0.0
  %v708 = vmax.f32 %v544, 0.0
  %v709 = vmax.f32 %v547, 0.0
  %v710 = vmax.f32 %v552, 0.0
  %v711 = vmax.f32 %v555, 0.0
  %v712 = vmax.f32 %v560, 0.0
  %v713 = vmax.f32 %v563, 0.0
  %v714 = vmax.f32 %v568, 0.0
  %v715 = vmax.f32 %v571, 0.0
  %v716 = vmax.f32 %v576, 0.0
  %v717 = vmax.f32 %v579, 0.0
  %v718 = vmax.f32 %v584, 0.0
  %v719 = vmax.f32 %v587, 0.0
  %v720 = vmax.f32 %v592, 0.0
  %v721 = vmax.f32 %v595, 0.0
  %v722 = vmax.f32 %v600, 0.0
  %v723 = vmax.f32 %v603, 0.0
  %v724 = vmax.f32 %v608, 0.0
  %v725 = vmax.f32 %v611, 0.0
  %v726 = vmax.f32 %v616, 0.0
  %v727 = vmax.f32 %v619, 0.0
  %v728 = vmax.f32 %v624, 0.0
  %v729 = vmax.f32 %v627, 0.0
  %v730 = vmax.f32 %v632, 0.0
  %v731 = vmax.f32 %v635, 0.0
  %v732 = vmax.f32 %v640, 0.0
  %v733 = vmax.f32 %v643, 0.0
  %v734 = vmax.f32 %v648, 0.0
  %v735 = vmax.f32 %v651, 0.0
  %v736 = vmax.f32 %v656, 0.0
  %v737 = vmax.f32 %v659, 0.0
  %v738 = vmax.f32 %v664, 0.0
  %v739 = vmax.f32 %v667, 0.0
  %v740 = vmax.f32 %v672, 0.0
  %v741 = vmax.f32 %v675, 0.0
  %v742 = vpack.c.bf16 %v679, %v678
  %v743 = vpack.c.bf16 %v681, %v680
  %v744 = vpack.c.bf16 %v683, %v682
  %v745 = vpack.c.bf16 %v685, %v684
  %v746 = vpack.c.bf16 %v687, %v686
  %v747 = vpack.c.bf16 %v689, %v688
  %v748 = vpack.c.bf16 %v691, %v690
  %v749 = vpack.c.bf16 %v693, %v692
  %v750 = vpack.c.bf16 %v695, %v694
  %v751 = vpack.c.bf16 %v697, %v696
  %v752 = vpack.c.bf16 %v699, %v698
  %v753 = vpack.c.bf16 %v701, %v700
  %v754 = vpack.c.bf16 %v703, %v702
  %v755 = vpack.c.bf16 %v705, %v704
  %v756 = vpack.c.bf16 %v707, %v706
  %v757 = vpack.c.bf16 %v709, %v708
  %v758 = vpack.c.bf16 %v711, %v710
  %v759 = vpack.c.bf16 %v713, %v712
  %v760 = vpack.c.bf16 %v715, %v714
  %v761 = vpack.c.bf16 %v717, %v716
  %v762 = vpack.c.bf16 %v719, %v718
  %v763 = vpack.c.bf16 %v721, %v720
  %v764 = vpack.c.bf16 %v723, %v722
  %v765 = vpack.c.bf16 %v725, %v724
  %v766 = vpack.c.bf16 %v727, %v726
  %v767 = vpack.c.bf16 %v729, %v728
  %v768 = vpack.c.bf16 %v731, %v730
  %v769 = vpack.c.bf16 %v733, %v732
  %v770 = vpack.c.bf16 %v735, %v734
  %v771 = vpack.c.bf16 %v737, %v736
  %v772 = vpack.c.bf16 %v739, %v738
  %v773 = vpack.c.bf16 %v741, %v740
  %v806 = vunpack.c.l.b16 %v742
  %v807 = vunpack.c.h.b16 %v742
  %v808 = vunpack.c.l.b16 %v743
  %v809 = vunpack.c.h.b16 %v743
  %v810 = vunpack.c.l.b16 %v744
  %v811 = vunpack.c.h.b16 %v744
  %v812 = vunpack.c.l.b16 %v745
  %v813 = vunpack.c.h.b16 %v745
  %v814 = vunpack.c.l.b16 %v746
  %v815 = vunpack.c.h.b16 %v746
  %v816 = vunpack.c.l.b16 %v747
  %v817 = vunpack.c.h.b16 %v747
  %v818 = vunpack.c.l.b16 %v748
  %v819 = vunpack.c.h.b16 %v748
  %v820 = vunpack.c.l.b16 %v749
  %v821 = vunpack.c.h.b16 %v749
  %v822 = vunpack.c.l.b16 %v750
  %v823 = vunpack.c.h.b16 %v750
  %v824 = vunpack.c.l.b16 %v751
  %v825 = vunpack.c.h.b16 %v751
  %v826 = vunpack.c.l.b16 %v752
  %v827 = vunpack.c.h.b16 %v752
  %v828 = vunpack.c.l.b16 %v753
  %v829 = vunpack.c.h.b16 %v753
  %v830 = vunpack.c.l.b16 %v754
  %v831 = vunpack.c.h.b16 %v754
  %v832 = vunpack.c.l.b16 %v755
  %v833 = vunpack.c.h.b16 %v755
  %v834 = vunpack.c.l.b16 %v756
  %v835 = vunpack.c.h.b16 %v756
  %v836 = vunpack.c.l.b16 %v757
  %v837 = vunpack.c.h.b16 %v757
  %v838 = vunpack.c.l.b16 %v758
  %v839 = vunpack.c.h.b16 %v758
  %v840 = vunpack.c.l.b16 %v759
  %v841 = vunpack.c.h.b16 %v759
  %v842 = vunpack.c.l.b16 %v760
  %v843 = vunpack.c.h.b16 %v760
  %v844 = vunpack.c.l.b16 %v761
  %v845 = vunpack.c.h.b16 %v761
  %v846 = vunpack.c.l.b16 %v762
  %v847 = vunpack.c.h.b16 %v762
  %v848 = vunpack.c.l.b16 %v763
  %v849 = vunpack.c.h.b16 %v763
  %v850 = vunpack.c.l.b16 %v764
  %v851 = vunpack.c.h.b16 %v764
  %v852 = vunpack.c.l.b16 %v765
  %v853 = vunpack.c.h.b16 %v765
  %v854 = vunpack.c.l.b16 %v766
  %v855 = vunpack.c.h.b16 %v766
  %v856 = vunpack.c.l.b16 %v767
  %v857 = vunpack.c.h.b16 %v767
  %v858 = vunpack.c.l.b16 %v768
  %v859 = vunpack.c.h.b16 %v768
  %v860 = vunpack.c.l.b16 %v769
  %v861 = vunpack.c.h.b16 %v769
  %v862 = vunpack.c.l.b16 %v770
  %v863 = vunpack.c.h.b16 %v770
  %v864 = vunpack.c.l.b16 %v771
  %v865 = vunpack.c.h.b16 %v771
  %v866 = vunpack.c.l.b16 %v772
  %v867 = vunpack.c.h.b16 %v772
  %v868 = vunpack.c.l.b16 %v773
  %v869 = vunpack.c.h.b16 %v773
  %v870 = vpack.c.b16 %v806, %v806
  %v871 = vpack.c.b16 %v807, %v807
  %v872 = vpack.c.b16 %v808, %v808
  %v873 = vpack.c.b16 %v809, %v809
  %v874 = vpack.c.b16 %v810, %v810
  %v875 = vpack.c.b16 %v811, %v811
  %v876 = vpack.c.b16 %v812, %v812
  %v877 = vpack.c.b16 %v813, %v813
  %v878 = vpack.c.b16 %v814, %v814
  %v879 = vpack.c.b16 %v815, %v815
  %v880 = vpack.c.b16 %v816, %v816
  %v881 = vpack.c.b16 %v817, %v817
  %v882 = vpack.c.b16 %v818, %v818
  %v883 = vpack.c.b16 %v819, %v819
  %v884 = vpack.c.b16 %v820, %v820
  %v885 = vpack.c.b16 %v821, %v821
  %v886 = vpack.c.b16 %v822, %v822
  %v887 = vpack.c.b16 %v823, %v823
  %v888 = vpack.c.b16 %v824, %v824
  %v889 = vpack.c.b16 %v825, %v825
  %v890 = vpack.c.b16 %v826, %v826
  %v891 = vpack.c.b16 %v827, %v827
  %v892 = vpack.c.b16 %v828, %v828
  %v893 = vpack.c.b16 %v829, %v829
  %v894 = vpack.c.b16 %v830, %v830
  %v895 = vpack.c.b16 %v831, %v831
  %v896 = vpack.c.b16 %v832, %v832
  %v897 = vpack.c.b16 %v833, %v833
  %v898 = vpack.c.b16 %v834, %v834
  %v899 = vpack.c.b16 %v835, %v835
  %v900 = vpack.c.b16 %v836, %v836
  %v901 = vpack.c.b16 %v837, %v837
  %v902 = vpack.c.b16 %v838, %v838
  %v903 = vpack.c.b16 %v839, %v839
  %v904 = vpack.c.b16 %v840, %v840
  %v905 = vpack.c.b16 %v841, %v841
  %v906 = vpack.c.b16 %v842, %v842
  %v907 = vpack.c.b16 %v843, %v843
  %v908 = vpack.c.b16 %v844, %v844
  %v909 = vpack.c.b16 %v845, %v845
  %v910 = vpack.c.b16 %v846, %v846
  %v911 = vpack.c.b16 %v847, %v847
  %v912 = vpack.c.b16 %v848, %v848
  %v913 = vpack.c.b16 %v849, %v849
  %v914 = vpack.c.b16 %v850, %v850
  %v915 = vpack.c.b16 %v851, %v851
  %v916 = vpack.c.b16 %v852, %v852
  %v917 = vpack.c.b16 %v853, %v853
  %v918 = vpack.c.b16 %v854, %v854
  %v919 = vpack.c.b16 %v855, %v855
  %v920 = vpack.c.b16 %v856, %v856
  %v921 = vpack.c.b16 %v857, %v857
  %v922 = vpack.c.b16 %v858, %v858
  %v923 = vpack.c.b16 %v859, %v859
  %v924 = vpack.c.b16 %v860, %v860
  %v925 = vpack.c.b16 %v861, %v861
  %v926 = vpack.c.b16 %v862, %v862
  %v927 = vpack.c.b16 %v863, %v863
  %v928 = vpack.c.b16 %v864, %v864
  %v929 = vpack.c.b16 %v865, %v865
  %v930 = vpack.c.b16 %v866, %v866
  %v931 = vpack.c.b16 %v867, %v867
  %v932 = vpack.c.b16 %v868, %v868
  %v933 = vpack.c.b16 %v869, %v869
  %vm998 = vcmask 125952
  %999 = vst.msk [vmem:[%s3] sm:$0xf] %vm998, %v870
  %1000 = vst.msk [vmem:[%s3 + $0x4] sm:$0xf] %vm998, %v871
  %1001 = vst.msk [vmem:[%s3 + $0x8] sm:$0xf] %vm998, %v872
  %1002 = vst.msk [vmem:[%s3 + $0xc] sm:$0xf] %vm998, %v873
  %1003 = vst.msk [vmem:[%s3 + $0x10] sm:$0xf] %vm998, %v874
  %1004 = vst.msk [vmem:[%s3 + $0x14] sm:$0xf] %vm998, %v875
  %1005 = vst.msk [vmem:[%s3 + $0x18] sm:$0xf] %vm998, %v876
  %1006 = vst.msk [vmem:[%s3 + $0x1c] sm:$0xf] %vm998, %v877
  %1007 = vst.msk [vmem:[%s3 + $0x20] sm:$0xf] %vm998, %v878
  %1008 = vst.msk [vmem:[%s3 + $0x24] sm:$0xf] %vm998, %v879
  %1009 = vst.msk [vmem:[%s3 + $0x28] sm:$0xf] %vm998, %v880
  %1010 = vst.msk [vmem:[%s3 + $0x2c] sm:$0xf] %vm998, %v881
  %1011 = vst.msk [vmem:[%s3 + $0x30] sm:$0xf] %vm998, %v882
  %1012 = vst.msk [vmem:[%s3 + $0x34] sm:$0xf] %vm998, %v883
  %1013 = vst.msk [vmem:[%s3 + $0x38] sm:$0xf] %vm998, %v884
  %1014 = vst.msk [vmem:[%s3 + $0x3c] sm:$0xf] %vm998, %v885
  %1015 = vst.msk [vmem:[%s3 + $0x40] sm:$0xf] %vm998, %v886
  %1016 = vst.msk [vmem:[%s3 + $0x44] sm:$0xf] %vm998, %v887
  %1017 = vst.msk [vmem:[%s3 + $0x48] sm:$0xf] %vm998, %v888
  %1018 = vst.msk [vmem:[%s3 + $0x4c] sm:$0xf] %vm998, %v889
  %1019 = vst.msk [vmem:[%s3 + $0x50] sm:$0xf] %vm998, %v890
  %1020 = vst.msk [vmem:[%s3 + $0x54] sm:$0xf] %vm998, %v891
  %1021 = vst.msk [vmem:[%s3 + $0x58] sm:$0xf] %vm998, %v892
  %1022 = vst.msk [vmem:[%s3 + $0x5c] sm:$0xf] %vm998, %v893
  %1023 = vst.msk [vmem:[%s3 + $0x60] sm:$0xf] %vm998, %v894
  %1024 = vst.msk [vmem:[%s3 + $0x64] sm:$0xf] %vm998, %v895
  %1025 = vst.msk [vmem:[%s3 + $0x68] sm:$0xf] %vm998, %v896
  %1026 = vst.msk [vmem:[%s3 + $0x6c] sm:$0xf] %vm998, %v897
  %1027 = vst.msk [vmem:[%s3 + $0x70] sm:$0xf] %vm998, %v898
  %1028 = vst.msk [vmem:[%s3 + $0x74] sm:$0xf] %vm998, %v899
  %1029 = vst.msk [vmem:[%s3 + $0x78] sm:$0xf] %vm998, %v900
  %1030 = vst.msk [vmem:[%s3 + $0x7c] sm:$0xf] %vm998, %v901
  %1031 = vst.msk [vmem:[%s3 + $0x80] sm:$0xf] %vm998, %v902
  %1032 = vst.msk [vmem:[%s3 + $0x84] sm:$0xf] %vm998, %v903
  %1033 = vst.msk [vmem:[%s3 + $0x88] sm:$0xf] %vm998, %v904
  %1034 = vst.msk [vmem:[%s3 + $0x8c] sm:$0xf] %vm998, %v905
  %1035 = vst.msk [vmem:[%s3 + $0x90] sm:$0xf] %vm998, %v906
  %1036 = vst.msk [vmem:[%s3 + $0x94] sm:$0xf] %vm998, %v907
  %1037 = vst.msk [vmem:[%s3 + $0x98] sm:$0xf] %vm998, %v908
  %1038 = vst.msk [vmem:[%s3 + $0x9c] sm:$0xf] %vm998, %v909
  %1039 = vst.msk [vmem:[%s3 + $0xa0] sm:$0xf] %vm998, %v910
  %1040 = vst.msk [vmem:[%s3 + $0xa4] sm:$0xf] %vm998, %v911
  %1041 = vst.msk [vmem:[%s3 + $0xa8] sm:$0xf] %vm998, %v912
  %1042 = vst.msk [vmem:[%s3 + $0xac] sm:$0xf] %vm998, %v913
  %1043 = vst.msk [vmem:[%s3 + $0xb0] sm:$0xf] %vm998, %v914
  %1044 = vst.msk [vmem:[%s3 + $0xb4] sm:$0xf] %vm998, %v915
  %1045 = vst.msk [vmem:[%s3 + $0xb8] sm:$0xf] %vm998, %v916
  %1046 = vst.msk [vmem:[%s3 + $0xbc] sm:$0xf] %vm998, %v917
  %1047 = vst.msk [vmem:[%s3 + $0xc0] sm:$0xf] %vm998, %v918
  %1048 = vst.msk [vmem:[%s3 + $0xc4] sm:$0xf] %vm998, %v919
  %1049 = vst.msk [vmem:[%s3 + $0xc8] sm:$0xf] %vm998, %v920
  %1050 = vst.msk [vmem:[%s3 + $0xcc] sm:$0xf] %vm998, %v921
  %1051 = vst.msk [vmem:[%s3 + $0xd0] sm:$0xf] %vm998, %v922
  %1052 = vst.msk [vmem:[%s3 + $0xd4] sm:$0xf] %vm998, %v923
  %1053 = vst.msk [vmem:[%s3 + $0xd8] sm:$0xf] %vm998, %v924
  %1054 = vst.msk [vmem:[%s3 + $0xdc] sm:$0xf] %vm998, %v925
  %1055 = vst.msk [vmem:[%s3 + $0xe0] sm:$0xf] %vm998, %v926
  %1056 = vst.msk [vmem:[%s3 + $0xe4] sm:$0xf] %vm998, %v927
  %1057 = vst.msk [vmem:[%s3 + $0xe8] sm:$0xf] %vm998, %v928
  %1058 = vst.msk [vmem:[%s3 + $0xec] sm:$0xf] %vm998, %v929
  %1059 = vst.msk [vmem:[%s3 + $0xf0] sm:$0xf] %vm998, %v930
  %1060 = vst.msk [vmem:[%s3 + $0xf4] sm:$0xf] %vm998, %v931
  %1061 = vst.msk [vmem:[%s3 + $0xf8] sm:$0xf] %vm998, %v932
  %1062 = vst.msk [vmem:[%s3 + $0xfc] sm:$0xf] %vm998, %v933
  // Predicated region
  $region14: #{faceboxes_forward.12} parent=0 // pred_check
    _
  $region15: #{faceboxes_forward.12} parent=0 // pred_check_branch
    %1064 = sbr.rel (0) target = $region17
  $region16: #{faceboxes_forward.12} parent=0 // pred_region
    _
  $region17: #{faceboxes_forward.12} parent=0 // pred_fallthru
    _
  // Predicated region
  $region18: #{faceboxes_forward.12} parent=0 // pred_check
    _
  $region19: #{faceboxes_forward.12} parent=0 // pred_check_branch
    %1066 = sbr.rel (0) target = $region21
  $region20: #{faceboxes_forward.12} parent=0 // pred_region
    _
  $region21: #{faceboxes_forward.12} parent=0 // pred_fallthru
    _

// kernel: faceboxes_forward.13
$region0: #{faceboxes_forward.13}
  #allocation0 [shape = 'u32[]', space=smem, size = 0x4, offset = 0x4, fixed_abs, tag = 'smem constant byte address 0x4 - core index']
  #allocation1 [shape = 'u32[144,128]{1,0:T(1,128)}', space=vmem, size = 0x12000, scoped, tag = 'internal scratch']
  %s0 = inlined_call_operand.vmem [shape: bf16[128,400], index: 0, kind: input, shape index: {}]
  %s1 = inlined_call_operand.vmem [shape: bf16[400,32], index: 1, kind: input, shape index: {}]
  %s2 = inlined_call_operand.vmem [shape: f32[1,32], index: 2, kind: input, shape index: {}]
  %s3 = inlined_call_operand.vmem [shape: bf16[128,32], index: 3, kind: output, shape index: {}]
  %s4 = sld [smem:[#allocation0]]
  $region22: #{faceboxes_forward.13} parent=0
    _
  %s6 = ssub.s32 1, %s4
  %s7 = scalar_select 0, %s6, %s4
  // Predicated region
  $region2: #{faceboxes_forward.13} parent=0 // pred_check
    _
  $region3: #{faceboxes_forward.13} parent=0 // pred_check_branch
    %9 = sbr.rel (0) target = $region5
  $region4: #{faceboxes_forward.13} parent=0 // pred_region
    _
  $region5: #{faceboxes_forward.13} parent=0 // pred_fallthru
    _
  // Predicated region
  $region6: #{faceboxes_forward.13} parent=0 // pred_check
    _
  $region7: #{faceboxes_forward.13} parent=0 // pred_check_branch
    %11 = sbr.rel (0) target = $region9
  $region8: #{faceboxes_forward.13} parent=0 // pred_region
    _
  $region9: #{faceboxes_forward.13} parent=0 // pred_fallthru
    _
  // Predicated region
  $region10: #{faceboxes_forward.13} parent=0 // pred_check
    _
  $region11: #{faceboxes_forward.13} parent=0 // pred_check_branch
    %13 = sbr.rel (0) target = $region13
  $region12: #{faceboxes_forward.13} parent=0 // pred_region
    _
  $region13: #{faceboxes_forward.13} parent=0 // pred_fallthru
    _
  %v15 = vld [vmem:[%s0] sm:$0xff]
  %v16 = vld [vmem:[%s0 + $0x8] sm:$0xff]
  %v17 = vld [vmem:[%s0 + $0x10] sm:$0xff]
  %v18 = vld [vmem:[%s0 + $0x18] sm:$0xff]
  %v19 = vld [vmem:[%s0 + $0x20] sm:$0xff]
  %v20 = vld [vmem:[%s0 + $0x28] sm:$0xff]
  %v21 = vld [vmem:[%s0 + $0x30] sm:$0xff]
  %v22 = vld [vmem:[%s0 + $0x38] sm:$0xff]
  %v23 = vld [vmem:[%s0 + $0x40] sm:$0xff]
  %v24 = vld [vmem:[%s0 + $0x48] sm:$0xff]
  %v25 = vld [vmem:[%s0 + $0x50] sm:$0xff]
  %v26 = vld [vmem:[%s0 + $0x58] sm:$0xff]
  %v27 = vld [vmem:[%s0 + $0x60] sm:$0xff]
  %v28 = vld [vmem:[%s0 + $0x68] sm:$0xff]
  %v29 = vld [vmem:[%s0 + $0x70] sm:$0xff]
  %v30 = vld [vmem:[%s0 + $0x78] sm:$0xff]
  %v31 = vld [vmem:[%s0 + $0x80] sm:$0xff]
  %v32 = vld [vmem:[%s0 + $0x88] sm:$0xff]
  %v33 = vld [vmem:[%s0 + $0x90] sm:$0xff]
  %v34 = vld [vmem:[%s0 + $0x98] sm:$0xff]
  %v35 = vld [vmem:[%s0 + $0xa0] sm:$0xff]
  %v36 = vld [vmem:[%s0 + $0xa8] sm:$0xff]
  %v37 = vld [vmem:[%s0 + $0xb0] sm:$0xff]
  %v38 = vld [vmem:[%s0 + $0xb8] sm:$0xff]
  %v39 = vld [vmem:[%s0 + $0xc0] sm:$0xff]
  %v40 = vld [vmem:[%s0 + $0xc8] sm:$0xff]
  %v41 = vld [vmem:[%s0 + $0xd0] sm:$0xff]
  %v42 = vld [vmem:[%s0 + $0xd8] sm:$0xff]
  %v43 = vld [vmem:[%s0 + $0xe0] sm:$0xff]
  %v44 = vld [vmem:[%s0 + $0xe8] sm:$0xff]
  %v45 = vld [vmem:[%s0 + $0xf0] sm:$0xff]
  %v46 = vld [vmem:[%s0 + $0xf8] sm:$0xff]
  %v47 = vld [vmem:[%s1] sm:$0xf]
  %v48 = vld [vmem:[%s1 + $0x4] sm:$0xf]
  %v49 = vld [vmem:[%s1 + $0x8] sm:$0xf]
  %v50 = vld [vmem:[%s1 + $0xc] sm:$0xf]
  %v51 = vld [vmem:[%s1 + $0x10] sm:$0xf]
  %v52 = vld [vmem:[%s1 + $0x14] sm:$0xf]
  %v53 = vld [vmem:[%s1 + $0x18] sm:$0xf]
  %v54 = vld [vmem:[%s1 + $0x1c] sm:$0xf]
  %v55 = vld [vmem:[%s1 + $0x20] sm:$0xf]
  %v56 = vld [vmem:[%s1 + $0x24] sm:$0xf]
  %v57 = vld [vmem:[%s1 + $0x28] sm:$0xf]
  %v58 = vld [vmem:[%s1 + $0x2c] sm:$0xf]
  %v59 = vld [vmem:[%s1 + $0x30] sm:$0xf]
  %v60 = vld [vmem:[%s1 + $0x34] sm:$0xf]
  %v61 = vld [vmem:[%s1 + $0x38] sm:$0xf]
  %v62 = vld [vmem:[%s1 + $0x3c] sm:$0xf]
  %v63 = vld [vmem:[%s1 + $0x40] sm:$0xf]
  %v64 = vld [vmem:[%s1 + $0x44] sm:$0xf]
  %v65 = vld [vmem:[%s1 + $0x48] sm:$0xf]
  %v66 = vld [vmem:[%s1 + $0x4c] sm:$0xf]
  %v67 = vld [vmem:[%s1 + $0x50] sm:$0xf]
  %v68 = vld [vmem:[%s1 + $0x54] sm:$0xf]
  %v69 = vld [vmem:[%s1 + $0x58] sm:$0xf]
  %v70 = vld [vmem:[%s1 + $0x5c] sm:$0xf]
  %v71 = vld [vmem:[%s1 + $0x60] sm:$0xf]
  %v72 = vld [vmem:[%s1 + $0x64] sm:$0xf]
  %v73 = vld [vmem:[%s1 + $0x68] sm:$0xf]
  %v74 = vld [vmem:[%s1 + $0x6c] sm:$0xf]
  %v75 = vld [vmem:[%s1 + $0x70] sm:$0xf]
  %v76 = vld [vmem:[%s1 + $0x74] sm:$0xf]
  %v77 = vld [vmem:[%s1 + $0x78] sm:$0xf]
  %v78 = vld [vmem:[%s1 + $0x7c] sm:$0xf]
  %v79 = vld [vmem:[%s1 + $0x80] sm:$0xf]
  %v80 = vld [vmem:[%s1 + $0x84] sm:$0xf]
  %v81 = vld [vmem:[%s1 + $0x88] sm:$0xf]
  %v82 = vld [vmem:[%s1 + $0x8c] sm:$0xf]
  %v83 = vld [vmem:[%s1 + $0x90] sm:$0xf]
  %v84 = vld [vmem:[%s1 + $0x94] sm:$0xf]
  %v85 = vld [vmem:[%s1 + $0x98] sm:$0xf]
  %v86 = vld [vmem:[%s1 + $0x9c] sm:$0xf]
  %v87 = vld [vmem:[%s1 + $0xa0] sm:$0xf]
  %v88 = vld [vmem:[%s1 + $0xa4] sm:$0xf]
  %v89 = vld [vmem:[%s1 + $0xa8] sm:$0xf]
  %v90 = vld [vmem:[%s1 + $0xac] sm:$0xf]
  %v91 = vld [vmem:[%s1 + $0xb0] sm:$0xf]
  %v92 = vld [vmem:[%s1 + $0xb4] sm:$0xf]
  %v93 = vld [vmem:[%s1 + $0xb8] sm:$0xf]
  %v94 = vld [vmem:[%s1 + $0xbc] sm:$0xf]
  %v95 = vld [vmem:[%s1 + $0xc0] sm:$0xf]
  %v96 = vld [vmem:[%s1 + $0xc4] sm:$0xf]
  %v97 = vld [vmem:[%s2] sm:$0x1]
  %v99 = vlaneseq
  %v100 = vshrl.u32 %v99, 7
  %v101 = vsub.s32 0, %v100
  %v102 = vrot.slane %v97, %v101
  %v136 = vunpack.c.l.b16 %v15
  %v137 = vunpack.c.h.b16 %v15
  %v138 = vunpack.c.l.b16 %v16
  %v139 = vunpack.c.h.b16 %v16
  %v140 = vunpack.c.l.b16 %v17
  %v141 = vunpack.c.h.b16 %v17
  %v142 = vunpack.c.l.b16 %v18
  %v143 = vunpack.c.h.b16 %v18
  %v144 = vunpack.c.l.b16 %v19
  %v145 = vunpack.c.h.b16 %v19
  %v146 = vunpack.c.l.b16 %v20
  %v147 = vunpack.c.h.b16 %v20
  %v148 = vunpack.c.l.b16 %v21
  %v149 = vunpack.c.h.b16 %v21
  %v150 = vunpack.c.l.b16 %v22
  %v151 = vunpack.c.h.b16 %v22
  %v152 = vunpack.c.l.b16 %v23
  %v153 = vunpack.c.h.b16 %v23
  %v154 = vunpack.c.l.b16 %v24
  %v155 = vunpack.c.h.b16 %v24
  %v156 = vunpack.c.l.b16 %v25
  %v157 = vunpack.c.h.b16 %v25
  %v158 = vunpack.c.l.b16 %v26
  %v159 = vunpack.c.h.b16 %v26
  %v160 = vunpack.c.l.b16 %v27
  %v161 = vunpack.c.h.b16 %v27
  %v162 = vunpack.c.l.b16 %v28
  %v163 = vunpack.c.h.b16 %v28
  %v164 = vunpack.c.l.b16 %v29
  %v165 = vunpack.c.h.b16 %v29
  %v166 = vunpack.c.l.b16 %v30
  %v167 = vunpack.c.h.b16 %v30
  %v168 = vunpack.c.l.b16 %v31
  %v169 = vunpack.c.h.b16 %v31
  %v170 = vunpack.c.l.b16 %v32
  %v171 = vunpack.c.h.b16 %v32
  %v172 = vunpack.c.l.b16 %v33
  %v173 = vunpack.c.h.b16 %v33
  %v174 = vunpack.c.l.b16 %v34
  %v175 = vunpack.c.h.b16 %v34
  %v176 = vunpack.c.l.b16 %v35
  %v177 = vunpack.c.h.b16 %v35
  %v178 = vunpack.c.l.b16 %v36
  %v179 = vunpack.c.h.b16 %v36
  %v180 = vunpack.c.l.b16 %v37
  %v181 = vunpack.c.h.b16 %v37
  %v182 = vunpack.c.l.b16 %v38
  %v183 = vunpack.c.h.b16 %v38
  %v184 = vunpack.c.l.b16 %v39
  %v185 = vunpack.c.h.b16 %v39
  %v186 = vunpack.c.l.b16 %v40
  %v187 = vunpack.c.h.b16 %v40
  %v188 = vunpack.c.l.b16 %v41
  %v189 = vunpack.c.h.b16 %v41
  %v190 = vunpack.c.l.b16 %v42
  %v191 = vunpack.c.h.b16 %v42
  %v192 = vunpack.c.l.b16 %v43
  %v193 = vunpack.c.h.b16 %v43
  %v194 = vunpack.c.l.b16 %v44
  %v195 = vunpack.c.h.b16 %v44
  %v196 = vunpack.c.l.b16 %v45
  %v197 = vunpack.c.h.b16 %v45
  %v198 = vunpack.c.l.b16 %v46
  %v199 = vunpack.c.h.b16 %v46
  %v200 = vpack.c.b16 %v140, %v136
  %v201 = vpack.c.b16 %v141, %v137
  %v202 = vpack.c.b16 %v142, %v138
  %v203 = vpack.c.b16 %v143, %v139
  %v204 = vpack.c.b16 %v148, %v144
  %v205 = vpack.c.b16 %v149, %v145
  %v206 = vpack.c.b16 %v150, %v146
  %v207 = vpack.c.b16 %v151, %v147
  %v208 = vpack.c.b16 %v156, %v152
  %v209 = vpack.c.b16 %v157, %v153
  %v210 = vpack.c.b16 %v158, %v154
  %v211 = vpack.c.b16 %v159, %v155
  %v212 = vpack.c.b16 %v164, %v160
  %v213 = vpack.c.b16 %v165, %v161
  %v214 = vpack.c.b16 %v166, %v162
  %v215 = vpack.c.b16 %v167, %v163
  %v216 = vpack.c.b16 %v172, %v168
  %v217 = vpack.c.b16 %v173, %v169
  %v218 = vpack.c.b16 %v174, %v170
  %v219 = vpack.c.b16 %v175, %v171
  %v220 = vpack.c.b16 %v180, %v176
  %v221 = vpack.c.b16 %v181, %v177
  %v222 = vpack.c.b16 %v182, %v178
  %v223 = vpack.c.b16 %v183, %v179
  %v224 = vpack.c.b16 %v188, %v184
  %v225 = vpack.c.b16 %v189, %v185
  %v226 = vpack.c.b16 %v190, %v186
  %v227 = vpack.c.b16 %v191, %v187
  %v228 = vpack.c.b16 %v196, %v192
  %v229 = vpack.c.b16 %v197, %v193
  %v230 = vpack.c.b16 %v198, %v194
  %v231 = vpack.c.b16 %v199, %v195
  %v306 = vunpack.c.l.b16 %v47
  %v307 = vunpack.c.l.b16 %v48
  %v308 = vunpack.c.l.b16 %v49
  %v309 = vunpack.c.l.b16 %v50
  %v310 = vunpack.c.l.b16 %v51
  %v311 = vunpack.c.l.b16 %v52
  %v312 = vunpack.c.l.b16 %v53
  %v313 = vunpack.c.l.b16 %v54
  %v314 = vunpack.c.l.b16 %v55
  %v315 = vunpack.c.l.b16 %v56
  %v316 = vunpack.c.l.b16 %v57
  %v317 = vunpack.c.l.b16 %v58
  %v318 = vunpack.c.l.b16 %v59
  %v319 = vunpack.c.l.b16 %v60
  %v320 = vunpack.c.l.b16 %v61
  %v321 = vunpack.c.l.b16 %v62
  %v322 = vunpack.c.l.b16 %v63
  %v323 = vunpack.c.l.b16 %v64
  %v324 = vunpack.c.l.b16 %v65
  %v325 = vunpack.c.l.b16 %v66
  %v326 = vunpack.c.l.b16 %v67
  %v327 = vunpack.c.l.b16 %v68
  %v328 = vunpack.c.l.b16 %v69
  %v329 = vunpack.c.l.b16 %v70
  %v330 = vunpack.c.l.b16 %v71
  %v331 = vunpack.c.l.b16 %v72
  %v332 = vunpack.c.l.b16 %v73
  %v333 = vunpack.c.l.b16 %v74
  %v334 = vunpack.c.l.b16 %v75
  %v335 = vunpack.c.l.b16 %v76
  %v336 = vunpack.c.l.b16 %v77
  %v337 = vunpack.c.l.b16 %v78
  %v338 = vunpack.c.l.b16 %v79
  %v339 = vunpack.c.l.b16 %v80
  %v340 = vunpack.c.l.b16 %v81
  %v341 = vunpack.c.l.b16 %v82
  %v342 = vunpack.c.l.b16 %v83
  %v343 = vunpack.c.l.b16 %v84
  %v344 = vunpack.c.l.b16 %v85
  %v345 = vunpack.c.l.b16 %v86
  %v346 = vunpack.c.l.b16 %v87
  %v347 = vunpack.c.l.b16 %v88
  %v348 = vunpack.c.l.b16 %v89
  %v349 = vunpack.c.l.b16 %v90
  %v350 = vunpack.c.l.b16 %v91
  %v351 = vunpack.c.l.b16 %v92
  %v352 = vunpack.c.l.b16 %v93
  %v353 = vunpack.c.l.b16 %v94
  %v354 = vunpack.c.l.b16 %v95
  %v355 = vunpack.c.l.b16 %v96
  %v356 = vpack.c.b16 %v307, %v306
  %v357 = vpack.c.b16 %v309, %v308
  %v358 = vpack.c.b16 %v311, %v310
  %v359 = vpack.c.b16 %v313, %v312
  %v360 = vpack.c.b16 %v315, %v314
  %v361 = vpack.c.b16 %v317, %v316
  %v362 = vpack.c.b16 %v319, %v318
  %v363 = vpack.c.b16 %v321, %v320
  %v364 = vpack.c.b16 %v323, %v322
  %v365 = vpack.c.b16 %v325, %v324
  %v366 = vpack.c.b16 %v327, %v326
  %v367 = vpack.c.b16 %v329, %v328
  %v368 = vpack.c.b16 %v331, %v330
  %v369 = vpack.c.b16 %v333, %v332
  %v370 = vpack.c.b16 %v335, %v334
  %v371 = vpack.c.b16 %v337, %v336
  %v372 = vpack.c.b16 %v339, %v338
  %v373 = vpack.c.b16 %v341, %v340
  %v374 = vpack.c.b16 %v343, %v342
  %v375 = vpack.c.b16 %v345, %v344
  %v376 = vpack.c.b16 %v347, %v346
  %v377 = vpack.c.b16 %v349, %v348
  %v378 = vpack.c.b16 %v351, %v350
  %v379 = vpack.c.b16 %v353, %v352
  %v380 = vpack.c.b16 %v355, %v354
  %vm406 = vcmask 130048
  %v408 = vsel %vm406, %v203, 0
  %v411 = vsel %vm406, %v207, 0
  %v414 = vsel %vm406, %v211, 0
  %v417 = vsel %vm406, %v215, 0
  %v420 = vsel %vm406, %v219, 0
  %v423 = vsel %vm406, %v223, 0
  %v426 = vsel %vm406, %v227, 0
  %v429 = vsel %vm406, %v231, 0
  %431 = vmatprep.subr.bf16.mxu0 0
  %432 = vmatpush1.bf16.msra.mxu0 %v356
  %433 = vmatprep.subr.bf16.mxu0 0
  %434 = vmatpush1.bf16.msra.mxu0 %v357
  %435 = vmatprep.subr.bf16.mxu0 0
  %436 = vmatpush1.bf16.msra.mxu0 %v358
  %437 = vmatprep.subr.bf16.mxu0 0
  %438 = vmatpush1.bf16.msra.mxu0 %v359
  %439 = vmatprep.subr.bf16.mxu0 0
  %440 = vmatpush1.bf16.msra.mxu0 %v360
  %441 = vmatprep.subr.bf16.mxu0 0
  %442 = vmatpush1.bf16.msra.mxu0 %v361
  %443 = vmatprep.subr.bf16.mxu0 0
  %444 = vmatpush1.bf16.msra.mxu0 %v362
  %445 = vmatprep.subr.bf16.mxu0 0
  %446 = vmatpush1.bf16.msra.mxu0 %v363
  %447 = vmatprep.subr.bf16.mxu0 0
  %448 = vmatpush1.bf16.msra.mxu0 %v364
  %449 = vmatprep.subr.bf16.mxu0 0
  %450 = vmatpush1.bf16.msra.mxu0 %v365
  %451 = vmatprep.subr.bf16.mxu0 0
  %452 = vmatpush1.bf16.msra.mxu0 %v366
  %453 = vmatprep.subr.bf16.mxu0 0
  %454 = vmatpush1.bf16.msra.mxu0 %v367
  %455 = vmatprep.subr.bf16.mxu0 0
  %456 = vmatpush1.bf16.msra.mxu0 %v368
  %457 = vmatprep.subr.bf16.mxu0 0
  %458 = vmatpush1.bf16.msra.mxu0 %v369
  %459 = vmatprep.subr.bf16.mxu0 0
  %460 = vmatpush1.bf16.msra.mxu0 %v370
  %461 = vmatprep.subr.bf16.mxu0 0
  %462 = vmatpush1.bf16.msra.mxu0 %v371
  %463 = vmatprep.mubr.bf16.mxu0 %v201
  %464 = vmatmul.mubr.bf16.gmra.mrb[0].mxu0 %v200
  %v465 = vpop.f32.mrb[0].mxu0
  %v466 = vadd.f32 %v102, %v465
  %v467 = vpop.f32.mrb[0].mxu0
  %v468 = vpop.f32.mrb[0].mxu0
  %v469 = vadd.f32 %v102, %v468
  %v470 = vpop.f32.mrb[0].mxu0
  %471 = vmatprep.mubr.bf16.mxu0 %v205
  %472 = vmatmul.mubr.bf16.gmra.mrb[0].mxu0 %v204
  %v473 = vpop.f32.mrb[0].mxu0
  %v474 = vadd.f32 %v102, %v473
  %v475 = vpop.f32.mrb[0].mxu0
  %v476 = vpop.f32.mrb[0].mxu0
  %v477 = vadd.f32 %v102, %v476
  %v478 = vpop.f32.mrb[0].mxu0
  %479 = vmatprep.mubr.bf16.mxu0 %v209
  %480 = vmatmul.mubr.bf16.gmra.mrb[0].mxu0 %v208
  %v481 = vpop.f32.mrb[0].mxu0
  %v482 = vadd.f32 %v102, %v481
  %v483 = vpop.f32.mrb[0].mxu0
  %v484 = vpop.f32.mrb[0].mxu0
  %v485 = vadd.f32 %v102, %v484
  %v486 = vpop.f32.mrb[0].mxu0
  %487 = vmatprep.mubr.bf16.mxu0 %v213
  %488 = vmatmul.mubr.bf16.gmra.mrb[0].mxu0 %v212
  %v489 = vpop.f32.mrb[0].mxu0
  %v490 = vadd.f32 %v102, %v489
  %v491 = vpop.f32.mrb[0].mxu0
  %v492 = vpop.f32.mrb[0].mxu0
  %v493 = vadd.f32 %v102, %v492
  %v494 = vpop.f32.mrb[0].mxu0
  %495 = vmatprep.mubr.bf16.mxu0 %v217
  %496 = vmatmul.mubr.bf16.gmra.mrb[0].mxu0 %v216
  %v497 = vpop.f32.mrb[0].mxu0
  %v498 = vadd.f32 %v102, %v497
  %v499 = vpop.f32.mrb[0].mxu0
  %v500 = vpop.f32.mrb[0].mxu0
  %v501 = vadd.f32 %v102, %v500
  %v502 = vpop.f32.mrb[0].mxu0
  %503 = vmatprep.mubr.bf16.mxu0 %v221
  %504 = vmatmul.mubr.bf16.gmra.mrb[0].mxu0 %v220
  %v505 = vpop.f32.mrb[0].mxu0
  %v506 = vadd.f32 %v102, %v505
  %v507 = vpop.f32.mrb[0].mxu0
  %v508 = vpop.f32.mrb[0].mxu0
  %v509 = vadd.f32 %v102, %v508
  %v510 = vpop.f32.mrb[0].mxu0
  %511 = vmatprep.mubr.bf16.mxu0 %v225
  %512 = vmatmul.mubr.bf16.gmra.mrb[0].mxu0 %v224
  %v513 = vpop.f32.mrb[0].mxu0
  %v514 = vadd.f32 %v102, %v513
  %v515 = vpop.f32.mrb[0].mxu0
  %v516 = vpop.f32.mrb[0].mxu0
  %v517 = vadd.f32 %v102, %v516
  %v518 = vpop.f32.mrb[0].mxu0
  %519 = vmatprep.mubr.bf16.mxu0 %v229
  %520 = vmatmul.mubr.bf16.gmra.mrb[0].mxu0 %v228
  %v521 = vpop.f32.mrb[0].mxu0
  %v522 = vadd.f32 %v102, %v521
  %v523 = vpop.f32.mrb[0].mxu0
  %v524 = vpop.f32.mrb[0].mxu0
  %v525 = vadd.f32 %v102, %v524
  %v526 = vpop.f32.mrb[0].mxu0
  %527 = vdwg.mxu0
  %528 = vmatprep.subr.bf16.mxu0 0
  %529 = vmatpush1.bf16.msra.mxu0 %v372
  %530 = vmatprep.subr.bf16.mxu0 0
  %531 = vmatpush1.bf16.msra.mxu0 %v373
  %532 = vmatprep.subr.bf16.mxu0 0
  %533 = vmatpush1.bf16.msra.mxu0 %v374
  %534 = vmatprep.subr.bf16.mxu0 0
  %535 = vmatpush1.bf16.msra.mxu0 %v375
  %536 = vmatprep.subr.bf16.mxu0 0
  %537 = vmatpush1.bf16.msra.mxu0 %v376
  %538 = vmatprep.subr.bf16.mxu0 0
  %539 = vmatpush1.bf16.msra.mxu0 %v377
  %540 = vmatprep.subr.bf16.mxu0 0
  %541 = vmatpush1.bf16.msra.mxu0 %v378
  %542 = vmatprep.subr.bf16.mxu0 0
  %543 = vmatpush1.bf16.msra.mxu0 %v379
  %544 = vmatprep.subr.bf16.mxu0 0
  %545 = vmatpush1.bf16.msra.mxu0 %v380
  %546 = vmatprep.subr.bf16.mxu0 0
  %547 = vmatpush1.bf16.msra.mxu0 0
  %548 = vmatprep.subr.bf16.mxu0 0
  %549 = vmatpush1.bf16.msra.mxu0 0
  %550 = vmatprep.subr.bf16.mxu0 0
  %551 = vmatpush1.bf16.msra.mxu0 0
  %552 = vmatprep.subr.bf16.mxu0 0
  %553 = vmatpush1.bf16.msra.mxu0 0
  %554 = vmatprep.subr.bf16.mxu0 0
  %555 = vmatpush1.bf16.msra.mxu0 0
  %556 = vmatprep.subr.bf16.mxu0 0
  %557 = vmatpush1.bf16.msra.mxu0 0
  %558 = vmatprep.subr.bf16.mxu0 0
  %559 = vmatpush1.bf16.msra.mxu0 0
  %560 = vmatprep.mubr.bf16.mxu0 %v408
  %561 = vmatmul.mubr.bf16.gmra.mrb[0].mxu0 %v202
  %v562 = vpop.f32.mrb[0].mxu0
  %v563 = vadd.f32 %v466, %v562
  %v564 = vpop.f32.mrb[0].mxu0
  %v565 = vpop.f32.mrb[0].mxu0
  %v566 = vadd.f32 %v469, %v565
  %v567 = vpop.f32.mrb[0].mxu0
  %568 = vmatprep.mubr.bf16.mxu0 %v411
  %569 = vmatmul.mubr.bf16.gmra.mrb[0].mxu0 %v206
  %v570 = vpop.f32.mrb[0].mxu0
  %v571 = vadd.f32 %v474, %v570
  %v572 = vpop.f32.mrb[0].mxu0
  %v573 = vpop.f32.mrb[0].mxu0
  %v574 = vadd.f32 %v477, %v573
  %v575 = vpop.f32.mrb[0].mxu0
  %576 = vmatprep.mubr.bf16.mxu0 %v414
  %577 = vmatmul.mubr.bf16.gmra.mrb[0].mxu0 %v210
  %v578 = vpop.f32.mrb[0].mxu0
  %v579 = vadd.f32 %v482, %v578
  %v580 = vpop.f32.mrb[0].mxu0
  %v581 = vpop.f32.mrb[0].mxu0
  %v582 = vadd.f32 %v485, %v581
  %v583 = vpop.f32.mrb[0].mxu0
  %584 = vmatprep.mubr.bf16.mxu0 %v417
  %585 = vmatmul.mubr.bf16.gmra.mrb[0].mxu0 %v214
  %v586 = vpop.f32.mrb[0].mxu0
  %v587 = vadd.f32 %v490, %v586
  %v588 = vpop.f32.mrb[0].mxu0
  %v589 = vpop.f32.mrb[0].mxu0
  %v590 = vadd.f32 %v493, %v589
  %v591 = vpop.f32.mrb[0].mxu0
  %592 = vmatprep.mubr.bf16.mxu0 %v420
  %593 = vmatmul.mubr.bf16.gmra.mrb[0].mxu0 %v218
  %v594 = vpop.f32.mrb[0].mxu0
  %v595 = vadd.f32 %v498, %v594
  %v596 = vpop.f32.mrb[0].mxu0
  %v597 = vpop.f32.mrb[0].mxu0
  %v598 = vadd.f32 %v501, %v597
  %v599 = vpop.f32.mrb[0].mxu0
  %600 = vmatprep.mubr.bf16.mxu0 %v423
  %601 = vmatmul.mubr.bf16.gmra.mrb[0].mxu0 %v222
  %v602 = vpop.f32.mrb[0].mxu0
  %v603 = vadd.f32 %v506, %v602
  %v604 = vpop.f32.mrb[0].mxu0
  %v605 = vpop.f32.mrb[0].mxu0
  %v606 = vadd.f32 %v509, %v605
  %v607 = vpop.f32.mrb[0].mxu0
  %608 = vmatprep.mubr.bf16.mxu0 %v426
  %609 = vmatmul.mubr.bf16.gmra.mrb[0].mxu0 %v226
  %v610 = vpop.f32.mrb[0].mxu0
  %v611 = vadd.f32 %v514, %v610
  %v612 = vpop.f32.mrb[0].mxu0
  %v613 = vpop.f32.mrb[0].mxu0
  %v614 = vadd.f32 %v517, %v613
  %v615 = vpop.f32.mrb[0].mxu0
  %616 = vmatprep.mubr.bf16.mxu0 %v429
  %617 = vmatmul.mubr.bf16.gmra.mrb[0].mxu0 %v230
  %v618 = vpop.f32.mrb[0].mxu0
  %v619 = vadd.f32 %v522, %v618
  %v620 = vpop.f32.mrb[0].mxu0
  %v621 = vpop.f32.mrb[0].mxu0
  %v622 = vadd.f32 %v525, %v621
  %v623 = vpop.f32.mrb[0].mxu0
  %624 = vdwg.mxu0
  %v625 = vmax.f32 %v563, 0.0
  %v626 = vmax.f32 %v566, 0.0
  %v627 = vmax.f32 %v571, 0.0
  %v628 = vmax.f32 %v574, 0.0
  %v629 = vmax.f32 %v579, 0.0
  %v630 = vmax.f32 %v582, 0.0
  %v631 = vmax.f32 %v587, 0.0
  %v632 = vmax.f32 %v590, 0.0
  %v633 = vmax.f32 %v595, 0.0
  %v634 = vmax.f32 %v598, 0.0
  %v635 = vmax.f32 %v603, 0.0
  %v636 = vmax.f32 %v606, 0.0
  %v637 = vmax.f32 %v611, 0.0
  %v638 = vmax.f32 %v614, 0.0
  %v639 = vmax.f32 %v619, 0.0
  %v640 = vmax.f32 %v622, 0.0
  %v641 = vpack.c.bf16 %v626, %v625
  %v642 = vpack.c.bf16 %v628, %v627
  %v643 = vpack.c.bf16 %v630, %v629
  %v644 = vpack.c.bf16 %v632, %v631
  %v645 = vpack.c.bf16 %v634, %v633
  %v646 = vpack.c.bf16 %v636, %v635
  %v647 = vpack.c.bf16 %v638, %v637
  %v648 = vpack.c.bf16 %v640, %v639
  %v657 = vunpack.c.l.b16 %v641
  %v658 = vunpack.c.h.b16 %v641
  %v659 = vunpack.c.l.b16 %v642
  %v660 = vunpack.c.h.b16 %v642
  %v661 = vunpack.c.l.b16 %v643
  %v662 = vunpack.c.h.b16 %v643
  %v663 = vunpack.c.l.b16 %v644
  %v664 = vunpack.c.h.b16 %v644
  %v665 = vunpack.c.l.b16 %v645
  %v666 = vunpack.c.h.b16 %v645
  %v667 = vunpack.c.l.b16 %v646
  %v668 = vunpack.c.h.b16 %v646
  %v669 = vunpack.c.l.b16 %v647
  %v670 = vunpack.c.h.b16 %v647
  %v671 = vunpack.c.l.b16 %v648
  %v672 = vunpack.c.h.b16 %v648
  %v673 = vpack.c.b16 %v657, %v657
  %v674 = vpack.c.b16 %v658, %v658
  %v675 = vpack.c.b16 %v659, %v659
  %v676 = vpack.c.b16 %v660, %v660
  %v677 = vpack.c.b16 %v661, %v661
  %v678 = vpack.c.b16 %v662, %v662
  %v679 = vpack.c.b16 %v663, %v663
  %v680 = vpack.c.b16 %v664, %v664
  %v681 = vpack.c.b16 %v665, %v665
  %v682 = vpack.c.b16 %v666, %v666
  %v683 = vpack.c.b16 %v667, %v667
  %v684 = vpack.c.b16 %v668, %v668
  %v685 = vpack.c.b16 %v669, %v669
  %v686 = vpack.c.b16 %v670, %v670
  %v687 = vpack.c.b16 %v671, %v671
  %v688 = vpack.c.b16 %v672, %v672
  %vm705 = vcmask 257024
  %706 = vst.msk [vmem:[%s3] sm:$0xf] %vm705, %v673
  %707 = vst.msk [vmem:[%s3 + $0x4] sm:$0xf] %vm705, %v674
  %708 = vst.msk [vmem:[%s3 + $0x8] sm:$0xf] %vm705, %v675
  %709 = vst.msk [vmem:[%s3 + $0xc] sm:$0xf] %vm705, %v676
  %710 = vst.msk [vmem:[%s3 + $0x10] sm:$0xf] %vm705, %v677
  %711 = vst.msk [vmem:[%s3 + $0x14] sm:$0xf] %vm705, %v678
  %712 = vst.msk [vmem:[%s3 + $0x18] sm:$0xf] %vm705, %v679
  %713 = vst.msk [vmem:[%s3 + $0x1c] sm:$0xf] %vm705, %v680
  %714 = vst.msk [vmem:[%s3 + $0x20] sm:$0xf] %vm705, %v681
  %715 = vst.msk [vmem:[%s3 + $0x24] sm:$0xf] %vm705, %v682
  %716 = vst.msk [vmem:[%s3 + $0x28] sm:$0xf] %vm705, %v683
  %717 = vst.msk [vmem:[%s3 + $0x2c] sm:$0xf] %vm705, %v684
  %718 = vst.msk [vmem:[%s3 + $0x30] sm:$0xf] %vm705, %v685
  %719 = vst.msk [vmem:[%s3 + $0x34] sm:$0xf] %vm705, %v686
  %720 = vst.msk [vmem:[%s3 + $0x38] sm:$0xf] %vm705, %v687
  %721 = vst.msk [vmem:[%s3 + $0x3c] sm:$0xf] %vm705, %v688
  // Predicated region
  $region14: #{faceboxes_forward.13} parent=0 // pred_check
    _
  $region15: #{faceboxes_forward.13} parent=0 // pred_check_branch
    %723 = sbr.rel (0) target = $region17
  $region16: #{faceboxes_forward.13} parent=0 // pred_region
    _
  $region17: #{faceboxes_forward.13} parent=0 // pred_fallthru
    _
  // Predicated region
  $region18: #{faceboxes_forward.13} parent=0 // pred_check
    _
  $region19: #{faceboxes_forward.13} parent=0 // pred_check_branch
    %725 = sbr.rel (0) target = $region21
  $region20: #{faceboxes_forward.13} parent=0 // pred_region
    _
  $region21: #{faceboxes_forward.13} parent=0 // pred_fallthru
    _

// kernel: faceboxes_forward.14
$region0: #{faceboxes_forward.14}
  #allocation0 [shape = 'u32[]', space=smem, size = 0x4, offset = 0x4, fixed_abs, tag = 'smem constant byte address 0x4 - core index']
  #allocation1 [shape = 'u32[144,128]{1,0:T(1,128)}', space=vmem, size = 0x12000, scoped, tag = 'internal scratch']
  %s0 = inlined_call_operand.vmem [shape: bf16[32,288], index: 0, kind: input, shape index: {}]
  %s1 = inlined_call_operand.vmem [shape: bf16[288,96], index: 1, kind: input, shape index: {}]
  %s2 = inlined_call_operand.vmem [shape: f32[1,96], index: 2, kind: input, shape index: {}]
  %s3 = inlined_call_operand.vmem [shape: bf16[32,96], index: 3, kind: output, shape index: {}]
  %s4 = sld [smem:[#allocation0]]
  $region22: #{faceboxes_forward.14} parent=0
    _
  %s6 = ssub.s32 1, %s4
  %s7 = scalar_select 0, %s6, %s4
  // Predicated region
  $region2: #{faceboxes_forward.14} parent=0 // pred_check
    _
  $region3: #{faceboxes_forward.14} parent=0 // pred_check_branch
    %9 = sbr.rel (0) target = $region5
  $region4: #{faceboxes_forward.14} parent=0 // pred_region
    _
  $region5: #{faceboxes_forward.14} parent=0 // pred_fallthru
    _
  // Predicated region
  $region6: #{faceboxes_forward.14} parent=0 // pred_check
    _
  $region7: #{faceboxes_forward.14} parent=0 // pred_check_branch
    %11 = sbr.rel (0) target = $region9
  $region8: #{faceboxes_forward.14} parent=0 // pred_region
    _
  $region9: #{faceboxes_forward.14} parent=0 // pred_fallthru
    _
  // Predicated region
  $region10: #{faceboxes_forward.14} parent=0 // pred_check
    _
  $region11: #{faceboxes_forward.14} parent=0 // pred_check_branch
    %13 = sbr.rel (0) target = $region13
  $region12: #{faceboxes_forward.14} parent=0 // pred_region
    _
  $region13: #{faceboxes_forward.14} parent=0 // pred_fallthru
    _
  %v15 = vld [vmem:[%s0] sm:$0xff]
  %v16 = vld [vmem:[%s0 + $0x8] sm:$0xf]
  %v17 = vld [vmem:[%s0 + $0xc] sm:$0xff]
  %v18 = vld [vmem:[%s0 + $0x14] sm:$0xf]
  %v19 = vld [vmem:[%s0 + $0x18] sm:$0xff]
  %v20 = vld [vmem:[%s0 + $0x20] sm:$0xf]
  %v21 = vld [vmem:[%s0 + $0x24] sm:$0xff]
  %v22 = vld [vmem:[%s0 + $0x2c] sm:$0xf]
  %v23 = vld [vmem:[%s1] sm:$0xf]
  %v24 = vld [vmem:[%s1 + $0x4] sm:$0xf]
  %v25 = vld [vmem:[%s1 + $0x8] sm:$0xf]
  %v26 = vld [vmem:[%s1 + $0xc] sm:$0xf]
  %v27 = vld [vmem:[%s1 + $0x10] sm:$0xf]
  %v28 = vld [vmem:[%s1 + $0x14] sm:$0xf]
  %v29 = vld [vmem:[%s1 + $0x18] sm:$0xf]
  %v30 = vld [vmem:[%s1 + $0x1c] sm:$0xf]
  %v31 = vld [vmem:[%s1 + $0x20] sm:$0xf]
  %v32 = vld [vmem:[%s1 + $0x24] sm:$0xf]
  %v33 = vld [vmem:[%s1 + $0x28] sm:$0xf]
  %v34 = vld [vmem:[%s1 + $0x2c] sm:$0xf]
  %v35 = vld [vmem:[%s1 + $0x30] sm:$0xf]
  %v36 = vld [vmem:[%s1 + $0x34] sm:$0xf]
  %v37 = vld [vmem:[%s1 + $0x38] sm:$0xf]
  %v38 = vld [vmem:[%s1 + $0x3c] sm:$0xf]
  %v39 = vld [vmem:[%s1 + $0x40] sm:$0xf]
  %v40 = vld [vmem:[%s1 + $0x44] sm:$0xf]
  %v41 = vld [vmem:[%s1 + $0x48] sm:$0xf]
  %v42 = vld [vmem:[%s1 + $0x4c] sm:$0xf]
  %v43 = vld [vmem:[%s1 + $0x50] sm:$0xf]
  %v44 = vld [vmem:[%s1 + $0x54] sm:$0xf]
  %v45 = vld [vmem:[%s1 + $0x58] sm:$0xf]
  %v46 = vld [vmem:[%s1 + $0x5c] sm:$0xf]
  %v47 = vld [vmem:[%s1 + $0x60] sm:$0xf]
  %v48 = vld [vmem:[%s1 + $0x64] sm:$0xf]
  %v49 = vld [vmem:[%s1 + $0x68] sm:$0xf]
  %v50 = vld [vmem:[%s1 + $0x6c] sm:$0xf]
  %v51 = vld [vmem:[%s1 + $0x70] sm:$0xf]
  %v52 = vld [vmem:[%s1 + $0x74] sm:$0xf]
  %v53 = vld [vmem:[%s1 + $0x78] sm:$0xf]
  %v54 = vld [vmem:[%s1 + $0x7c] sm:$0xf]
  %v55 = vld [vmem:[%s1 + $0x80] sm:$0xf]
  %v56 = vld [vmem:[%s1 + $0x84] sm:$0xf]
  %v57 = vld [vmem:[%s1 + $0x88] sm:$0xf]
  %v58 = vld [vmem:[%s1 + $0x8c] sm:$0xf]
  %v59 = vld [vmem:[%s2] sm:$0x1]
  %v61 = vlaneseq
  %v62 = vshrl.u32 %v61, 7
  %v63 = vsub.s32 0, %v62
  %v64 = vrot.slane %v59, %v63
  %v74 = vunpack.c.l.b16 %v15
  %v75 = vunpack.c.h.b16 %v15
  %v76 = vunpack.c.l.b16 %v16
  %v77 = vunpack.c.l.b16 %v17
  %v78 = vunpack.c.h.b16 %v17
  %v79 = vunpack.c.l.b16 %v18
  %v80 = vunpack.c.l.b16 %v19
  %v81 = vunpack.c.h.b16 %v19
  %v82 = vunpack.c.l.b16 %v20
  %v83 = vunpack.c.l.b16 %v21
  %v84 = vunpack.c.h.b16 %v21
  %v85 = vunpack.c.l.b16 %v22
  %v86 = vpack.c.b16 %v77, %v74
  %v87 = vpack.c.b16 %v78, %v75
  %v88 = vpack.c.b16 %v79, %v76
  %v89 = vpack.c.b16 %v83, %v80
  %v90 = vpack.c.b16 %v84, %v81
  %v91 = vpack.c.b16 %v85, %v82
  %v132 = vunpack.c.l.b16 %v23
  %v133 = vunpack.c.l.b16 %v24
  %v134 = vunpack.c.l.b16 %v25
  %v135 = vunpack.c.l.b16 %v26
  %v136 = vunpack.c.l.b16 %v27
  %v137 = vunpack.c.l.b16 %v28
  %v138 = vunpack.c.l.b16 %v29
  %v139 = vunpack.c.l.b16 %v30
  %v140 = vunpack.c.l.b16 %v31
  %v141 = vunpack.c.l.b16 %v32
  %v142 = vunpack.c.l.b16 %v33
  %v143 = vunpack.c.l.b16 %v34
  %v144 = vunpack.c.l.b16 %v35
  %v145 = vunpack.c.l.b16 %v36
  %v146 = vunpack.c.l.b16 %v37
  %v147 = vunpack.c.l.b16 %v38
  %v148 = vunpack.c.l.b16 %v39
  %v149 = vunpack.c.l.b16 %v40
  %v150 = vunpack.c.l.b16 %v41
  %v151 = vunpack.c.l.b16 %v42
  %v152 = vunpack.c.l.b16 %v43
  %v153 = vunpack.c.l.b16 %v44
  %v154 = vunpack.c.l.b16 %v45
  %v155 = vunpack.c.l.b16 %v46
  %v156 = vunpack.c.l.b16 %v47
  %v157 = vunpack.c.l.b16 %v48
  %v158 = vunpack.c.l.b16 %v49
  %v159 = vunpack.c.l.b16 %v50
  %v160 = vunpack.c.l.b16 %v51
  %v161 = vunpack.c.l.b16 %v52
  %v162 = vunpack.c.l.b16 %v53
  %v163 = vunpack.c.l.b16 %v54
  %v164 = vunpack.c.l.b16 %v55
  %v165 = vunpack.c.l.b16 %v56
  %v166 = vunpack.c.l.b16 %v57
  %v167 = vunpack.c.l.b16 %v58
  %v168 = vpack.c.b16 %v133, %v132
  %v169 = vpack.c.b16 %v135, %v134
  %v170 = vpack.c.b16 %v137, %v136
  %v171 = vpack.c.b16 %v139, %v138
  %v172 = vpack.c.b16 %v141, %v140
  %v173 = vpack.c.b16 %v143, %v142
  %v174 = vpack.c.b16 %v145, %v144
  %v175 = vpack.c.b16 %v147, %v146
  %v176 = vpack.c.b16 %v149, %v148
  %v177 = vpack.c.b16 %v151, %v150
  %v178 = vpack.c.b16 %v153, %v152
  %v179 = vpack.c.b16 %v155, %v154
  %v180 = vpack.c.b16 %v157, %v156
  %v181 = vpack.c.b16 %v159, %v158
  %v182 = vpack.c.b16 %v161, %v160
  %v183 = vpack.c.b16 %v163, %v162
  %v184 = vpack.c.b16 %v165, %v164
  %v185 = vpack.c.b16 %v167, %v166
  %vm204 = vcmask 261120
  %v206 = vsel %vm204, %v88, 0
  %v209 = vsel %vm204, %v91, 0
  %211 = vmatprep.subr.bf16.mxu0 0
  %212 = vmatpush1.bf16.msra.mxu0 %v168
  %213 = vmatprep.subr.bf16.mxu0 0
  %214 = vmatpush1.bf16.msra.mxu0 %v169
  %215 = vmatprep.subr.bf16.mxu0 0
  %216 = vmatpush1.bf16.msra.mxu0 %v170
  %217 = vmatprep.subr.bf16.mxu0 0
  %218 = vmatpush1.bf16.msra.mxu0 %v171
  %219 = vmatprep.subr.bf16.mxu0 0
  %220 = vmatpush1.bf16.msra.mxu0 %v172
  %221 = vmatprep.subr.bf16.mxu0 0
  %222 = vmatpush1.bf16.msra.mxu0 %v173
  %223 = vmatprep.subr.bf16.mxu0 0
  %224 = vmatpush1.bf16.msra.mxu0 %v174
  %225 = vmatprep.subr.bf16.mxu0 0
  %226 = vmatpush1.bf16.msra.mxu0 %v175
  %227 = vmatprep.subr.bf16.mxu0 0
  %228 = vmatpush1.bf16.msra.mxu0 %v176
  %229 = vmatprep.subr.bf16.mxu0 0
  %230 = vmatpush1.bf16.msra.mxu0 %v177
  %231 = vmatprep.subr.bf16.mxu0 0
  %232 = vmatpush1.bf16.msra.mxu0 %v178
  %233 = vmatprep.subr.bf16.mxu0 0
  %234 = vmatpush1.bf16.msra.mxu0 %v179
  %235 = vmatprep.subr.bf16.mxu0 0
  %236 = vmatpush1.bf16.msra.mxu0 %v180
  %237 = vmatprep.subr.bf16.mxu0 0
  %238 = vmatpush1.bf16.msra.mxu0 %v181
  %239 = vmatprep.subr.bf16.mxu0 0
  %240 = vmatpush1.bf16.msra.mxu0 %v182
  %241 = vmatprep.subr.bf16.mxu0 0
  %242 = vmatpush1.bf16.msra.mxu0 %v183
  %243 = vmatprep.mubr.bf16.mxu0 %v87
  %244 = vmatmul.mubr.bf16.gmra.mrb[0].mxu0 %v86
  %v245 = vpop.f32.mrb[0].mxu0
  %v246 = vadd.f32 %v64, %v245
  %v247 = vpop.f32.mrb[0].mxu0
  %v248 = vpop.f32.mrb[0].mxu0
  %v249 = vadd.f32 %v64, %v248
  %v250 = vpop.f32.mrb[0].mxu0
  %251 = vmatprep.mubr.bf16.mxu0 %v90
  %252 = vmatmul.mubr.bf16.gmra.mrb[0].mxu0 %v89
  %v253 = vpop.f32.mrb[0].mxu0
  %v254 = vadd.f32 %v64, %v253
  %v255 = vpop.f32.mrb[0].mxu0
  %v256 = vpop.f32.mrb[0].mxu0
  %v257 = vadd.f32 %v64, %v256
  %v258 = vpop.f32.mrb[0].mxu0
  %259 = vdwg.mxu0
  %260 = vmatprep.subr.bf16.mxu0 0
  %261 = vmatpush1.bf16.msra.mxu0 %v184
  %262 = vmatprep.subr.bf16.mxu0 0
  %263 = vmatpush1.bf16.msra.mxu0 %v185
  %264 = vmatprep.subr.bf16.mxu0 0
  %265 = vmatpush1.bf16.msra.mxu0 0
  %266 = vmatprep.subr.bf16.mxu0 0
  %267 = vmatpush1.bf16.msra.mxu0 0
  %268 = vmatprep.subr.bf16.mxu0 0
  %269 = vmatpush1.bf16.msra.mxu0 0
  %270 = vmatprep.subr.bf16.mxu0 0
  %271 = vmatpush1.bf16.msra.mxu0 0
  %272 = vmatprep.subr.bf16.mxu0 0
  %273 = vmatpush1.bf16.msra.mxu0 0
  %274 = vmatprep.subr.bf16.mxu0 0
  %275 = vmatpush1.bf16.msra.mxu0 0
  %276 = vmatprep.subr.bf16.mxu0 0
  %277 = vmatpush1.bf16.msra.mxu0 0
  %278 = vmatprep.subr.bf16.mxu0 0
  %279 = vmatpush1.bf16.msra.mxu0 0
  %280 = vmatprep.subr.bf16.mxu0 0
  %281 = vmatpush1.bf16.msra.mxu0 0
  %282 = vmatprep.subr.bf16.mxu0 0
  %283 = vmatpush1.bf16.msra.mxu0 0
  %284 = vmatprep.subr.bf16.mxu0 0
  %285 = vmatpush1.bf16.msra.mxu0 0
  %286 = vmatprep.subr.bf16.mxu0 0
  %287 = vmatpush1.bf16.msra.mxu0 0
  %288 = vmatprep.subr.bf16.mxu0 0
  %289 = vmatpush1.bf16.msra.mxu0 0
  %290 = vmatprep.subr.bf16.mxu0 0
  %291 = vmatpush1.bf16.msra.mxu0 0
  %292 = vmatprep.mubr.bf16.mxu0 0
  %293 = vmatmul.mubr.bf16.gmra.mrb[0].mxu0 %v206
  %v294 = vpop.f32.mrb[0].mxu0
  %v295 = vadd.f32 %v246, %v294
  %v296 = vpop.f32.mrb[0].mxu0
  %v297 = vpop.f32.mrb[0].mxu0
  %v298 = vadd.f32 %v249, %v297
  %v299 = vpop.f32.mrb[0].mxu0
  %300 = vmatprep.mubr.bf16.mxu0 0
  %301 = vmatmul.mubr.bf16.gmra.mrb[0].mxu0 %v209
  %v302 = vpop.f32.mrb[0].mxu0
  %v303 = vadd.f32 %v254, %v302
  %v304 = vpop.f32.mrb[0].mxu0
  %v305 = vpop.f32.mrb[0].mxu0
  %v306 = vadd.f32 %v257, %v305
  %v307 = vpop.f32.mrb[0].mxu0
  %308 = vdwg.mxu0
  %v309 = vmax.f32 %v295, 0.0
  %v310 = vmax.f32 %v298, 0.0
  %v311 = vmax.f32 %v303, 0.0
  %v312 = vmax.f32 %v306, 0.0
  %v313 = vpack.c.bf16 %v310, %v309
  %v314 = vpack.c.bf16 %v312, %v311
  %v317 = vunpack.c.l.b16 %v313
  %v318 = vunpack.c.h.b16 %v313
  %v319 = vunpack.c.l.b16 %v314
  %v320 = vunpack.c.h.b16 %v314
  %v321 = vpack.c.b16 %v317, %v317
  %v322 = vpack.c.b16 %v318, %v318
  %v323 = vpack.c.b16 %v319, %v319
  %v324 = vpack.c.b16 %v320, %v320
  %vm329 = vcmask 781312
  %330 = vst.msk [vmem:[%s3] sm:$0xf] %vm329, %v321
  %331 = vst.msk [vmem:[%s3 + $0x4] sm:$0xf] %vm329, %v322
  %332 = vst.msk [vmem:[%s3 + $0x8] sm:$0xf] %vm329, %v323
  %333 = vst.msk [vmem:[%s3 + $0xc] sm:$0xf] %vm329, %v324
  // Predicated region
  $region14: #{faceboxes_forward.14} parent=0 // pred_check
    _
  $region15: #{faceboxes_forward.14} parent=0 // pred_check_branch
    %335 = sbr.rel (0) target = $region17
  $region16: #{faceboxes_forward.14} parent=0 // pred_region
    _
  $region17: #{faceboxes_forward.14} parent=0 // pred_fallthru
    _
  // Predicated region
  $region18: #{faceboxes_forward.14} parent=0 // pred_check
    _
  $region19: #{faceboxes_forward.14} parent=0 // pred_check_branch
    %337 = sbr.rel (0) target = $region21
  $region20: #{faceboxes_forward.14} parent=0 // pred_region
    _
  $region21: #{faceboxes_forward.14} parent=0 // pred_fallthru
    _

// kernel: faceboxes_forward.15
$region0: #{faceboxes_forward.15}
  #allocation0 [shape = 'u32[]', space=smem, size = 0x4, offset = 0x4, fixed_abs, tag = 'smem constant byte address 0x4 - core index']
  #allocation1 [shape = 'u32[144,128]{1,0:T(1,128)}', space=vmem, size = 0x12000, scoped, tag = 'internal scratch']
  %s0 = inlined_call_operand.vmem [shape: bf16[8,864], index: 0, kind: input, shape index: {}]
  %s1 = inlined_call_operand.vmem [shape: bf16[864,96], index: 1, kind: input, shape index: {}]
  %s2 = inlined_call_operand.vmem [shape: f32[1,96], index: 2, kind: input, shape index: {}]
  %s3 = inlined_call_operand.vmem [shape: bf16[8,96], index: 3, kind: output, shape index: {}]
  %s4 = sld [smem:[#allocation0]]
  $region22: #{faceboxes_forward.15} parent=0
    _
  %s6 = ssub.s32 1, %s4
  %s7 = scalar_select 0, %s6, %s4
  // Predicated region
  $region2: #{faceboxes_forward.15} parent=0 // pred_check
    _
  $region3: #{faceboxes_forward.15} parent=0 // pred_check_branch
    %9 = sbr.rel (0) target = $region5
  $region4: #{faceboxes_forward.15} parent=0 // pred_region
    _
  $region5: #{faceboxes_forward.15} parent=0 // pred_fallthru
    _
  // Predicated region
  $region6: #{faceboxes_forward.15} parent=0 // pred_check
    _
  $region7: #{faceboxes_forward.15} parent=0 // pred_check_branch
    %11 = sbr.rel (0) target = $region9
  $region8: #{faceboxes_forward.15} parent=0 // pred_region
    _
  $region9: #{faceboxes_forward.15} parent=0 // pred_fallthru
    _
  // Predicated region
  $region10: #{faceboxes_forward.15} parent=0 // pred_check
    _
  $region11: #{faceboxes_forward.15} parent=0 // pred_check_branch
    %13 = sbr.rel (0) target = $region13
  $region12: #{faceboxes_forward.15} parent=0 // pred_region
    _
  $region13: #{faceboxes_forward.15} parent=0 // pred_fallthru
    _
  %v15 = vld [vmem:[%s0] sm:$0xff]
  %v16 = vld [vmem:[%s0 + $0x8] sm:$0xff]
  %v17 = vld [vmem:[%s0 + $0x10] sm:$0xff]
  %v18 = vld [vmem:[%s0 + $0x18] sm:$0xf]
  %v19 = vld [vmem:[%s1] sm:$0xf]
  %v20 = vld [vmem:[%s1 + $0x4] sm:$0xf]
  %v21 = vld [vmem:[%s1 + $0x8] sm:$0xf]
  %v22 = vld [vmem:[%s1 + $0xc] sm:$0xf]
  %v23 = vld [vmem:[%s1 + $0x10] sm:$0xf]
  %v24 = vld [vmem:[%s1 + $0x14] sm:$0xf]
  %v25 = vld [vmem:[%s1 + $0x18] sm:$0xf]
  %v26 = vld [vmem:[%s1 + $0x1c] sm:$0xf]
  %v27 = vld [vmem:[%s1 + $0x20] sm:$0xf]
  %v28 = vld [vmem:[%s1 + $0x24] sm:$0xf]
  %v29 = vld [vmem:[%s1 + $0x28] sm:$0xf]
  %v30 = vld [vmem:[%s1 + $0x2c] sm:$0xf]
  %v31 = vld [vmem:[%s1 + $0x30] sm:$0xf]
  %v32 = vld [vmem:[%s1 + $0x34] sm:$0xf]
  %v33 = vld [vmem:[%s1 + $0x38] sm:$0xf]
  %v34 = vld [vmem:[%s1 + $0x3c] sm:$0xf]
  %v35 = vld [vmem:[%s1 + $0x40] sm:$0xf]
  %v36 = vld [vmem:[%s1 + $0x44] sm:$0xf]
  %v37 = vld [vmem:[%s1 + $0x48] sm:$0xf]
  %v38 = vld [vmem:[%s1 + $0x4c] sm:$0xf]
  %v39 = vld [vmem:[%s1 + $0x50] sm:$0xf]
  %v40 = vld [vmem:[%s1 + $0x54] sm:$0xf]
  %v41 = vld [vmem:[%s1 + $0x58] sm:$0xf]
  %v42 = vld [vmem:[%s1 + $0x5c] sm:$0xf]
  %v43 = vld [vmem:[%s1 + $0x60] sm:$0xf]
  %v44 = vld [vmem:[%s1 + $0x64] sm:$0xf]
  %v45 = vld [vmem:[%s1 + $0x68] sm:$0xf]
  %v46 = vld [vmem:[%s1 + $0x6c] sm:$0xf]
  %v47 = vld [vmem:[%s1 + $0x70] sm:$0xf]
  %v48 = vld [vmem:[%s1 + $0x74] sm:$0xf]
  %v49 = vld [vmem:[%s1 + $0x78] sm:$0xf]
  %v50 = vld [vmem:[%s1 + $0x7c] sm:$0xf]
  %v51 = vld [vmem:[%s1 + $0x80] sm:$0xf]
  %v52 = vld [vmem:[%s1 + $0x84] sm:$0xf]
  %v53 = vld [vmem:[%s1 + $0x88] sm:$0xf]
  %v54 = vld [vmem:[%s1 + $0x8c] sm:$0xf]
  %v55 = vld [vmem:[%s1 + $0x90] sm:$0xf]
  %v56 = vld [vmem:[%s1 + $0x94] sm:$0xf]
  %v57 = vld [vmem:[%s1 + $0x98] sm:$0xf]
  %v58 = vld [vmem:[%s1 + $0x9c] sm:$0xf]
  %v59 = vld [vmem:[%s1 + $0xa0] sm:$0xf]
  %v60 = vld [vmem:[%s1 + $0xa4] sm:$0xf]
  %v61 = vld [vmem:[%s1 + $0xa8] sm:$0xf]
  %v62 = vld [vmem:[%s1 + $0xac] sm:$0xf]
  %v63 = vld [vmem:[%s1 + $0xb0] sm:$0xf]
  %v64 = vld [vmem:[%s1 + $0xb4] sm:$0xf]
  %v65 = vld [vmem:[%s1 + $0xb8] sm:$0xf]
  %v66 = vld [vmem:[%s1 + $0xbc] sm:$0xf]
  %v67 = vld [vmem:[%s1 + $0xc0] sm:$0xf]
  %v68 = vld [vmem:[%s1 + $0xc4] sm:$0xf]
  %v69 = vld [vmem:[%s1 + $0xc8] sm:$0xf]
  %v70 = vld [vmem:[%s1 + $0xcc] sm:$0xf]
  %v71 = vld [vmem:[%s1 + $0xd0] sm:$0xf]
  %v72 = vld [vmem:[%s1 + $0xd4] sm:$0xf]
  %v73 = vld [vmem:[%s1 + $0xd8] sm:$0xf]
  %v74 = vld [vmem:[%s1 + $0xdc] sm:$0xf]
  %v75 = vld [vmem:[%s1 + $0xe0] sm:$0xf]
  %v76 = vld [vmem:[%s1 + $0xe4] sm:$0xf]
  %v77 = vld [vmem:[%s1 + $0xe8] sm:$0xf]
  %v78 = vld [vmem:[%s1 + $0xec] sm:$0xf]
  %v79 = vld [vmem:[%s1 + $0xf0] sm:$0xf]
  %v80 = vld [vmem:[%s1 + $0xf4] sm:$0xf]
  %v81 = vld [vmem:[%s1 + $0xf8] sm:$0xf]
  %v82 = vld [vmem:[%s1 + $0xfc] sm:$0xf]
  %v83 = vld [vmem:[%s1 + $0x100] sm:$0xf]
  %v84 = vld [vmem:[%s1 + $0x104] sm:$0xf]
  %v85 = vld [vmem:[%s1 + $0x108] sm:$0xf]
  %v86 = vld [vmem:[%s1 + $0x10c] sm:$0xf]
  %v87 = vld [vmem:[%s1 + $0x110] sm:$0xf]
  %v88 = vld [vmem:[%s1 + $0x114] sm:$0xf]
  %v89 = vld [vmem:[%s1 + $0x118] sm:$0xf]
  %v90 = vld [vmem:[%s1 + $0x11c] sm:$0xf]
  %v91 = vld [vmem:[%s1 + $0x120] sm:$0xf]
  %v92 = vld [vmem:[%s1 + $0x124] sm:$0xf]
  %v93 = vld [vmem:[%s1 + $0x128] sm:$0xf]
  %v94 = vld [vmem:[%s1 + $0x12c] sm:$0xf]
  %v95 = vld [vmem:[%s1 + $0x130] sm:$0xf]
  %v96 = vld [vmem:[%s1 + $0x134] sm:$0xf]
  %v97 = vld [vmem:[%s1 + $0x138] sm:$0xf]
  %v98 = vld [vmem:[%s1 + $0x13c] sm:$0xf]
  %v99 = vld [vmem:[%s1 + $0x140] sm:$0xf]
  %v100 = vld [vmem:[%s1 + $0x144] sm:$0xf]
  %v101 = vld [vmem:[%s1 + $0x148] sm:$0xf]
  %v102 = vld [vmem:[%s1 + $0x14c] sm:$0xf]
  %v103 = vld [vmem:[%s1 + $0x150] sm:$0xf]
  %v104 = vld [vmem:[%s1 + $0x154] sm:$0xf]
  %v105 = vld [vmem:[%s1 + $0x158] sm:$0xf]
  %v106 = vld [vmem:[%s1 + $0x15c] sm:$0xf]
  %v107 = vld [vmem:[%s1 + $0x160] sm:$0xf]
  %v108 = vld [vmem:[%s1 + $0x164] sm:$0xf]
  %v109 = vld [vmem:[%s1 + $0x168] sm:$0xf]
  %v110 = vld [vmem:[%s1 + $0x16c] sm:$0xf]
  %v111 = vld [vmem:[%s1 + $0x170] sm:$0xf]
  %v112 = vld [vmem:[%s1 + $0x174] sm:$0xf]
  %v113 = vld [vmem:[%s1 + $0x178] sm:$0xf]
  %v114 = vld [vmem:[%s1 + $0x17c] sm:$0xf]
  %v115 = vld [vmem:[%s1 + $0x180] sm:$0xf]
  %v116 = vld [vmem:[%s1 + $0x184] sm:$0xf]
  %v117 = vld [vmem:[%s1 + $0x188] sm:$0xf]
  %v118 = vld [vmem:[%s1 + $0x18c] sm:$0xf]
  %v119 = vld [vmem:[%s1 + $0x190] sm:$0xf]
  %v120 = vld [vmem:[%s1 + $0x194] sm:$0xf]
  %v121 = vld [vmem:[%s1 + $0x198] sm:$0xf]
  %v122 = vld [vmem:[%s1 + $0x19c] sm:$0xf]
  %v123 = vld [vmem:[%s1 + $0x1a0] sm:$0xf]
  %v124 = vld [vmem:[%s1 + $0x1a4] sm:$0xf]
  %v125 = vld [vmem:[%s1 + $0x1a8] sm:$0xf]
  %v126 = vld [vmem:[%s1 + $0x1ac] sm:$0xf]
  %v127 = vld [vmem:[%s2] sm:$0x1]
  %v129 = vlaneseq
  %v130 = vshrl.u32 %v129, 7
  %v131 = vsub.s32 0, %v130
  %v132 = vrot.slane %v127, %v131
  %v138 = vunpack.c.l.b16 %v15
  %v139 = vunpack.c.h.b16 %v15
  %v140 = vunpack.c.l.b16 %v16
  %v141 = vunpack.c.h.b16 %v16
  %v142 = vunpack.c.l.b16 %v17
  %v143 = vunpack.c.h.b16 %v17
  %v144 = vunpack.c.l.b16 %v18
  %v145 = vpack.c.b16 %v138, %v138
  %v146 = vpack.c.b16 %v139, %v139
  %v147 = vpack.c.b16 %v140, %v140
  %v148 = vpack.c.b16 %v141, %v141
  %v149 = vpack.c.b16 %v142, %v142
  %v150 = vpack.c.b16 %v143, %v143
  %v151 = vpack.c.b16 %v144, %v144
  %v266 = vunpack.c.l.b16 %v19
  %v267 = vunpack.c.l.b16 %v20
  %v268 = vunpack.c.l.b16 %v21
  %v269 = vunpack.c.l.b16 %v22
  %v270 = vunpack.c.l.b16 %v23
  %v271 = vunpack.c.l.b16 %v24
  %v272 = vunpack.c.l.b16 %v25
  %v273 = vunpack.c.l.b16 %v26
  %v274 = vunpack.c.l.b16 %v27
  %v275 = vunpack.c.l.b16 %v28
  %v276 = vunpack.c.l.b16 %v29
  %v277 = vunpack.c.l.b16 %v30
  %v278 = vunpack.c.l.b16 %v31
  %v279 = vunpack.c.l.b16 %v32
  %v280 = vunpack.c.l.b16 %v33
  %v281 = vunpack.c.l.b16 %v34
  %v282 = vunpack.c.l.b16 %v35
  %v283 = vunpack.c.l.b16 %v36
  %v284 = vunpack.c.l.b16 %v37
  %v285 = vunpack.c.l.b16 %v38
  %v286 = vunpack.c.l.b16 %v39
  %v287 = vunpack.c.l.b16 %v40
  %v288 = vunpack.c.l.b16 %v41
  %v289 = vunpack.c.l.b16 %v42
  %v290 = vunpack.c.l.b16 %v43
  %v291 = vunpack.c.l.b16 %v44
  %v292 = vunpack.c.l.b16 %v45
  %v293 = vunpack.c.l.b16 %v46
  %v294 = vunpack.c.l.b16 %v47
  %v295 = vunpack.c.l.b16 %v48
  %v296 = vunpack.c.l.b16 %v49
  %v297 = vunpack.c.l.b16 %v50
  %v298 = vunpack.c.l.b16 %v51
  %v299 = vunpack.c.l.b16 %v52
  %v300 = vunpack.c.l.b16 %v53
  %v301 = vunpack.c.l.b16 %v54
  %v302 = vunpack.c.l.b16 %v55
  %v303 = vunpack.c.l.b16 %v56
  %v304 = vunpack.c.l.b16 %v57
  %v305 = vunpack.c.l.b16 %v58
  %v306 = vunpack.c.l.b16 %v59
  %v307 = vunpack.c.l.b16 %v60
  %v308 = vunpack.c.l.b16 %v61
  %v309 = vunpack.c.l.b16 %v62
  %v310 = vunpack.c.l.b16 %v63
  %v311 = vunpack.c.l.b16 %v64
  %v312 = vunpack.c.l.b16 %v65
  %v313 = vunpack.c.l.b16 %v66
  %v314 = vunpack.c.l.b16 %v67
  %v315 = vunpack.c.l.b16 %v68
  %v316 = vunpack.c.l.b16 %v69
  %v317 = vunpack.c.l.b16 %v70
  %v318 = vunpack.c.l.b16 %v71
  %v319 = vunpack.c.l.b16 %v72
  %v320 = vunpack.c.l.b16 %v73
  %v321 = vunpack.c.l.b16 %v74
  %v322 = vunpack.c.l.b16 %v75
  %v323 = vunpack.c.l.b16 %v76
  %v324 = vunpack.c.l.b16 %v77
  %v325 = vunpack.c.l.b16 %v78
  %v326 = vunpack.c.l.b16 %v79
  %v327 = vunpack.c.l.b16 %v80
  %v328 = vunpack.c.l.b16 %v81
  %v329 = vunpack.c.l.b16 %v82
  %v330 = vunpack.c.l.b16 %v83
  %v331 = vunpack.c.l.b16 %v84
  %v332 = vunpack.c.l.b16 %v85
  %v333 = vunpack.c.l.b16 %v86
  %v334 = vunpack.c.l.b16 %v87
  %v335 = vunpack.c.l.b16 %v88
  %v336 = vunpack.c.l.b16 %v89
  %v337 = vunpack.c.l.b16 %v90
  %v338 = vunpack.c.l.b16 %v91
  %v339 = vunpack.c.l.b16 %v92
  %v340 = vunpack.c.l.b16 %v93
  %v341 = vunpack.c.l.b16 %v94
  %v342 = vunpack.c.l.b16 %v95
  %v343 = vunpack.c.l.b16 %v96
  %v344 = vunpack.c.l.b16 %v97
  %v345 = vunpack.c.l.b16 %v98
  %v346 = vunpack.c.l.b16 %v99
  %v347 = vunpack.c.l.b16 %v100
  %v348 = vunpack.c.l.b16 %v101
  %v349 = vunpack.c.l.b16 %v102
  %v350 = vunpack.c.l.b16 %v103
  %v351 = vunpack.c.l.b16 %v104
  %v352 = vunpack.c.l.b16 %v105
  %v353 = vunpack.c.l.b16 %v106
  %v354 = vunpack.c.l.b16 %v107
  %v355 = vunpack.c.l.b16 %v108
  %v356 = vunpack.c.l.b16 %v109
  %v357 = vunpack.c.l.b16 %v110
  %v358 = vunpack.c.l.b16 %v111
  %v359 = vunpack.c.l.b16 %v112
  %v360 = vunpack.c.l.b16 %v113
  %v361 = vunpack.c.l.b16 %v114
  %v362 = vunpack.c.l.b16 %v115
  %v363 = vunpack.c.l.b16 %v116
  %v364 = vunpack.c.l.b16 %v117
  %v365 = vunpack.c.l.b16 %v118
  %v366 = vunpack.c.l.b16 %v119
  %v367 = vunpack.c.l.b16 %v120
  %v368 = vunpack.c.l.b16 %v121
  %v369 = vunpack.c.l.b16 %v122
  %v370 = vunpack.c.l.b16 %v123
  %v371 = vunpack.c.l.b16 %v124
  %v372 = vunpack.c.l.b16 %v125
  %v373 = vunpack.c.l.b16 %v126
  %v374 = vpack.c.b16 %v267, %v266
  %v375 = vpack.c.b16 %v269, %v268
  %v376 = vpack.c.b16 %v271, %v270
  %v377 = vpack.c.b16 %v273, %v272
  %v378 = vpack.c.b16 %v275, %v274
  %v379 = vpack.c.b16 %v277, %v276
  %v380 = vpack.c.b16 %v279, %v278
  %v381 = vpack.c.b16 %v281, %v280
  %v382 = vpack.c.b16 %v283, %v282
  %v383 = vpack.c.b16 %v285, %v284
  %v384 = vpack.c.b16 %v287, %v286
  %v385 = vpack.c.b16 %v289, %v288
  %v386 = vpack.c.b16 %v291, %v290
  %v387 = vpack.c.b16 %v293, %v292
  %v388 = vpack.c.b16 %v295, %v294
  %v389 = vpack.c.b16 %v297, %v296
  %v390 = vpack.c.b16 %v299, %v298
  %v391 = vpack.c.b16 %v301, %v300
  %v392 = vpack.c.b16 %v303, %v302
  %v393 = vpack.c.b16 %v305, %v304
  %v394 = vpack.c.b16 %v307, %v306
  %v395 = vpack.c.b16 %v309, %v308
  %v396 = vpack.c.b16 %v311, %v310
  %v397 = vpack.c.b16 %v313, %v312
  %v398 = vpack.c.b16 %v315, %v314
  %v399 = vpack.c.b16 %v317, %v316
  %v400 = vpack.c.b16 %v319, %v318
  %v401 = vpack.c.b16 %v321, %v320
  %v402 = vpack.c.b16 %v323, %v322
  %v403 = vpack.c.b16 %v325, %v324
  %v404 = vpack.c.b16 %v327, %v326
  %v405 = vpack.c.b16 %v329, %v328
  %v406 = vpack.c.b16 %v331, %v330
  %v407 = vpack.c.b16 %v333, %v332
  %v408 = vpack.c.b16 %v335, %v334
  %v409 = vpack.c.b16 %v337, %v336
  %v410 = vpack.c.b16 %v339, %v338
  %v411 = vpack.c.b16 %v341, %v340
  %v412 = vpack.c.b16 %v343, %v342
  %v413 = vpack.c.b16 %v345, %v344
  %v414 = vpack.c.b16 %v347, %v346
  %v415 = vpack.c.b16 %v349, %v348
  %v416 = vpack.c.b16 %v351, %v350
  %v417 = vpack.c.b16 %v353, %v352
  %v418 = vpack.c.b16 %v355, %v354
  %v419 = vpack.c.b16 %v357, %v356
  %v420 = vpack.c.b16 %v359, %v358
  %v421 = vpack.c.b16 %v361, %v360
  %v422 = vpack.c.b16 %v363, %v362
  %v423 = vpack.c.b16 %v365, %v364
  %v424 = vpack.c.b16 %v367, %v366
  %v425 = vpack.c.b16 %v369, %v368
  %v426 = vpack.c.b16 %v371, %v370
  %v427 = vpack.c.b16 %v373, %v372
  %vm482 = vcmask 785408
  %v484 = vsel %vm482, %v151, 0
  %486 = vmatprep.subr.bf16.mxu0 0
  %487 = vmatpush1.bf16.msra.mxu0 %v374
  %488 = vmatprep.subr.bf16.mxu0 0
  %489 = vmatpush1.bf16.msra.mxu0 %v375
  %490 = vmatprep.subr.bf16.mxu0 0
  %491 = vmatpush1.bf16.msra.mxu0 %v376
  %492 = vmatprep.subr.bf16.mxu0 0
  %493 = vmatpush1.bf16.msra.mxu0 %v377
  %494 = vmatprep.subr.bf16.mxu0 0
  %495 = vmatpush1.bf16.msra.mxu0 %v378
  %496 = vmatprep.subr.bf16.mxu0 0
  %497 = vmatpush1.bf16.msra.mxu0 %v379
  %498 = vmatprep.subr.bf16.mxu0 0
  %499 = vmatpush1.bf16.msra.mxu0 %v380
  %500 = vmatprep.subr.bf16.mxu0 0
  %501 = vmatpush1.bf16.msra.mxu0 %v381
  %502 = vmatprep.subr.bf16.mxu0 0
  %503 = vmatpush1.bf16.msra.mxu0 %v382
  %504 = vmatprep.subr.bf16.mxu0 0
  %505 = vmatpush1.bf16.msra.mxu0 %v383
  %506 = vmatprep.subr.bf16.mxu0 0
  %507 = vmatpush1.bf16.msra.mxu0 %v384
  %508 = vmatprep.subr.bf16.mxu0 0
  %509 = vmatpush1.bf16.msra.mxu0 %v385
  %510 = vmatprep.subr.bf16.mxu0 0
  %511 = vmatpush1.bf16.msra.mxu0 %v386
  %512 = vmatprep.subr.bf16.mxu0 0
  %513 = vmatpush1.bf16.msra.mxu0 %v387
  %514 = vmatprep.subr.bf16.mxu0 0
  %515 = vmatpush1.bf16.msra.mxu0 %v388
  %516 = vmatprep.subr.bf16.mxu0 0
  %517 = vmatpush1.bf16.msra.mxu0 %v389
  %518 = vmatprep.mubr.bf16.mxu0 %v146
  %519 = vmatmul.mubr.bf16.gmra.mrb[0].mxu0 %v145
  %v520 = vpop.f32.mrb[0].mxu0
  %v521 = vadd.f32 %v132, %v520
  %v522 = vpop.f32.mrb[0].mxu0
  %v523 = vpop.f32.mrb[0].mxu0
  %v524 = vpop.f32.mrb[0].mxu0
  %525 = vdwg.mxu0
  %526 = vmatprep.subr.bf16.mxu0 0
  %527 = vmatpush1.bf16.msra.mxu0 %v390
  %528 = vmatprep.subr.bf16.mxu0 0
  %529 = vmatpush1.bf16.msra.mxu0 %v391
  %530 = vmatprep.subr.bf16.mxu0 0
  %531 = vmatpush1.bf16.msra.mxu0 %v392
  %532 = vmatprep.subr.bf16.mxu0 0
  %533 = vmatpush1.bf16.msra.mxu0 %v393
  %534 = vmatprep.subr.bf16.mxu0 0
  %535 = vmatpush1.bf16.msra.mxu0 %v394
  %536 = vmatprep.subr.bf16.mxu0 0
  %537 = vmatpush1.bf16.msra.mxu0 %v395
  %538 = vmatprep.subr.bf16.mxu0 0
  %539 = vmatpush1.bf16.msra.mxu0 %v396
  %540 = vmatprep.subr.bf16.mxu0 0
  %541 = vmatpush1.bf16.msra.mxu0 %v397
  %542 = vmatprep.subr.bf16.mxu0 0
  %543 = vmatpush1.bf16.msra.mxu0 %v398
  %544 = vmatprep.subr.bf16.mxu0 0
  %545 = vmatpush1.bf16.msra.mxu0 %v399
  %546 = vmatprep.subr.bf16.mxu0 0
  %547 = vmatpush1.bf16.msra.mxu0 %v400
  %548 = vmatprep.subr.bf16.mxu0 0
  %549 = vmatpush1.bf16.msra.mxu0 %v401
  %550 = vmatprep.subr.bf16.mxu0 0
  %551 = vmatpush1.bf16.msra.mxu0 %v402
  %552 = vmatprep.subr.bf16.mxu0 0
  %553 = vmatpush1.bf16.msra.mxu0 %v403
  %554 = vmatprep.subr.bf16.mxu0 0
  %555 = vmatpush1.bf16.msra.mxu0 %v404
  %556 = vmatprep.subr.bf16.mxu0 0
  %557 = vmatpush1.bf16.msra.mxu0 %v405
  %558 = vmatprep.mubr.bf16.mxu0 %v148
  %559 = vmatmul.mubr.bf16.gmra.mrb[0].mxu0 %v147
  %v560 = vpop.f32.mrb[0].mxu0
  %v561 = vadd.f32 %v521, %v560
  %v562 = vpop.f32.mrb[0].mxu0
  %v563 = vpop.f32.mrb[0].mxu0
  %v564 = vpop.f32.mrb[0].mxu0
  %565 = vdwg.mxu0
  %566 = vmatprep.subr.bf16.mxu0 0
  %567 = vmatpush1.bf16.msra.mxu0 %v406
  %568 = vmatprep.subr.bf16.mxu0 0
  %569 = vmatpush1.bf16.msra.mxu0 %v407
  %570 = vmatprep.subr.bf16.mxu0 0
  %571 = vmatpush1.bf16.msra.mxu0 %v408
  %572 = vmatprep.subr.bf16.mxu0 0
  %573 = vmatpush1.bf16.msra.mxu0 %v409
  %574 = vmatprep.subr.bf16.mxu0 0
  %575 = vmatpush1.bf16.msra.mxu0 %v410
  %576 = vmatprep.subr.bf16.mxu0 0
  %577 = vmatpush1.bf16.msra.mxu0 %v411
  %578 = vmatprep.subr.bf16.mxu0 0
  %579 = vmatpush1.bf16.msra.mxu0 %v412
  %580 = vmatprep.subr.bf16.mxu0 0
  %581 = vmatpush1.bf16.msra.mxu0 %v413
  %582 = vmatprep.subr.bf16.mxu0 0
  %583 = vmatpush1.bf16.msra.mxu0 %v414
  %584 = vmatprep.subr.bf16.mxu0 0
  %585 = vmatpush1.bf16.msra.mxu0 %v415
  %586 = vmatprep.subr.bf16.mxu0 0
  %587 = vmatpush1.bf16.msra.mxu0 %v416
  %588 = vmatprep.subr.bf16.mxu0 0
  %589 = vmatpush1.bf16.msra.mxu0 %v417
  %590 = vmatprep.subr.bf16.mxu0 0
  %591 = vmatpush1.bf16.msra.mxu0 %v418
  %592 = vmatprep.subr.bf16.mxu0 0
  %593 = vmatpush1.bf16.msra.mxu0 %v419
  %594 = vmatprep.subr.bf16.mxu0 0
  %595 = vmatpush1.bf16.msra.mxu0 %v420
  %596 = vmatprep.subr.bf16.mxu0 0
  %597 = vmatpush1.bf16.msra.mxu0 %v421
  %598 = vmatprep.mubr.bf16.mxu0 %v150
  %599 = vmatmul.mubr.bf16.gmra.mrb[0].mxu0 %v149
  %v600 = vpop.f32.mrb[0].mxu0
  %v601 = vadd.f32 %v561, %v600
  %v602 = vpop.f32.mrb[0].mxu0
  %v603 = vpop.f32.mrb[0].mxu0
  %v604 = vpop.f32.mrb[0].mxu0
  %605 = vdwg.mxu0
  %606 = vmatprep.subr.bf16.mxu0 0
  %607 = vmatpush1.bf16.msra.mxu0 %v422
  %608 = vmatprep.subr.bf16.mxu0 0
  %609 = vmatpush1.bf16.msra.mxu0 %v423
  %610 = vmatprep.subr.bf16.mxu0 0
  %611 = vmatpush1.bf16.msra.mxu0 %v424
  %612 = vmatprep.subr.bf16.mxu0 0
  %613 = vmatpush1.bf16.msra.mxu0 %v425
  %614 = vmatprep.subr.bf16.mxu0 0
  %615 = vmatpush1.bf16.msra.mxu0 %v426
  %616 = vmatprep.subr.bf16.mxu0 0
  %617 = vmatpush1.bf16.msra.mxu0 %v427
  %618 = vmatprep.subr.bf16.mxu0 0
  %619 = vmatpush1.bf16.msra.mxu0 0
  %620 = vmatprep.subr.bf16.mxu0 0
  %621 = vmatpush1.bf16.msra.mxu0 0
  %622 = vmatprep.subr.bf16.mxu0 0
  %623 = vmatpush1.bf16.msra.mxu0 0
  %624 = vmatprep.subr.bf16.mxu0 0
  %625 = vmatpush1.bf16.msra.mxu0 0
  %626 = vmatprep.subr.bf16.mxu0 0
  %627 = vmatpush1.bf16.msra.mxu0 0
  %628 = vmatprep.subr.bf16.mxu0 0
  %629 = vmatpush1.bf16.msra.mxu0 0
  %630 = vmatprep.subr.bf16.mxu0 0
  %631 = vmatpush1.bf16.msra.mxu0 0
  %632 = vmatprep.subr.bf16.mxu0 0
  %633 = vmatpush1.bf16.msra.mxu0 0
  %634 = vmatprep.subr.bf16.mxu0 0
  %635 = vmatpush1.bf16.msra.mxu0 0
  %636 = vmatprep.subr.bf16.mxu0 0
  %637 = vmatpush1.bf16.msra.mxu0 0
  %638 = vmatprep.mubr.bf16.mxu0 0
  %639 = vmatmul.mubr.bf16.gmra.mrb[0].mxu0 %v484
  %v640 = vpop.f32.mrb[0].mxu0
  %v641 = vadd.f32 %v601, %v640
  %v642 = vpop.f32.mrb[0].mxu0
  %v643 = vpop.f32.mrb[0].mxu0
  %v644 = vpop.f32.mrb[0].mxu0
  %645 = vdwg.mxu0
  %v646 = vmax.f32 %v641, 0.0
  %v647 = vpack.c.bf16 %v646, %v646
  %vm648 = vcmask 781312
  %649 = vst.msk [vmem:[%s3] sm:$0xf] %vm648, %v647
  // Predicated region
  $region14: #{faceboxes_forward.15} parent=0 // pred_check
    _
  $region15: #{faceboxes_forward.15} parent=0 // pred_check_branch
    %651 = sbr.rel (0) target = $region17
  $region16: #{faceboxes_forward.15} parent=0 // pred_region
    _
  $region17: #{faceboxes_forward.15} parent=0 // pred_fallthru
    _
  // Predicated region
  $region18: #{faceboxes_forward.15} parent=0 // pred_check
    _
  $region19: #{faceboxes_forward.15} parent=0 // pred_check_branch
    %653 = sbr.rel (0) target = $region21
  $region20: #{faceboxes_forward.15} parent=0 // pred_region
    _
  $region21: #{faceboxes_forward.15} parent=0 // pred_fallthru
    _

// kernel: faceboxes_forward.16
$region0: #{faceboxes_forward.16}
  #allocation0 [shape = 'u32[]', space=smem, size = 0x4, offset = 0x4, fixed_abs, tag = 'smem constant byte address 0x4 - core index']
  #allocation1 [shape = 'u32[144,128]{1,0:T(1,128)}', space=vmem, size = 0x12000, scoped, tag = 'internal scratch']
  %s0 = inlined_call_operand.vmem [shape: bf16[8,432], index: 0, kind: input, shape index: {}]
  %s1 = inlined_call_operand.vmem [shape: bf16[432,48], index: 1, kind: input, shape index: {}]
  %s2 = inlined_call_operand.vmem [shape: f32[1,48], index: 2, kind: input, shape index: {}]
  %s3 = inlined_call_operand.vmem [shape: bf16[8,48], index: 3, kind: output, shape index: {}]
  %s4 = sld [smem:[#allocation0]]
  $region22: #{faceboxes_forward.16} parent=0
    _
  %s6 = ssub.s32 1, %s4
  %s7 = scalar_select 0, %s6, %s4
  // Predicated region
  $region2: #{faceboxes_forward.16} parent=0 // pred_check
    _
  $region3: #{faceboxes_forward.16} parent=0 // pred_check_branch
    %9 = sbr.rel (0) target = $region5
  $region4: #{faceboxes_forward.16} parent=0 // pred_region
    _
  $region5: #{faceboxes_forward.16} parent=0 // pred_fallthru
    _
  // Predicated region
  $region6: #{faceboxes_forward.16} parent=0 // pred_check
    _
  $region7: #{faceboxes_forward.16} parent=0 // pred_check_branch
    %11 = sbr.rel (0) target = $region9
  $region8: #{faceboxes_forward.16} parent=0 // pred_region
    _
  $region9: #{faceboxes_forward.16} parent=0 // pred_fallthru
    _
  // Predicated region
  $region10: #{faceboxes_forward.16} parent=0 // pred_check
    _
  $region11: #{faceboxes_forward.16} parent=0 // pred_check_branch
    %13 = sbr.rel (0) target = $region13
  $region12: #{faceboxes_forward.16} parent=0 // pred_region
    _
  $region13: #{faceboxes_forward.16} parent=0 // pred_fallthru
    _
  %v15 = vld [vmem:[%s0] sm:$0xff]
  %v16 = vld [vmem:[%s0 + $0x8] sm:$0xff]
  %v17 = vld [vmem:[%s1] sm:$0xf]
  %v18 = vld [vmem:[%s1 + $0x4] sm:$0xf]
  %v19 = vld [vmem:[%s1 + $0x8] sm:$0xf]
  %v20 = vld [vmem:[%s1 + $0xc] sm:$0xf]
  %v21 = vld [vmem:[%s1 + $0x10] sm:$0xf]
  %v22 = vld [vmem:[%s1 + $0x14] sm:$0xf]
  %v23 = vld [vmem:[%s1 + $0x18] sm:$0xf]
  %v24 = vld [vmem:[%s1 + $0x1c] sm:$0xf]
  %v25 = vld [vmem:[%s1 + $0x20] sm:$0xf]
  %v26 = vld [vmem:[%s1 + $0x24] sm:$0xf]
  %v27 = vld [vmem:[%s1 + $0x28] sm:$0xf]
  %v28 = vld [vmem:[%s1 + $0x2c] sm:$0xf]
  %v29 = vld [vmem:[%s1 + $0x30] sm:$0xf]
  %v30 = vld [vmem:[%s1 + $0x34] sm:$0xf]
  %v31 = vld [vmem:[%s1 + $0x38] sm:$0xf]
  %v32 = vld [vmem:[%s1 + $0x3c] sm:$0xf]
  %v33 = vld [vmem:[%s1 + $0x40] sm:$0xf]
  %v34 = vld [vmem:[%s1 + $0x44] sm:$0xf]
  %v35 = vld [vmem:[%s1 + $0x48] sm:$0xf]
  %v36 = vld [vmem:[%s1 + $0x4c] sm:$0xf]
  %v37 = vld [vmem:[%s1 + $0x50] sm:$0xf]
  %v38 = vld [vmem:[%s1 + $0x54] sm:$0xf]
  %v39 = vld [vmem:[%s1 + $0x58] sm:$0xf]
  %v40 = vld [vmem:[%s1 + $0x5c] sm:$0xf]
  %v41 = vld [vmem:[%s1 + $0x60] sm:$0xf]
  %v42 = vld [vmem:[%s1 + $0x64] sm:$0xf]
  %v43 = vld [vmem:[%s1 + $0x68] sm:$0xf]
  %v44 = vld [vmem:[%s1 + $0x6c] sm:$0xf]
  %v45 = vld [vmem:[%s1 + $0x70] sm:$0xf]
  %v46 = vld [vmem:[%s1 + $0x74] sm:$0xf]
  %v47 = vld [vmem:[%s1 + $0x78] sm:$0xf]
  %v48 = vld [vmem:[%s1 + $0x7c] sm:$0xf]
  %v49 = vld [vmem:[%s1 + $0x80] sm:$0xf]
  %v50 = vld [vmem:[%s1 + $0x84] sm:$0xf]
  %v51 = vld [vmem:[%s1 + $0x88] sm:$0xf]
  %v52 = vld [vmem:[%s1 + $0x8c] sm:$0xf]
  %v53 = vld [vmem:[%s1 + $0x90] sm:$0xf]
  %v54 = vld [vmem:[%s1 + $0x94] sm:$0xf]
  %v55 = vld [vmem:[%s1 + $0x98] sm:$0xf]
  %v56 = vld [vmem:[%s1 + $0x9c] sm:$0xf]
  %v57 = vld [vmem:[%s1 + $0xa0] sm:$0xf]
  %v58 = vld [vmem:[%s1 + $0xa4] sm:$0xf]
  %v59 = vld [vmem:[%s1 + $0xa8] sm:$0xf]
  %v60 = vld [vmem:[%s1 + $0xac] sm:$0xf]
  %v61 = vld [vmem:[%s1 + $0xb0] sm:$0xf]
  %v62 = vld [vmem:[%s1 + $0xb4] sm:$0xf]
  %v63 = vld [vmem:[%s1 + $0xb8] sm:$0xf]
  %v64 = vld [vmem:[%s1 + $0xbc] sm:$0xf]
  %v65 = vld [vmem:[%s1 + $0xc0] sm:$0xf]
  %v66 = vld [vmem:[%s1 + $0xc4] sm:$0xf]
  %v67 = vld [vmem:[%s1 + $0xc8] sm:$0xf]
  %v68 = vld [vmem:[%s1 + $0xcc] sm:$0xf]
  %v69 = vld [vmem:[%s1 + $0xd0] sm:$0xf]
  %v70 = vld [vmem:[%s1 + $0xd4] sm:$0xf]
  %v71 = vld [vmem:[%s2] sm:$0x1]
  %v73 = vlaneseq
  %v74 = vshrl.u32 %v73, 7
  %v75 = vsub.s32 0, %v74
  %v76 = vrot.slane %v71, %v75
  %v80 = vunpack.c.l.b16 %v15
  %v81 = vunpack.c.h.b16 %v15
  %v82 = vunpack.c.l.b16 %v16
  %v83 = vunpack.c.h.b16 %v16
  %v84 = vpack.c.b16 %v80, %v80
  %v85 = vpack.c.b16 %v81, %v81
  %v86 = vpack.c.b16 %v82, %v82
  %v87 = vpack.c.b16 %v83, %v83
  %v145 = vunpack.c.l.b16 %v17
  %v146 = vunpack.c.l.b16 %v18
  %v147 = vunpack.c.l.b16 %v19
  %v148 = vunpack.c.l.b16 %v20
  %v149 = vunpack.c.l.b16 %v21
  %v150 = vunpack.c.l.b16 %v22
  %v151 = vunpack.c.l.b16 %v23
  %v152 = vunpack.c.l.b16 %v24
  %v153 = vunpack.c.l.b16 %v25
  %v154 = vunpack.c.l.b16 %v26
  %v155 = vunpack.c.l.b16 %v27
  %v156 = vunpack.c.l.b16 %v28
  %v157 = vunpack.c.l.b16 %v29
  %v158 = vunpack.c.l.b16 %v30
  %v159 = vunpack.c.l.b16 %v31
  %v160 = vunpack.c.l.b16 %v32
  %v161 = vunpack.c.l.b16 %v33
  %v162 = vunpack.c.l.b16 %v34
  %v163 = vunpack.c.l.b16 %v35
  %v164 = vunpack.c.l.b16 %v36
  %v165 = vunpack.c.l.b16 %v37
  %v166 = vunpack.c.l.b16 %v38
  %v167 = vunpack.c.l.b16 %v39
  %v168 = vunpack.c.l.b16 %v40
  %v169 = vunpack.c.l.b16 %v41
  %v170 = vunpack.c.l.b16 %v42
  %v171 = vunpack.c.l.b16 %v43
  %v172 = vunpack.c.l.b16 %v44
  %v173 = vunpack.c.l.b16 %v45
  %v174 = vunpack.c.l.b16 %v46
  %v175 = vunpack.c.l.b16 %v47
  %v176 = vunpack.c.l.b16 %v48
  %v177 = vunpack.c.l.b16 %v49
  %v178 = vunpack.c.l.b16 %v50
  %v179 = vunpack.c.l.b16 %v51
  %v180 = vunpack.c.l.b16 %v52
  %v181 = vunpack.c.l.b16 %v53
  %v182 = vunpack.c.l.b16 %v54
  %v183 = vunpack.c.l.b16 %v55
  %v184 = vunpack.c.l.b16 %v56
  %v185 = vunpack.c.l.b16 %v57
  %v186 = vunpack.c.l.b16 %v58
  %v187 = vunpack.c.l.b16 %v59
  %v188 = vunpack.c.l.b16 %v60
  %v189 = vunpack.c.l.b16 %v61
  %v190 = vunpack.c.l.b16 %v62
  %v191 = vunpack.c.l.b16 %v63
  %v192 = vunpack.c.l.b16 %v64
  %v193 = vunpack.c.l.b16 %v65
  %v194 = vunpack.c.l.b16 %v66
  %v195 = vunpack.c.l.b16 %v67
  %v196 = vunpack.c.l.b16 %v68
  %v197 = vunpack.c.l.b16 %v69
  %v198 = vunpack.c.l.b16 %v70
  %v199 = vpack.c.b16 %v146, %v145
  %v200 = vpack.c.b16 %v148, %v147
  %v201 = vpack.c.b16 %v150, %v149
  %v202 = vpack.c.b16 %v152, %v151
  %v203 = vpack.c.b16 %v154, %v153
  %v204 = vpack.c.b16 %v156, %v155
  %v205 = vpack.c.b16 %v158, %v157
  %v206 = vpack.c.b16 %v160, %v159
  %v207 = vpack.c.b16 %v162, %v161
  %v208 = vpack.c.b16 %v164, %v163
  %v209 = vpack.c.b16 %v166, %v165
  %v210 = vpack.c.b16 %v168, %v167
  %v211 = vpack.c.b16 %v170, %v169
  %v212 = vpack.c.b16 %v172, %v171
  %v213 = vpack.c.b16 %v174, %v173
  %v214 = vpack.c.b16 %v176, %v175
  %v215 = vpack.c.b16 %v178, %v177
  %v216 = vpack.c.b16 %v180, %v179
  %v217 = vpack.c.b16 %v182, %v181
  %v218 = vpack.c.b16 %v184, %v183
  %v219 = vpack.c.b16 %v186, %v185
  %v220 = vpack.c.b16 %v188, %v187
  %v221 = vpack.c.b16 %v190, %v189
  %v222 = vpack.c.b16 %v192, %v191
  %v223 = vpack.c.b16 %v194, %v193
  %v224 = vpack.c.b16 %v196, %v195
  %v225 = vpack.c.b16 %v198, %v197
  %vm253 = vcmask 392192
  %v255 = vsel %vm253, %v87, 0
  %257 = vmatprep.subr.bf16.mxu0 0
  %258 = vmatpush1.bf16.msra.mxu0 %v199
  %259 = vmatprep.subr.bf16.mxu0 0
  %260 = vmatpush1.bf16.msra.mxu0 %v200
  %261 = vmatprep.subr.bf16.mxu0 0
  %262 = vmatpush1.bf16.msra.mxu0 %v201
  %263 = vmatprep.subr.bf16.mxu0 0
  %264 = vmatpush1.bf16.msra.mxu0 %v202
  %265 = vmatprep.subr.bf16.mxu0 0
  %266 = vmatpush1.bf16.msra.mxu0 %v203
  %267 = vmatprep.subr.bf16.mxu0 0
  %268 = vmatpush1.bf16.msra.mxu0 %v204
  %269 = vmatprep.subr.bf16.mxu0 0
  %270 = vmatpush1.bf16.msra.mxu0 %v205
  %271 = vmatprep.subr.bf16.mxu0 0
  %272 = vmatpush1.bf16.msra.mxu0 %v206
  %273 = vmatprep.subr.bf16.mxu0 0
  %274 = vmatpush1.bf16.msra.mxu0 %v207
  %275 = vmatprep.subr.bf16.mxu0 0
  %276 = vmatpush1.bf16.msra.mxu0 %v208
  %277 = vmatprep.subr.bf16.mxu0 0
  %278 = vmatpush1.bf16.msra.mxu0 %v209
  %279 = vmatprep.subr.bf16.mxu0 0
  %280 = vmatpush1.bf16.msra.mxu0 %v210
  %281 = vmatprep.subr.bf16.mxu0 0
  %282 = vmatpush1.bf16.msra.mxu0 %v211
  %283 = vmatprep.subr.bf16.mxu0 0
  %284 = vmatpush1.bf16.msra.mxu0 %v212
  %285 = vmatprep.subr.bf16.mxu0 0
  %286 = vmatpush1.bf16.msra.mxu0 %v213
  %287 = vmatprep.subr.bf16.mxu0 0
  %288 = vmatpush1.bf16.msra.mxu0 %v214
  %289 = vmatprep.mubr.bf16.mxu0 %v85
  %290 = vmatmul.mubr.bf16.gmra.mrb[0].mxu0 %v84
  %v291 = vpop.f32.mrb[0].mxu0
  %v292 = vadd.f32 %v76, %v291
  %v293 = vpop.f32.mrb[0].mxu0
  %v294 = vpop.f32.mrb[0].mxu0
  %v295 = vpop.f32.mrb[0].mxu0
  %296 = vdwg.mxu0
  %297 = vmatprep.subr.bf16.mxu0 0
  %298 = vmatpush1.bf16.msra.mxu0 %v215
  %299 = vmatprep.subr.bf16.mxu0 0
  %300 = vmatpush1.bf16.msra.mxu0 %v216
  %301 = vmatprep.subr.bf16.mxu0 0
  %302 = vmatpush1.bf16.msra.mxu0 %v217
  %303 = vmatprep.subr.bf16.mxu0 0
  %304 = vmatpush1.bf16.msra.mxu0 %v218
  %305 = vmatprep.subr.bf16.mxu0 0
  %306 = vmatpush1.bf16.msra.mxu0 %v219
  %307 = vmatprep.subr.bf16.mxu0 0
  %308 = vmatpush1.bf16.msra.mxu0 %v220
  %309 = vmatprep.subr.bf16.mxu0 0
  %310 = vmatpush1.bf16.msra.mxu0 %v221
  %311 = vmatprep.subr.bf16.mxu0 0
  %312 = vmatpush1.bf16.msra.mxu0 %v222
  %313 = vmatprep.subr.bf16.mxu0 0
  %314 = vmatpush1.bf16.msra.mxu0 %v223
  %315 = vmatprep.subr.bf16.mxu0 0
  %316 = vmatpush1.bf16.msra.mxu0 %v224
  %317 = vmatprep.subr.bf16.mxu0 0
  %318 = vmatpush1.bf16.msra.mxu0 %v225
  %319 = vmatprep.subr.bf16.mxu0 0
  %320 = vmatpush1.bf16.msra.mxu0 0
  %321 = vmatprep.subr.bf16.mxu0 0
  %322 = vmatpush1.bf16.msra.mxu0 0
  %323 = vmatprep.subr.bf16.mxu0 0
  %324 = vmatpush1.bf16.msra.mxu0 0
  %325 = vmatprep.subr.bf16.mxu0 0
  %326 = vmatpush1.bf16.msra.mxu0 0
  %327 = vmatprep.subr.bf16.mxu0 0
  %328 = vmatpush1.bf16.msra.mxu0 0
  %329 = vmatprep.mubr.bf16.mxu0 %v255
  %330 = vmatmul.mubr.bf16.gmra.mrb[0].mxu0 %v86
  %v331 = vpop.f32.mrb[0].mxu0
  %v332 = vadd.f32 %v292, %v331
  %v333 = vpop.f32.mrb[0].mxu0
  %v334 = vpop.f32.mrb[0].mxu0
  %v335 = vpop.f32.mrb[0].mxu0
  %336 = vdwg.mxu0
  %v337 = vmax.f32 %v332, 0.0
  %v338 = vpack.c.bf16 %v337, %v337
  %vm339 = vcmask 388096
  %340 = vst.msk [vmem:[%s3] sm:$0xf] %vm339, %v338
  // Predicated region
  $region14: #{faceboxes_forward.16} parent=0 // pred_check
    _
  $region15: #{faceboxes_forward.16} parent=0 // pred_check_branch
    %342 = sbr.rel (0) target = $region17
  $region16: #{faceboxes_forward.16} parent=0 // pred_region
    _
  $region17: #{faceboxes_forward.16} parent=0 // pred_fallthru
    _
  // Predicated region
  $region18: #{faceboxes_forward.16} parent=0 // pred_check
    _
  $region19: #{faceboxes_forward.16} parent=0 // pred_check_branch
    %344 = sbr.rel (0) target = $region21
  $region20: #{faceboxes_forward.16} parent=0 // pred_region
    _
  $region21: #{faceboxes_forward.16} parent=0 // pred_fallthru
    _

// kernel: faceboxes_forward.17
$region0: #{faceboxes_forward.17}
  #allocation0 [shape = 'u32[]', space=smem, size = 0x4, offset = 0x4, fixed_abs, tag = 'smem constant byte address 0x4 - core index']
  #allocation1 [shape = 'u32[144,128]{1,0:T(1,128)}', space=vmem, size = 0x12000, scoped, tag = 'internal scratch']
  %s0 = inlined_call_operand.vmem [shape: bf16[8,216], index: 0, kind: input, shape index: {}]
  %s1 = inlined_call_operand.vmem [shape: bf16[216,24], index: 1, kind: input, shape index: {}]
  %s2 = inlined_call_operand.vmem [shape: f32[1,24], index: 2, kind: input, shape index: {}]
  %s3 = inlined_call_operand.vmem [shape: bf16[8,24], index: 3, kind: output, shape index: {}]
  %s4 = sld [smem:[#allocation0]]
  $region22: #{faceboxes_forward.17} parent=0
    _
  %s6 = ssub.s32 1, %s4
  %s7 = scalar_select 0, %s6, %s4
  // Predicated region
  $region2: #{faceboxes_forward.17} parent=0 // pred_check
    _
  $region3: #{faceboxes_forward.17} parent=0 // pred_check_branch
    %9 = sbr.rel (0) target = $region5
  $region4: #{faceboxes_forward.17} parent=0 // pred_region
    _
  $region5: #{faceboxes_forward.17} parent=0 // pred_fallthru
    _
  // Predicated region
  $region6: #{faceboxes_forward.17} parent=0 // pred_check
    _
  $region7: #{faceboxes_forward.17} parent=0 // pred_check_branch
    %11 = sbr.rel (0) target = $region9
  $region8: #{faceboxes_forward.17} parent=0 // pred_region
    _
  $region9: #{faceboxes_forward.17} parent=0 // pred_fallthru
    _
  // Predicated region
  $region10: #{faceboxes_forward.17} parent=0 // pred_check
    _
  $region11: #{faceboxes_forward.17} parent=0 // pred_check_branch
    %13 = sbr.rel (0) target = $region13
  $region12: #{faceboxes_forward.17} parent=0 // pred_region
    _
  $region13: #{faceboxes_forward.17} parent=0 // pred_fallthru
    _
  %v15 = vld [vmem:[%s0] sm:$0xff]
  %v16 = vld [vmem:[%s1] sm:$0xf]
  %v17 = vld [vmem:[%s1 + $0x4] sm:$0xf]
  %v18 = vld [vmem:[%s1 + $0x8] sm:$0xf]
  %v19 = vld [vmem:[%s1 + $0xc] sm:$0xf]
  %v20 = vld [vmem:[%s1 + $0x10] sm:$0xf]
  %v21 = vld [vmem:[%s1 + $0x14] sm:$0xf]
  %v22 = vld [vmem:[%s1 + $0x18] sm:$0xf]
  %v23 = vld [vmem:[%s1 + $0x1c] sm:$0xf]
  %v24 = vld [vmem:[%s1 + $0x20] sm:$0xf]
  %v25 = vld [vmem:[%s1 + $0x24] sm:$0xf]
  %v26 = vld [vmem:[%s1 + $0x28] sm:$0xf]
  %v27 = vld [vmem:[%s1 + $0x2c] sm:$0xf]
  %v28 = vld [vmem:[%s1 + $0x30] sm:$0xf]
  %v29 = vld [vmem:[%s1 + $0x34] sm:$0xf]
  %v30 = vld [vmem:[%s1 + $0x38] sm:$0xf]
  %v31 = vld [vmem:[%s1 + $0x3c] sm:$0xf]
  %v32 = vld [vmem:[%s1 + $0x40] sm:$0xf]
  %v33 = vld [vmem:[%s1 + $0x44] sm:$0xf]
  %v34 = vld [vmem:[%s1 + $0x48] sm:$0xf]
  %v35 = vld [vmem:[%s1 + $0x4c] sm:$0xf]
  %v36 = vld [vmem:[%s1 + $0x50] sm:$0xf]
  %v37 = vld [vmem:[%s1 + $0x54] sm:$0xf]
  %v38 = vld [vmem:[%s1 + $0x58] sm:$0xf]
  %v39 = vld [vmem:[%s1 + $0x5c] sm:$0xf]
  %v40 = vld [vmem:[%s1 + $0x60] sm:$0xf]
  %v41 = vld [vmem:[%s1 + $0x64] sm:$0xf]
  %v42 = vld [vmem:[%s1 + $0x68] sm:$0xf]
  %v43 = vld [vmem:[%s2] sm:$0x1]
  %v45 = vlaneseq
  %v46 = vshrl.u32 %v45, 7
  %v47 = vsub.s32 0, %v46
  %v48 = vrot.slane %v43, %v47
  %v51 = vunpack.c.l.b16 %v15
  %v52 = vunpack.c.h.b16 %v15
  %v53 = vpack.c.b16 %v51, %v51
  %v54 = vpack.c.b16 %v52, %v52
  %v83 = vunpack.c.l.b16 %v16
  %v84 = vunpack.c.l.b16 %v17
  %v85 = vunpack.c.l.b16 %v18
  %v86 = vunpack.c.l.b16 %v19
  %v87 = vunpack.c.l.b16 %v20
  %v88 = vunpack.c.l.b16 %v21
  %v89 = vunpack.c.l.b16 %v22
  %v90 = vunpack.c.l.b16 %v23
  %v91 = vunpack.c.l.b16 %v24
  %v92 = vunpack.c.l.b16 %v25
  %v93 = vunpack.c.l.b16 %v26
  %v94 = vunpack.c.l.b16 %v27
  %v95 = vunpack.c.l.b16 %v28
  %v96 = vunpack.c.l.b16 %v29
  %v97 = vunpack.c.l.b16 %v30
  %v98 = vunpack.c.l.b16 %v31
  %v99 = vunpack.c.l.b16 %v32
  %v100 = vunpack.c.l.b16 %v33
  %v101 = vunpack.c.l.b16 %v34
  %v102 = vunpack.c.l.b16 %v35
  %v103 = vunpack.c.l.b16 %v36
  %v104 = vunpack.c.l.b16 %v37
  %v105 = vunpack.c.l.b16 %v38
  %v106 = vunpack.c.l.b16 %v39
  %v107 = vunpack.c.l.b16 %v40
  %v108 = vunpack.c.l.b16 %v41
  %v109 = vunpack.c.l.b16 %v42
  %v110 = vpack.c.b16 %v84, %v83
  %v111 = vpack.c.b16 %v86, %v85
  %v112 = vpack.c.b16 %v88, %v87
  %v113 = vpack.c.b16 %v90, %v89
  %v114 = vpack.c.b16 %v92, %v91
  %v115 = vpack.c.b16 %v94, %v93
  %v116 = vpack.c.b16 %v96, %v95
  %v117 = vpack.c.b16 %v98, %v97
  %v118 = vpack.c.b16 %v100, %v99
  %v119 = vpack.c.b16 %v102, %v101
  %v120 = vpack.c.b16 %v104, %v103
  %v121 = vpack.c.b16 %v106, %v105
  %v122 = vpack.c.b16 %v108, %v107
  %v123 = vpack.c.b16 %v109, %v109
  %vm137 = vcmask 719872
  %v139 = vsel %vm137, %v54, 0
  %vm141 = vcmask 1043456
  %v143 = vsel %vm141, %v123, 0
  %145 = vmatprep.subr.bf16.mxu0 0
  %146 = vmatpush1.bf16.msra.mxu0 %v110
  %147 = vmatprep.subr.bf16.mxu0 0
  %148 = vmatpush1.bf16.msra.mxu0 %v111
  %149 = vmatprep.subr.bf16.mxu0 0
  %150 = vmatpush1.bf16.msra.mxu0 %v112
  %151 = vmatprep.subr.bf16.mxu0 0
  %152 = vmatpush1.bf16.msra.mxu0 %v113
  %153 = vmatprep.subr.bf16.mxu0 0
  %154 = vmatpush1.bf16.msra.mxu0 %v114
  %155 = vmatprep.subr.bf16.mxu0 0
  %156 = vmatpush1.bf16.msra.mxu0 %v115
  %157 = vmatprep.subr.bf16.mxu0 0
  %158 = vmatpush1.bf16.msra.mxu0 %v116
  %159 = vmatprep.subr.bf16.mxu0 0
  %160 = vmatpush1.bf16.msra.mxu0 %v117
  %161 = vmatprep.subr.bf16.mxu0 0
  %162 = vmatpush1.bf16.msra.mxu0 %v118
  %163 = vmatprep.subr.bf16.mxu0 0
  %164 = vmatpush1.bf16.msra.mxu0 %v119
  %165 = vmatprep.subr.bf16.mxu0 0
  %166 = vmatpush1.bf16.msra.mxu0 %v120
  %167 = vmatprep.subr.bf16.mxu0 0
  %168 = vmatpush1.bf16.msra.mxu0 %v121
  %169 = vmatprep.subr.bf16.mxu0 0
  %170 = vmatpush1.bf16.msra.mxu0 %v122
  %171 = vmatprep.subr.bf16.mxu0 0
  %172 = vmatpush1.bf16.msra.mxu0 %v143
  %173 = vmatprep.subr.bf16.mxu0 0
  %174 = vmatpush1.bf16.msra.mxu0 0
  %175 = vmatprep.subr.bf16.mxu0 0
  %176 = vmatpush1.bf16.msra.mxu0 0
  %177 = vmatprep.mubr.bf16.mxu0 %v139
  %178 = vmatmul.mubr.bf16.gmra.mrb[0].mxu0 %v53
  %v179 = vpop.f32.mrb[0].mxu0
  %v180 = vadd.f32 %v48, %v179
  %v181 = vpop.f32.mrb[0].mxu0
  %v182 = vpop.f32.mrb[0].mxu0
  %v183 = vpop.f32.mrb[0].mxu0
  %184 = vdwg.mxu0
  %v185 = vmax.f32 %v180, 0.0
  %v186 = vpack.c.bf16 %v185, %v185
  %vm187 = vcmask 191488
  %188 = vst.msk [vmem:[%s3] sm:$0xf] %vm187, %v186
  // Predicated region
  $region14: #{faceboxes_forward.17} parent=0 // pred_check
    _
  $region15: #{faceboxes_forward.17} parent=0 // pred_check_branch
    %190 = sbr.rel (0) target = $region17
  $region16: #{faceboxes_forward.17} parent=0 // pred_region
    _
  $region17: #{faceboxes_forward.17} parent=0 // pred_fallthru
    _
  // Predicated region
  $region18: #{faceboxes_forward.17} parent=0 // pred_check
    _
  $region19: #{faceboxes_forward.17} parent=0 // pred_check_branch
    %192 = sbr.rel (0) target = $region21
  $region20: #{faceboxes_forward.17} parent=0 // pred_region
    _
  $region21: #{faceboxes_forward.17} parent=0 // pred_fallthru
    _

// kernel: faceboxes_forward.18
$region0: #{faceboxes_forward.18}
  #allocation0 [shape = 'u32[]', space=smem, size = 0x4, offset = 0x4, fixed_abs, tag = 'smem constant byte address 0x4 - core index']
  #allocation1 [shape = 'u32[144,128]{1,0:T(1,128)}', space=vmem, size = 0x12000, scoped, tag = 'internal scratch']
  %s0 = inlined_call_operand.vmem [shape: bf16[2,864], index: 0, kind: input, shape index: {}]
  %s1 = inlined_call_operand.vmem [shape: bf16[864,96], index: 1, kind: input, shape index: {}]
  %s2 = inlined_call_operand.vmem [shape: f32[1,96], index: 2, kind: input, shape index: {}]
  %s3 = inlined_call_operand.vmem [shape: bf16[2,96], index: 3, kind: output, shape index: {}]
  %s4 = sld [smem:[#allocation0]]
  $region22: #{faceboxes_forward.18} parent=0
    _
  %s6 = ssub.s32 1, %s4
  %s7 = scalar_select 0, %s6, %s4
  // Predicated region
  $region2: #{faceboxes_forward.18} parent=0 // pred_check
    _
  $region3: #{faceboxes_forward.18} parent=0 // pred_check_branch
    %9 = sbr.rel (0) target = $region5
  $region4: #{faceboxes_forward.18} parent=0 // pred_region
    _
  $region5: #{faceboxes_forward.18} parent=0 // pred_fallthru
    _
  // Predicated region
  $region6: #{faceboxes_forward.18} parent=0 // pred_check
    _
  $region7: #{faceboxes_forward.18} parent=0 // pred_check_branch
    %11 = sbr.rel (0) target = $region9
  $region8: #{faceboxes_forward.18} parent=0 // pred_region
    _
  $region9: #{faceboxes_forward.18} parent=0 // pred_fallthru
    _
  // Predicated region
  $region10: #{faceboxes_forward.18} parent=0 // pred_check
    _
  $region11: #{faceboxes_forward.18} parent=0 // pred_check_branch
    %13 = sbr.rel (0) target = $region13
  $region12: #{faceboxes_forward.18} parent=0 // pred_region
    _
  $region13: #{faceboxes_forward.18} parent=0 // pred_fallthru
    _
  %v15 = vld [vmem:[%s0] sm:$0x7f]
  %v16 = vld [vmem:[%s1] sm:$0xf]
  %v17 = vld [vmem:[%s1 + $0x4] sm:$0xf]
  %v18 = vld [vmem:[%s1 + $0x8] sm:$0xf]
  %v19 = vld [vmem:[%s1 + $0xc] sm:$0xf]
  %v20 = vld [vmem:[%s1 + $0x10] sm:$0xf]
  %v21 = vld [vmem:[%s1 + $0x14] sm:$0xf]
  %v22 = vld [vmem:[%s1 + $0x18] sm:$0xf]
  %v23 = vld [vmem:[%s1 + $0x1c] sm:$0xf]
  %v24 = vld [vmem:[%s1 + $0x20] sm:$0xf]
  %v25 = vld [vmem:[%s1 + $0x24] sm:$0xf]
  %v26 = vld [vmem:[%s1 + $0x28] sm:$0xf]
  %v27 = vld [vmem:[%s1 + $0x2c] sm:$0xf]
  %v28 = vld [vmem:[%s1 + $0x30] sm:$0xf]
  %v29 = vld [vmem:[%s1 + $0x34] sm:$0xf]
  %v30 = vld [vmem:[%s1 + $0x38] sm:$0xf]
  %v31 = vld [vmem:[%s1 + $0x3c] sm:$0xf]
  %v32 = vld [vmem:[%s1 + $0x40] sm:$0xf]
  %v33 = vld [vmem:[%s1 + $0x44] sm:$0xf]
  %v34 = vld [vmem:[%s1 + $0x48] sm:$0xf]
  %v35 = vld [vmem:[%s1 + $0x4c] sm:$0xf]
  %v36 = vld [vmem:[%s1 + $0x50] sm:$0xf]
  %v37 = vld [vmem:[%s1 + $0x54] sm:$0xf]
  %v38 = vld [vmem:[%s1 + $0x58] sm:$0xf]
  %v39 = vld [vmem:[%s1 + $0x5c] sm:$0xf]
  %v40 = vld [vmem:[%s1 + $0x60] sm:$0xf]
  %v41 = vld [vmem:[%s1 + $0x64] sm:$0xf]
  %v42 = vld [vmem:[%s1 + $0x68] sm:$0xf]
  %v43 = vld [vmem:[%s1 + $0x6c] sm:$0xf]
  %v44 = vld [vmem:[%s1 + $0x70] sm:$0xf]
  %v45 = vld [vmem:[%s1 + $0x74] sm:$0xf]
  %v46 = vld [vmem:[%s1 + $0x78] sm:$0xf]
  %v47 = vld [vmem:[%s1 + $0x7c] sm:$0xf]
  %v48 = vld [vmem:[%s1 + $0x80] sm:$0xf]
  %v49 = vld [vmem:[%s1 + $0x84] sm:$0xf]
  %v50 = vld [vmem:[%s1 + $0x88] sm:$0xf]
  %v51 = vld [vmem:[%s1 + $0x8c] sm:$0xf]
  %v52 = vld [vmem:[%s1 + $0x90] sm:$0xf]
  %v53 = vld [vmem:[%s1 + $0x94] sm:$0xf]
  %v54 = vld [vmem:[%s1 + $0x98] sm:$0xf]
  %v55 = vld [vmem:[%s1 + $0x9c] sm:$0xf]
  %v56 = vld [vmem:[%s1 + $0xa0] sm:$0xf]
  %v57 = vld [vmem:[%s1 + $0xa4] sm:$0xf]
  %v58 = vld [vmem:[%s1 + $0xa8] sm:$0xf]
  %v59 = vld [vmem:[%s1 + $0xac] sm:$0xf]
  %v60 = vld [vmem:[%s1 + $0xb0] sm:$0xf]
  %v61 = vld [vmem:[%s1 + $0xb4] sm:$0xf]
  %v62 = vld [vmem:[%s1 + $0xb8] sm:$0xf]
  %v63 = vld [vmem:[%s1 + $0xbc] sm:$0xf]
  %v64 = vld [vmem:[%s1 + $0xc0] sm:$0xf]
  %v65 = vld [vmem:[%s1 + $0xc4] sm:$0xf]
  %v66 = vld [vmem:[%s1 + $0xc8] sm:$0xf]
  %v67 = vld [vmem:[%s1 + $0xcc] sm:$0xf]
  %v68 = vld [vmem:[%s1 + $0xd0] sm:$0xf]
  %v69 = vld [vmem:[%s1 + $0xd4] sm:$0xf]
  %v70 = vld [vmem:[%s1 + $0xd8] sm:$0xf]
  %v71 = vld [vmem:[%s1 + $0xdc] sm:$0xf]
  %v72 = vld [vmem:[%s1 + $0xe0] sm:$0xf]
  %v73 = vld [vmem:[%s1 + $0xe4] sm:$0xf]
  %v74 = vld [vmem:[%s1 + $0xe8] sm:$0xf]
  %v75 = vld [vmem:[%s1 + $0xec] sm:$0xf]
  %v76 = vld [vmem:[%s1 + $0xf0] sm:$0xf]
  %v77 = vld [vmem:[%s1 + $0xf4] sm:$0xf]
  %v78 = vld [vmem:[%s1 + $0xf8] sm:$0xf]
  %v79 = vld [vmem:[%s1 + $0xfc] sm:$0xf]
  %v80 = vld [vmem:[%s1 + $0x100] sm:$0xf]
  %v81 = vld [vmem:[%s1 + $0x104] sm:$0xf]
  %v82 = vld [vmem:[%s1 + $0x108] sm:$0xf]
  %v83 = vld [vmem:[%s1 + $0x10c] sm:$0xf]
  %v84 = vld [vmem:[%s1 + $0x110] sm:$0xf]
  %v85 = vld [vmem:[%s1 + $0x114] sm:$0xf]
  %v86 = vld [vmem:[%s1 + $0x118] sm:$0xf]
  %v87 = vld [vmem:[%s1 + $0x11c] sm:$0xf]
  %v88 = vld [vmem:[%s1 + $0x120] sm:$0xf]
  %v89 = vld [vmem:[%s1 + $0x124] sm:$0xf]
  %v90 = vld [vmem:[%s1 + $0x128] sm:$0xf]
  %v91 = vld [vmem:[%s1 + $0x12c] sm:$0xf]
  %v92 = vld [vmem:[%s1 + $0x130] sm:$0xf]
  %v93 = vld [vmem:[%s1 + $0x134] sm:$0xf]
  %v94 = vld [vmem:[%s1 + $0x138] sm:$0xf]
  %v95 = vld [vmem:[%s1 + $0x13c] sm:$0xf]
  %v96 = vld [vmem:[%s1 + $0x140] sm:$0xf]
  %v97 = vld [vmem:[%s1 + $0x144] sm:$0xf]
  %v98 = vld [vmem:[%s1 + $0x148] sm:$0xf]
  %v99 = vld [vmem:[%s1 + $0x14c] sm:$0xf]
  %v100 = vld [vmem:[%s1 + $0x150] sm:$0xf]
  %v101 = vld [vmem:[%s1 + $0x154] sm:$0xf]
  %v102 = vld [vmem:[%s1 + $0x158] sm:$0xf]
  %v103 = vld [vmem:[%s1 + $0x15c] sm:$0xf]
  %v104 = vld [vmem:[%s1 + $0x160] sm:$0xf]
  %v105 = vld [vmem:[%s1 + $0x164] sm:$0xf]
  %v106 = vld [vmem:[%s1 + $0x168] sm:$0xf]
  %v107 = vld [vmem:[%s1 + $0x16c] sm:$0xf]
  %v108 = vld [vmem:[%s1 + $0x170] sm:$0xf]
  %v109 = vld [vmem:[%s1 + $0x174] sm:$0xf]
  %v110 = vld [vmem:[%s1 + $0x178] sm:$0xf]
  %v111 = vld [vmem:[%s1 + $0x17c] sm:$0xf]
  %v112 = vld [vmem:[%s1 + $0x180] sm:$0xf]
  %v113 = vld [vmem:[%s1 + $0x184] sm:$0xf]
  %v114 = vld [vmem:[%s1 + $0x188] sm:$0xf]
  %v115 = vld [vmem:[%s1 + $0x18c] sm:$0xf]
  %v116 = vld [vmem:[%s1 + $0x190] sm:$0xf]
  %v117 = vld [vmem:[%s1 + $0x194] sm:$0xf]
  %v118 = vld [vmem:[%s1 + $0x198] sm:$0xf]
  %v119 = vld [vmem:[%s1 + $0x19c] sm:$0xf]
  %v120 = vld [vmem:[%s1 + $0x1a0] sm:$0xf]
  %v121 = vld [vmem:[%s1 + $0x1a4] sm:$0xf]
  %v122 = vld [vmem:[%s1 + $0x1a8] sm:$0xf]
  %v123 = vld [vmem:[%s1 + $0x1ac] sm:$0xf]
  %v124 = vld [vmem:[%s2] sm:$0x1]
  %v126 = vlaneseq
  %v127 = vshrl.u32 %v126, 7
  %v128 = vsub.s32 0, %v127
  %v129 = vrot.slane %v124, %v128
  %v132 = vcombine.high %v15, %v15
  %v134 = vunpack.c.l.s4 1966171168
  %v135 = vunpack.c.0.s8 %v134
  %v136 = vlaneseq
  %v137 = vshrl.u32 %v136, 7
  %v138 = vsub.s32 %v135, %v137
  %v139 = vrot.slane %v15, %v138
  %v141 = vunpack.c.l.s4 1966171168
  %v142 = vunpack.c.0.s8 %v141
  %v143 = vlaneseq
  %v144 = vshrl.u32 %v143, 7
  %v145 = vsub.s32 %v142, %v144
  %v146 = vrot.slane %v132, %v145
  %v147 = vcombine.high %v139, %v139
  %v148 = vcombine.high %v146, %v146
  %v150 = vunpack.c.l.s4 1966171168
  %v151 = vunpack.c.0.s8 %v150
  %v152 = vlaneseq
  %v153 = vshrl.u32 %v152, 7
  %v154 = vsub.s32 %v151, %v153
  %v155 = vrot.slane %v139, %v154
  %v157 = vunpack.c.l.s4 1966171168
  %v158 = vunpack.c.0.s8 %v157
  %v159 = vlaneseq
  %v160 = vshrl.u32 %v159, 7
  %v161 = vsub.s32 %v158, %v160
  %v162 = vrot.slane %v146, %v161
  %v164 = vunpack.c.l.s4 1966171168
  %v165 = vunpack.c.0.s8 %v164
  %v166 = vlaneseq
  %v167 = vshrl.u32 %v166, 7
  %v168 = vsub.s32 %v165, %v167
  %v169 = vrot.slane %v147, %v168
  %v171 = vunpack.c.l.s4 1966171168
  %v172 = vunpack.c.0.s8 %v171
  %v173 = vlaneseq
  %v174 = vshrl.u32 %v173, 7
  %v175 = vsub.s32 %v172, %v174
  %v176 = vrot.slane %v148, %v175
  %v177 = vcombine.high %v155, %v155
  %v178 = vcombine.high %v162, %v162
  %v179 = vcombine.high %v169, %v169
  %v294 = vunpack.c.l.b16 %v16
  %v295 = vunpack.c.l.b16 %v17
  %v296 = vunpack.c.l.b16 %v18
  %v297 = vunpack.c.l.b16 %v19
  %v298 = vunpack.c.l.b16 %v20
  %v299 = vunpack.c.l.b16 %v21
  %v300 = vunpack.c.l.b16 %v22
  %v301 = vunpack.c.l.b16 %v23
  %v302 = vunpack.c.l.b16 %v24
  %v303 = vunpack.c.l.b16 %v25
  %v304 = vunpack.c.l.b16 %v26
  %v305 = vunpack.c.l.b16 %v27
  %v306 = vunpack.c.l.b16 %v28
  %v307 = vunpack.c.l.b16 %v29
  %v308 = vunpack.c.l.b16 %v30
  %v309 = vunpack.c.l.b16 %v31
  %v310 = vunpack.c.l.b16 %v32
  %v311 = vunpack.c.l.b16 %v33
  %v312 = vunpack.c.l.b16 %v34
  %v313 = vunpack.c.l.b16 %v35
  %v314 = vunpack.c.l.b16 %v36
  %v315 = vunpack.c.l.b16 %v37
  %v316 = vunpack.c.l.b16 %v38
  %v317 = vunpack.c.l.b16 %v39
  %v318 = vunpack.c.l.b16 %v40
  %v319 = vunpack.c.l.b16 %v41
  %v320 = vunpack.c.l.b16 %v42
  %v321 = vunpack.c.l.b16 %v43
  %v322 = vunpack.c.l.b16 %v44
  %v323 = vunpack.c.l.b16 %v45
  %v324 = vunpack.c.l.b16 %v46
  %v325 = vunpack.c.l.b16 %v47
  %v326 = vunpack.c.l.b16 %v48
  %v327 = vunpack.c.l.b16 %v49
  %v328 = vunpack.c.l.b16 %v50
  %v329 = vunpack.c.l.b16 %v51
  %v330 = vunpack.c.l.b16 %v52
  %v331 = vunpack.c.l.b16 %v53
  %v332 = vunpack.c.l.b16 %v54
  %v333 = vunpack.c.l.b16 %v55
  %v334 = vunpack.c.l.b16 %v56
  %v335 = vunpack.c.l.b16 %v57
  %v336 = vunpack.c.l.b16 %v58
  %v337 = vunpack.c.l.b16 %v59
  %v338 = vunpack.c.l.b16 %v60
  %v339 = vunpack.c.l.b16 %v61
  %v340 = vunpack.c.l.b16 %v62
  %v341 = vunpack.c.l.b16 %v63
  %v342 = vunpack.c.l.b16 %v64
  %v343 = vunpack.c.l.b16 %v65
  %v344 = vunpack.c.l.b16 %v66
  %v345 = vunpack.c.l.b16 %v67
  %v346 = vunpack.c.l.b16 %v68
  %v347 = vunpack.c.l.b16 %v69
  %v348 = vunpack.c.l.b16 %v70
  %v349 = vunpack.c.l.b16 %v71
  %v350 = vunpack.c.l.b16 %v72
  %v351 = vunpack.c.l.b16 %v73
  %v352 = vunpack.c.l.b16 %v74
  %v353 = vunpack.c.l.b16 %v75
  %v354 = vunpack.c.l.b16 %v76
  %v355 = vunpack.c.l.b16 %v77
  %v356 = vunpack.c.l.b16 %v78
  %v357 = vunpack.c.l.b16 %v79
  %v358 = vunpack.c.l.b16 %v80
  %v359 = vunpack.c.l.b16 %v81
  %v360 = vunpack.c.l.b16 %v82
  %v361 = vunpack.c.l.b16 %v83
  %v362 = vunpack.c.l.b16 %v84
  %v363 = vunpack.c.l.b16 %v85
  %v364 = vunpack.c.l.b16 %v86
  %v365 = vunpack.c.l.b16 %v87
  %v366 = vunpack.c.l.b16 %v88
  %v367 = vunpack.c.l.b16 %v89
  %v368 = vunpack.c.l.b16 %v90
  %v369 = vunpack.c.l.b16 %v91
  %v370 = vunpack.c.l.b16 %v92
  %v371 = vunpack.c.l.b16 %v93
  %v372 = vunpack.c.l.b16 %v94
  %v373 = vunpack.c.l.b16 %v95
  %v374 = vunpack.c.l.b16 %v96
  %v375 = vunpack.c.l.b16 %v97
  %v376 = vunpack.c.l.b16 %v98
  %v377 = vunpack.c.l.b16 %v99
  %v378 = vunpack.c.l.b16 %v100
  %v379 = vunpack.c.l.b16 %v101
  %v380 = vunpack.c.l.b16 %v102
  %v381 = vunpack.c.l.b16 %v103
  %v382 = vunpack.c.l.b16 %v104
  %v383 = vunpack.c.l.b16 %v105
  %v384 = vunpack.c.l.b16 %v106
  %v385 = vunpack.c.l.b16 %v107
  %v386 = vunpack.c.l.b16 %v108
  %v387 = vunpack.c.l.b16 %v109
  %v388 = vunpack.c.l.b16 %v110
  %v389 = vunpack.c.l.b16 %v111
  %v390 = vunpack.c.l.b16 %v112
  %v391 = vunpack.c.l.b16 %v113
  %v392 = vunpack.c.l.b16 %v114
  %v393 = vunpack.c.l.b16 %v115
  %v394 = vunpack.c.l.b16 %v116
  %v395 = vunpack.c.l.b16 %v117
  %v396 = vunpack.c.l.b16 %v118
  %v397 = vunpack.c.l.b16 %v119
  %v398 = vunpack.c.l.b16 %v120
  %v399 = vunpack.c.l.b16 %v121
  %v400 = vunpack.c.l.b16 %v122
  %v401 = vunpack.c.l.b16 %v123
  %v402 = vpack.c.b16 %v295, %v294
  %v403 = vpack.c.b16 %v297, %v296
  %v404 = vpack.c.b16 %v299, %v298
  %v405 = vpack.c.b16 %v301, %v300
  %v406 = vpack.c.b16 %v303, %v302
  %v407 = vpack.c.b16 %v305, %v304
  %v408 = vpack.c.b16 %v307, %v306
  %v409 = vpack.c.b16 %v309, %v308
  %v410 = vpack.c.b16 %v311, %v310
  %v411 = vpack.c.b16 %v313, %v312
  %v412 = vpack.c.b16 %v315, %v314
  %v413 = vpack.c.b16 %v317, %v316
  %v414 = vpack.c.b16 %v319, %v318
  %v415 = vpack.c.b16 %v321, %v320
  %v416 = vpack.c.b16 %v323, %v322
  %v417 = vpack.c.b16 %v325, %v324
  %v418 = vpack.c.b16 %v327, %v326
  %v419 = vpack.c.b16 %v329, %v328
  %v420 = vpack.c.b16 %v331, %v330
  %v421 = vpack.c.b16 %v333, %v332
  %v422 = vpack.c.b16 %v335, %v334
  %v423 = vpack.c.b16 %v337, %v336
  %v424 = vpack.c.b16 %v339, %v338
  %v425 = vpack.c.b16 %v341, %v340
  %v426 = vpack.c.b16 %v343, %v342
  %v427 = vpack.c.b16 %v345, %v344
  %v428 = vpack.c.b16 %v347, %v346
  %v429 = vpack.c.b16 %v349, %v348
  %v430 = vpack.c.b16 %v351, %v350
  %v431 = vpack.c.b16 %v353, %v352
  %v432 = vpack.c.b16 %v355, %v354
  %v433 = vpack.c.b16 %v357, %v356
  %v434 = vpack.c.b16 %v359, %v358
  %v435 = vpack.c.b16 %v361, %v360
  %v436 = vpack.c.b16 %v363, %v362
  %v437 = vpack.c.b16 %v365, %v364
  %v438 = vpack.c.b16 %v367, %v366
  %v439 = vpack.c.b16 %v369, %v368
  %v440 = vpack.c.b16 %v371, %v370
  %v441 = vpack.c.b16 %v373, %v372
  %v442 = vpack.c.b16 %v375, %v374
  %v443 = vpack.c.b16 %v377, %v376
  %v444 = vpack.c.b16 %v379, %v378
  %v445 = vpack.c.b16 %v381, %v380
  %v446 = vpack.c.b16 %v383, %v382
  %v447 = vpack.c.b16 %v385, %v384
  %v448 = vpack.c.b16 %v387, %v386
  %v449 = vpack.c.b16 %v389, %v388
  %v450 = vpack.c.b16 %v391, %v390
  %v451 = vpack.c.b16 %v393, %v392
  %v452 = vpack.c.b16 %v395, %v394
  %v453 = vpack.c.b16 %v397, %v396
  %v454 = vpack.c.b16 %v399, %v398
  %v455 = vpack.c.b16 %v401, %v400
  %vm510 = vcmask 785408
  %v512 = vsel %vm510, %v178, 0
  %514 = vmatprep.subr.bf16.mxu0 0
  %515 = vmatpush1.bf16.msra.mxu0 %v402
  %516 = vmatprep.subr.bf16.mxu0 0
  %517 = vmatpush1.bf16.msra.mxu0 %v403
  %518 = vmatprep.subr.bf16.mxu0 0
  %519 = vmatpush1.bf16.msra.mxu0 %v404
  %520 = vmatprep.subr.bf16.mxu0 0
  %521 = vmatpush1.bf16.msra.mxu0 %v405
  %522 = vmatprep.subr.bf16.mxu0 0
  %523 = vmatpush1.bf16.msra.mxu0 %v406
  %524 = vmatprep.subr.bf16.mxu0 0
  %525 = vmatpush1.bf16.msra.mxu0 %v407
  %526 = vmatprep.subr.bf16.mxu0 0
  %527 = vmatpush1.bf16.msra.mxu0 %v408
  %528 = vmatprep.subr.bf16.mxu0 0
  %529 = vmatpush1.bf16.msra.mxu0 %v409
  %530 = vmatprep.subr.bf16.mxu0 0
  %531 = vmatpush1.bf16.msra.mxu0 %v410
  %532 = vmatprep.subr.bf16.mxu0 0
  %533 = vmatpush1.bf16.msra.mxu0 %v411
  %534 = vmatprep.subr.bf16.mxu0 0
  %535 = vmatpush1.bf16.msra.mxu0 %v412
  %536 = vmatprep.subr.bf16.mxu0 0
  %537 = vmatpush1.bf16.msra.mxu0 %v413
  %538 = vmatprep.subr.bf16.mxu0 0
  %539 = vmatpush1.bf16.msra.mxu0 %v414
  %540 = vmatprep.subr.bf16.mxu0 0
  %541 = vmatpush1.bf16.msra.mxu0 %v415
  %542 = vmatprep.subr.bf16.mxu0 0
  %543 = vmatpush1.bf16.msra.mxu0 %v416
  %544 = vmatprep.subr.bf16.mxu0 0
  %545 = vmatpush1.bf16.msra.mxu0 %v417
  %546 = vmatprep.mubr.bf16.mxu0 %v169
  %547 = vmatmul.mubr.bf16.gmra.mrb[0].mxu0 %v155
  %v548 = vpop.f32.mrb[0].mxu0
  %v549 = vadd.f32 %v129, %v548
  %v550 = vpop.f32.mrb[0].mxu0
  %v551 = vpop.f32.mrb[0].mxu0
  %v552 = vpop.f32.mrb[0].mxu0
  %553 = vdwg.mxu0
  %554 = vmatprep.subr.bf16.mxu0 0
  %555 = vmatpush1.bf16.msra.mxu0 %v418
  %556 = vmatprep.subr.bf16.mxu0 0
  %557 = vmatpush1.bf16.msra.mxu0 %v419
  %558 = vmatprep.subr.bf16.mxu0 0
  %559 = vmatpush1.bf16.msra.mxu0 %v420
  %560 = vmatprep.subr.bf16.mxu0 0
  %561 = vmatpush1.bf16.msra.mxu0 %v421
  %562 = vmatprep.subr.bf16.mxu0 0
  %563 = vmatpush1.bf16.msra.mxu0 %v422
  %564 = vmatprep.subr.bf16.mxu0 0
  %565 = vmatpush1.bf16.msra.mxu0 %v423
  %566 = vmatprep.subr.bf16.mxu0 0
  %567 = vmatpush1.bf16.msra.mxu0 %v424
  %568 = vmatprep.subr.bf16.mxu0 0
  %569 = vmatpush1.bf16.msra.mxu0 %v425
  %570 = vmatprep.subr.bf16.mxu0 0
  %571 = vmatpush1.bf16.msra.mxu0 %v426
  %572 = vmatprep.subr.bf16.mxu0 0
  %573 = vmatpush1.bf16.msra.mxu0 %v427
  %574 = vmatprep.subr.bf16.mxu0 0
  %575 = vmatpush1.bf16.msra.mxu0 %v428
  %576 = vmatprep.subr.bf16.mxu0 0
  %577 = vmatpush1.bf16.msra.mxu0 %v429
  %578 = vmatprep.subr.bf16.mxu0 0
  %579 = vmatpush1.bf16.msra.mxu0 %v430
  %580 = vmatprep.subr.bf16.mxu0 0
  %581 = vmatpush1.bf16.msra.mxu0 %v431
  %582 = vmatprep.subr.bf16.mxu0 0
  %583 = vmatpush1.bf16.msra.mxu0 %v432
  %584 = vmatprep.subr.bf16.mxu0 0
  %585 = vmatpush1.bf16.msra.mxu0 %v433
  %586 = vmatprep.mubr.bf16.mxu0 %v179
  %587 = vmatmul.mubr.bf16.gmra.mrb[0].mxu0 %v177
  %v588 = vpop.f32.mrb[0].mxu0
  %v589 = vadd.f32 %v549, %v588
  %v590 = vpop.f32.mrb[0].mxu0
  %v591 = vpop.f32.mrb[0].mxu0
  %v592 = vpop.f32.mrb[0].mxu0
  %593 = vdwg.mxu0
  %594 = vmatprep.subr.bf16.mxu0 0
  %595 = vmatpush1.bf16.msra.mxu0 %v434
  %596 = vmatprep.subr.bf16.mxu0 0
  %597 = vmatpush1.bf16.msra.mxu0 %v435
  %598 = vmatprep.subr.bf16.mxu0 0
  %599 = vmatpush1.bf16.msra.mxu0 %v436
  %600 = vmatprep.subr.bf16.mxu0 0
  %601 = vmatpush1.bf16.msra.mxu0 %v437
  %602 = vmatprep.subr.bf16.mxu0 0
  %603 = vmatpush1.bf16.msra.mxu0 %v438
  %604 = vmatprep.subr.bf16.mxu0 0
  %605 = vmatpush1.bf16.msra.mxu0 %v439
  %606 = vmatprep.subr.bf16.mxu0 0
  %607 = vmatpush1.bf16.msra.mxu0 %v440
  %608 = vmatprep.subr.bf16.mxu0 0
  %609 = vmatpush1.bf16.msra.mxu0 %v441
  %610 = vmatprep.subr.bf16.mxu0 0
  %611 = vmatpush1.bf16.msra.mxu0 %v442
  %612 = vmatprep.subr.bf16.mxu0 0
  %613 = vmatpush1.bf16.msra.mxu0 %v443
  %614 = vmatprep.subr.bf16.mxu0 0
  %615 = vmatpush1.bf16.msra.mxu0 %v444
  %616 = vmatprep.subr.bf16.mxu0 0
  %617 = vmatpush1.bf16.msra.mxu0 %v445
  %618 = vmatprep.subr.bf16.mxu0 0
  %619 = vmatpush1.bf16.msra.mxu0 %v446
  %620 = vmatprep.subr.bf16.mxu0 0
  %621 = vmatpush1.bf16.msra.mxu0 %v447
  %622 = vmatprep.subr.bf16.mxu0 0
  %623 = vmatpush1.bf16.msra.mxu0 %v448
  %624 = vmatprep.subr.bf16.mxu0 0
  %625 = vmatpush1.bf16.msra.mxu0 %v449
  %626 = vmatprep.mubr.bf16.mxu0 %v176
  %627 = vmatmul.mubr.bf16.gmra.mrb[0].mxu0 %v162
  %v628 = vpop.f32.mrb[0].mxu0
  %v629 = vadd.f32 %v589, %v628
  %v630 = vpop.f32.mrb[0].mxu0
  %v631 = vpop.f32.mrb[0].mxu0
  %v632 = vpop.f32.mrb[0].mxu0
  %633 = vdwg.mxu0
  %634 = vmatprep.subr.bf16.mxu0 0
  %635 = vmatpush1.bf16.msra.mxu0 %v450
  %636 = vmatprep.subr.bf16.mxu0 0
  %637 = vmatpush1.bf16.msra.mxu0 %v451
  %638 = vmatprep.subr.bf16.mxu0 0
  %639 = vmatpush1.bf16.msra.mxu0 %v452
  %640 = vmatprep.subr.bf16.mxu0 0
  %641 = vmatpush1.bf16.msra.mxu0 %v453
  %642 = vmatprep.subr.bf16.mxu0 0
  %643 = vmatpush1.bf16.msra.mxu0 %v454
  %644 = vmatprep.subr.bf16.mxu0 0
  %645 = vmatpush1.bf16.msra.mxu0 %v455
  %646 = vmatprep.subr.bf16.mxu0 0
  %647 = vmatpush1.bf16.msra.mxu0 0
  %648 = vmatprep.subr.bf16.mxu0 0
  %649 = vmatpush1.bf16.msra.mxu0 0
  %650 = vmatprep.subr.bf16.mxu0 0
  %651 = vmatpush1.bf16.msra.mxu0 0
  %652 = vmatprep.subr.bf16.mxu0 0
  %653 = vmatpush1.bf16.msra.mxu0 0
  %654 = vmatprep.subr.bf16.mxu0 0
  %655 = vmatpush1.bf16.msra.mxu0 0
  %656 = vmatprep.subr.bf16.mxu0 0
  %657 = vmatpush1.bf16.msra.mxu0 0
  %658 = vmatprep.subr.bf16.mxu0 0
  %659 = vmatpush1.bf16.msra.mxu0 0
  %660 = vmatprep.subr.bf16.mxu0 0
  %661 = vmatpush1.bf16.msra.mxu0 0
  %662 = vmatprep.subr.bf16.mxu0 0
  %663 = vmatpush1.bf16.msra.mxu0 0
  %664 = vmatprep.subr.bf16.mxu0 0
  %665 = vmatpush1.bf16.msra.mxu0 0
  %666 = vmatprep.mubr.bf16.mxu0 0
  %667 = vmatmul.mubr.bf16.gmra.mrb[0].mxu0 %v512
  %v668 = vpop.f32.mrb[0].mxu0
  %v669 = vadd.f32 %v629, %v668
  %v670 = vpop.f32.mrb[0].mxu0
  %v671 = vpop.f32.mrb[0].mxu0
  %v672 = vpop.f32.mrb[0].mxu0
  %673 = vdwg.mxu0
  %v674 = vmax.f32 %v669, 0.0
  %v675 = vpack.c.bf16 %v674, %v674
  %vm676 = vcmask 778240
  %677 = vst.msk [vmem:[%s3] sm:$0x1] %vm676, %v675
  // Predicated region
  $region14: #{faceboxes_forward.18} parent=0 // pred_check
    _
  $region15: #{faceboxes_forward.18} parent=0 // pred_check_branch
    %679 = sbr.rel (0) target = $region17
  $region16: #{faceboxes_forward.18} parent=0 // pred_region
    _
  $region17: #{faceboxes_forward.18} parent=0 // pred_fallthru
    _
  // Predicated region
  $region18: #{faceboxes_forward.18} parent=0 // pred_check
    _
  $region19: #{faceboxes_forward.18} parent=0 // pred_check_branch
    %681 = sbr.rel (0) target = $region21
  $region20: #{faceboxes_forward.18} parent=0 // pred_region
    _
  $region21: #{faceboxes_forward.18} parent=0 // pred_fallthru
    _

// kernel: faceboxes_forward.21
$region0: #{faceboxes_forward.21}
  #allocation0 [shape = 'u32[]', space=smem, size = 0x4, offset = 0x4, fixed_abs, tag = 'smem constant byte address 0x4 - core index']
  #allocation1 [shape = 'u32[144,128]{1,0:T(1,128)}', space=vmem, size = 0x12000, scoped, tag = 'internal scratch']
  %s0 = inlined_call_operand.vmem [shape: bf16[2,216], index: 0, kind: input, shape index: {}]
  %s1 = inlined_call_operand.vmem [shape: bf16[216,24], index: 1, kind: input, shape index: {}]
  %s2 = inlined_call_operand.vmem [shape: f32[1,24], index: 2, kind: input, shape index: {}]
  %s3 = inlined_call_operand.vmem [shape: bf16[2,24], index: 3, kind: output, shape index: {}]
  %s4 = sld [smem:[#allocation0]]
  $region22: #{faceboxes_forward.21} parent=0
    _
  %s6 = ssub.s32 1, %s4
  %s7 = scalar_select 0, %s6, %s4
  // Predicated region
  $region2: #{faceboxes_forward.21} parent=0 // pred_check
    _
  $region3: #{faceboxes_forward.21} parent=0 // pred_check_branch
    %9 = sbr.rel (0) target = $region5
  $region4: #{faceboxes_forward.21} parent=0 // pred_region
    _
  $region5: #{faceboxes_forward.21} parent=0 // pred_fallthru
    _
  // Predicated region
  $region6: #{faceboxes_forward.21} parent=0 // pred_check
    _
  $region7: #{faceboxes_forward.21} parent=0 // pred_check_branch
    %11 = sbr.rel (0) target = $region9
  $region8: #{faceboxes_forward.21} parent=0 // pred_region
    _
  $region9: #{faceboxes_forward.21} parent=0 // pred_fallthru
    _
  // Predicated region
  $region10: #{faceboxes_forward.21} parent=0 // pred_check
    _
  $region11: #{faceboxes_forward.21} parent=0 // pred_check_branch
    %13 = sbr.rel (0) target = $region13
  $region12: #{faceboxes_forward.21} parent=0 // pred_region
    _
  $region13: #{faceboxes_forward.21} parent=0 // pred_fallthru
    _
  %v15 = vld [vmem:[%s0] sm:$0x3]
  %v16 = vld [vmem:[%s1] sm:$0xf]
  %v17 = vld [vmem:[%s1 + $0x4] sm:$0xf]
  %v18 = vld [vmem:[%s1 + $0x8] sm:$0xf]
  %v19 = vld [vmem:[%s1 + $0xc] sm:$0xf]
  %v20 = vld [vmem:[%s1 + $0x10] sm:$0xf]
  %v21 = vld [vmem:[%s1 + $0x14] sm:$0xf]
  %v22 = vld [vmem:[%s1 + $0x18] sm:$0xf]
  %v23 = vld [vmem:[%s1 + $0x1c] sm:$0xf]
  %v24 = vld [vmem:[%s1 + $0x20] sm:$0xf]
  %v25 = vld [vmem:[%s1 + $0x24] sm:$0xf]
  %v26 = vld [vmem:[%s1 + $0x28] sm:$0xf]
  %v27 = vld [vmem:[%s1 + $0x2c] sm:$0xf]
  %v28 = vld [vmem:[%s1 + $0x30] sm:$0xf]
  %v29 = vld [vmem:[%s1 + $0x34] sm:$0xf]
  %v30 = vld [vmem:[%s1 + $0x38] sm:$0xf]
  %v31 = vld [vmem:[%s1 + $0x3c] sm:$0xf]
  %v32 = vld [vmem:[%s1 + $0x40] sm:$0xf]
  %v33 = vld [vmem:[%s1 + $0x44] sm:$0xf]
  %v34 = vld [vmem:[%s1 + $0x48] sm:$0xf]
  %v35 = vld [vmem:[%s1 + $0x4c] sm:$0xf]
  %v36 = vld [vmem:[%s1 + $0x50] sm:$0xf]
  %v37 = vld [vmem:[%s1 + $0x54] sm:$0xf]
  %v38 = vld [vmem:[%s1 + $0x58] sm:$0xf]
  %v39 = vld [vmem:[%s1 + $0x5c] sm:$0xf]
  %v40 = vld [vmem:[%s1 + $0x60] sm:$0xf]
  %v41 = vld [vmem:[%s1 + $0x64] sm:$0xf]
  %v42 = vld [vmem:[%s1 + $0x68] sm:$0xf]
  %v43 = vld [vmem:[%s2] sm:$0x1]
  %v45 = vlaneseq
  %v46 = vshrl.u32 %v45, 7
  %v47 = vsub.s32 0, %v46
  %v48 = vrot.slane %v43, %v47
  %v52 = vunpack.c.l.s4 1966171168
  %v53 = vunpack.c.0.s8 %v52
  %v54 = vlaneseq
  %v55 = vshrl.u32 %v54, 7
  %v56 = vsub.s32 %v53, %v55
  %v57 = vrot.slane %v15, %v56
  %v58 = vcombine.high %v57, %v57
  %v60 = vunpack.c.l.s4 1966171168
  %v61 = vunpack.c.0.s8 %v60
  %v62 = vlaneseq
  %v63 = vshrl.u32 %v62, 7
  %v64 = vsub.s32 %v61, %v63
  %v65 = vrot.slane %v57, %v64
  %v67 = vunpack.c.l.s4 1966171168
  %v68 = vunpack.c.0.s8 %v67
  %v69 = vlaneseq
  %v70 = vshrl.u32 %v69, 7
  %v71 = vsub.s32 %v68, %v70
  %v72 = vrot.slane %v58, %v71
  %v101 = vunpack.c.l.b16 %v16
  %v102 = vunpack.c.l.b16 %v17
  %v103 = vunpack.c.l.b16 %v18
  %v104 = vunpack.c.l.b16 %v19
  %v105 = vunpack.c.l.b16 %v20
  %v106 = vunpack.c.l.b16 %v21
  %v107 = vunpack.c.l.b16 %v22
  %v108 = vunpack.c.l.b16 %v23
  %v109 = vunpack.c.l.b16 %v24
  %v110 = vunpack.c.l.b16 %v25
  %v111 = vunpack.c.l.b16 %v26
  %v112 = vunpack.c.l.b16 %v27
  %v113 = vunpack.c.l.b16 %v28
  %v114 = vunpack.c.l.b16 %v29
  %v115 = vunpack.c.l.b16 %v30
  %v116 = vunpack.c.l.b16 %v31
  %v117 = vunpack.c.l.b16 %v32
  %v118 = vunpack.c.l.b16 %v33
  %v119 = vunpack.c.l.b16 %v34
  %v120 = vunpack.c.l.b16 %v35
  %v121 = vunpack.c.l.b16 %v36
  %v122 = vunpack.c.l.b16 %v37
  %v123 = vunpack.c.l.b16 %v38
  %v124 = vunpack.c.l.b16 %v39
  %v125 = vunpack.c.l.b16 %v40
  %v126 = vunpack.c.l.b16 %v41
  %v127 = vunpack.c.l.b16 %v42
  %v128 = vpack.c.b16 %v102, %v101
  %v129 = vpack.c.b16 %v104, %v103
  %v130 = vpack.c.b16 %v106, %v105
  %v131 = vpack.c.b16 %v108, %v107
  %v132 = vpack.c.b16 %v110, %v109
  %v133 = vpack.c.b16 %v112, %v111
  %v134 = vpack.c.b16 %v114, %v113
  %v135 = vpack.c.b16 %v116, %v115
  %v136 = vpack.c.b16 %v118, %v117
  %v137 = vpack.c.b16 %v120, %v119
  %v138 = vpack.c.b16 %v122, %v121
  %v139 = vpack.c.b16 %v124, %v123
  %v140 = vpack.c.b16 %v126, %v125
  %v141 = vpack.c.b16 %v127, %v127
  %vm155 = vcmask 719872
  %v157 = vsel %vm155, %v72, 0
  %vm159 = vcmask 1043456
  %v161 = vsel %vm159, %v141, 0
  %163 = vmatprep.subr.bf16.mxu0 0
  %164 = vmatpush1.bf16.msra.mxu0 %v128
  %165 = vmatprep.subr.bf16.mxu0 0
  %166 = vmatpush1.bf16.msra.mxu0 %v129
  %167 = vmatprep.subr.bf16.mxu0 0
  %168 = vmatpush1.bf16.msra.mxu0 %v130
  %169 = vmatprep.subr.bf16.mxu0 0
  %170 = vmatpush1.bf16.msra.mxu0 %v131
  %171 = vmatprep.subr.bf16.mxu0 0
  %172 = vmatpush1.bf16.msra.mxu0 %v132
  %173 = vmatprep.subr.bf16.mxu0 0
  %174 = vmatpush1.bf16.msra.mxu0 %v133
  %175 = vmatprep.subr.bf16.mxu0 0
  %176 = vmatpush1.bf16.msra.mxu0 %v134
  %177 = vmatprep.subr.bf16.mxu0 0
  %178 = vmatpush1.bf16.msra.mxu0 %v135
  %179 = vmatprep.subr.bf16.mxu0 0
  %180 = vmatpush1.bf16.msra.mxu0 %v136
  %181 = vmatprep.subr.bf16.mxu0 0
  %182 = vmatpush1.bf16.msra.mxu0 %v137
  %183 = vmatprep.subr.bf16.mxu0 0
  %184 = vmatpush1.bf16.msra.mxu0 %v138
  %185 = vmatprep.subr.bf16.mxu0 0
  %186 = vmatpush1.bf16.msra.mxu0 %v139
  %187 = vmatprep.subr.bf16.mxu0 0
  %188 = vmatpush1.bf16.msra.mxu0 %v140
  %189 = vmatprep.subr.bf16.mxu0 0
  %190 = vmatpush1.bf16.msra.mxu0 %v161
  %191 = vmatprep.subr.bf16.mxu0 0
  %192 = vmatpush1.bf16.msra.mxu0 0
  %193 = vmatprep.subr.bf16.mxu0 0
  %194 = vmatpush1.bf16.msra.mxu0 0
  %195 = vmatprep.mubr.bf16.mxu0 %v157
  %196 = vmatmul.mubr.bf16.gmra.mrb[0].mxu0 %v65
  %v197 = vpop.f32.mrb[0].mxu0
  %v198 = vadd.f32 %v48, %v197
  %v199 = vpop.f32.mrb[0].mxu0
  %v200 = vpop.f32.mrb[0].mxu0
  %v201 = vpop.f32.mrb[0].mxu0
  %202 = vdwg.mxu0
  %v203 = vmax.f32 %v198, 0.0
  %v204 = vpack.c.bf16 %v203, %v203
  %vm205 = vcmask 188416
  %206 = vst.msk [vmem:[%s3] sm:$0x1] %vm205, %v204
  // Predicated region
  $region14: #{faceboxes_forward.21} parent=0 // pred_check
    _
  $region15: #{faceboxes_forward.21} parent=0 // pred_check_branch
    %208 = sbr.rel (0) target = $region17
  $region16: #{faceboxes_forward.21} parent=0 // pred_region
    _
  $region17: #{faceboxes_forward.21} parent=0 // pred_fallthru
    _
  // Predicated region
  $region18: #{faceboxes_forward.21} parent=0 // pred_check
    _
  $region19: #{faceboxes_forward.21} parent=0 // pred_check_branch
    %210 = sbr.rel (0) target = $region21
  $region20: #{faceboxes_forward.21} parent=0 // pred_region
    _
  $region21: #{faceboxes_forward.21} parent=0 // pred_fallthru
    _

// kernel: faceboxes_forward.20
$region0: #{faceboxes_forward.20}
  #allocation0 [shape = 'u32[]', space=smem, size = 0x4, offset = 0x4, fixed_abs, tag = 'smem constant byte address 0x4 - core index']
  #allocation1 [shape = 'u32[144,128]{1,0:T(1,128)}', space=vmem, size = 0x12000, scoped, tag = 'internal scratch']
  %s0 = inlined_call_operand.vmem [shape: bf16[2,432], index: 0, kind: input, shape index: {}]
  %s1 = inlined_call_operand.vmem [shape: bf16[432,48], index: 1, kind: input, shape index: {}]
  %s2 = inlined_call_operand.vmem [shape: f32[1,48], index: 2, kind: input, shape index: {}]
  %s3 = inlined_call_operand.vmem [shape: bf16[2,48], index: 3, kind: output, shape index: {}]
  %s4 = sld [smem:[#allocation0]]
  $region22: #{faceboxes_forward.20} parent=0
    _
  %s6 = ssub.s32 1, %s4
  %s7 = scalar_select 0, %s6, %s4
  // Predicated region
  $region2: #{faceboxes_forward.20} parent=0 // pred_check
    _
  $region3: #{faceboxes_forward.20} parent=0 // pred_check_branch
    %9 = sbr.rel (0) target = $region5
  $region4: #{faceboxes_forward.20} parent=0 // pred_region
    _
  $region5: #{faceboxes_forward.20} parent=0 // pred_fallthru
    _
  // Predicated region
  $region6: #{faceboxes_forward.20} parent=0 // pred_check
    _
  $region7: #{faceboxes_forward.20} parent=0 // pred_check_branch
    %11 = sbr.rel (0) target = $region9
  $region8: #{faceboxes_forward.20} parent=0 // pred_region
    _
  $region9: #{faceboxes_forward.20} parent=0 // pred_fallthru
    _
  // Predicated region
  $region10: #{faceboxes_forward.20} parent=0 // pred_check
    _
  $region11: #{faceboxes_forward.20} parent=0 // pred_check_branch
    %13 = sbr.rel (0) target = $region13
  $region12: #{faceboxes_forward.20} parent=0 // pred_region
    _
  $region13: #{faceboxes_forward.20} parent=0 // pred_fallthru
    _
  %v15 = vld [vmem:[%s0] sm:$0xf]
  %v16 = vld [vmem:[%s1] sm:$0xf]
  %v17 = vld [vmem:[%s1 + $0x4] sm:$0xf]
  %v18 = vld [vmem:[%s1 + $0x8] sm:$0xf]
  %v19 = vld [vmem:[%s1 + $0xc] sm:$0xf]
  %v20 = vld [vmem:[%s1 + $0x10] sm:$0xf]
  %v21 = vld [vmem:[%s1 + $0x14] sm:$0xf]
  %v22 = vld [vmem:[%s1 + $0x18] sm:$0xf]
  %v23 = vld [vmem:[%s1 + $0x1c] sm:$0xf]
  %v24 = vld [vmem:[%s1 + $0x20] sm:$0xf]
  %v25 = vld [vmem:[%s1 + $0x24] sm:$0xf]
  %v26 = vld [vmem:[%s1 + $0x28] sm:$0xf]
  %v27 = vld [vmem:[%s1 + $0x2c] sm:$0xf]
  %v28 = vld [vmem:[%s1 + $0x30] sm:$0xf]
  %v29 = vld [vmem:[%s1 + $0x34] sm:$0xf]
  %v30 = vld [vmem:[%s1 + $0x38] sm:$0xf]
  %v31 = vld [vmem:[%s1 + $0x3c] sm:$0xf]
  %v32 = vld [vmem:[%s1 + $0x40] sm:$0xf]
  %v33 = vld [vmem:[%s1 + $0x44] sm:$0xf]
  %v34 = vld [vmem:[%s1 + $0x48] sm:$0xf]
  %v35 = vld [vmem:[%s1 + $0x4c] sm:$0xf]
  %v36 = vld [vmem:[%s1 + $0x50] sm:$0xf]
  %v37 = vld [vmem:[%s1 + $0x54] sm:$0xf]
  %v38 = vld [vmem:[%s1 + $0x58] sm:$0xf]
  %v39 = vld [vmem:[%s1 + $0x5c] sm:$0xf]
  %v40 = vld [vmem:[%s1 + $0x60] sm:$0xf]
  %v41 = vld [vmem:[%s1 + $0x64] sm:$0xf]
  %v42 = vld [vmem:[%s1 + $0x68] sm:$0xf]
  %v43 = vld [vmem:[%s1 + $0x6c] sm:$0xf]
  %v44 = vld [vmem:[%s1 + $0x70] sm:$0xf]
  %v45 = vld [vmem:[%s1 + $0x74] sm:$0xf]
  %v46 = vld [vmem:[%s1 + $0x78] sm:$0xf]
  %v47 = vld [vmem:[%s1 + $0x7c] sm:$0xf]
  %v48 = vld [vmem:[%s1 + $0x80] sm:$0xf]
  %v49 = vld [vmem:[%s1 + $0x84] sm:$0xf]
  %v50 = vld [vmem:[%s1 + $0x88] sm:$0xf]
  %v51 = vld [vmem:[%s1 + $0x8c] sm:$0xf]
  %v52 = vld [vmem:[%s1 + $0x90] sm:$0xf]
  %v53 = vld [vmem:[%s1 + $0x94] sm:$0xf]
  %v54 = vld [vmem:[%s1 + $0x98] sm:$0xf]
  %v55 = vld [vmem:[%s1 + $0x9c] sm:$0xf]
  %v56 = vld [vmem:[%s1 + $0xa0] sm:$0xf]
  %v57 = vld [vmem:[%s1 + $0xa4] sm:$0xf]
  %v58 = vld [vmem:[%s1 + $0xa8] sm:$0xf]
  %v59 = vld [vmem:[%s1 + $0xac] sm:$0xf]
  %v60 = vld [vmem:[%s1 + $0xb0] sm:$0xf]
  %v61 = vld [vmem:[%s1 + $0xb4] sm:$0xf]
  %v62 = vld [vmem:[%s1 + $0xb8] sm:$0xf]
  %v63 = vld [vmem:[%s1 + $0xbc] sm:$0xf]
  %v64 = vld [vmem:[%s1 + $0xc0] sm:$0xf]
  %v65 = vld [vmem:[%s1 + $0xc4] sm:$0xf]
  %v66 = vld [vmem:[%s1 + $0xc8] sm:$0xf]
  %v67 = vld [vmem:[%s1 + $0xcc] sm:$0xf]
  %v68 = vld [vmem:[%s1 + $0xd0] sm:$0xf]
  %v69 = vld [vmem:[%s1 + $0xd4] sm:$0xf]
  %v70 = vld [vmem:[%s2] sm:$0x1]
  %v72 = vlaneseq
  %v73 = vshrl.u32 %v72, 7
  %v74 = vsub.s32 0, %v73
  %v75 = vrot.slane %v70, %v74
  %v79 = vunpack.c.l.s4 1966171168
  %v80 = vunpack.c.0.s8 %v79
  %v81 = vlaneseq
  %v82 = vshrl.u32 %v81, 7
  %v83 = vsub.s32 %v80, %v82
  %v84 = vrot.slane %v15, %v83
  %v85 = vcombine.high %v84, %v84
  %v87 = vunpack.c.l.s4 1966171168
  %v88 = vunpack.c.0.s8 %v87
  %v89 = vlaneseq
  %v90 = vshrl.u32 %v89, 7
  %v91 = vsub.s32 %v88, %v90
  %v92 = vrot.slane %v84, %v91
  %v94 = vunpack.c.l.s4 1966171168
  %v95 = vunpack.c.0.s8 %v94
  %v96 = vlaneseq
  %v97 = vshrl.u32 %v96, 7
  %v98 = vsub.s32 %v95, %v97
  %v99 = vrot.slane %v85, %v98
  %v100 = vcombine.high %v92, %v92
  %v101 = vcombine.high %v99, %v99
  %v159 = vunpack.c.l.b16 %v16
  %v160 = vunpack.c.l.b16 %v17
  %v161 = vunpack.c.l.b16 %v18
  %v162 = vunpack.c.l.b16 %v19
  %v163 = vunpack.c.l.b16 %v20
  %v164 = vunpack.c.l.b16 %v21
  %v165 = vunpack.c.l.b16 %v22
  %v166 = vunpack.c.l.b16 %v23
  %v167 = vunpack.c.l.b16 %v24
  %v168 = vunpack.c.l.b16 %v25
  %v169 = vunpack.c.l.b16 %v26
  %v170 = vunpack.c.l.b16 %v27
  %v171 = vunpack.c.l.b16 %v28
  %v172 = vunpack.c.l.b16 %v29
  %v173 = vunpack.c.l.b16 %v30
  %v174 = vunpack.c.l.b16 %v31
  %v175 = vunpack.c.l.b16 %v32
  %v176 = vunpack.c.l.b16 %v33
  %v177 = vunpack.c.l.b16 %v34
  %v178 = vunpack.c.l.b16 %v35
  %v179 = vunpack.c.l.b16 %v36
  %v180 = vunpack.c.l.b16 %v37
  %v181 = vunpack.c.l.b16 %v38
  %v182 = vunpack.c.l.b16 %v39
  %v183 = vunpack.c.l.b16 %v40
  %v184 = vunpack.c.l.b16 %v41
  %v185 = vunpack.c.l.b16 %v42
  %v186 = vunpack.c.l.b16 %v43
  %v187 = vunpack.c.l.b16 %v44
  %v188 = vunpack.c.l.b16 %v45
  %v189 = vunpack.c.l.b16 %v46
  %v190 = vunpack.c.l.b16 %v47
  %v191 = vunpack.c.l.b16 %v48
  %v192 = vunpack.c.l.b16 %v49
  %v193 = vunpack.c.l.b16 %v50
  %v194 = vunpack.c.l.b16 %v51
  %v195 = vunpack.c.l.b16 %v52
  %v196 = vunpack.c.l.b16 %v53
  %v197 = vunpack.c.l.b16 %v54
  %v198 = vunpack.c.l.b16 %v55
  %v199 = vunpack.c.l.b16 %v56
  %v200 = vunpack.c.l.b16 %v57
  %v201 = vunpack.c.l.b16 %v58
  %v202 = vunpack.c.l.b16 %v59
  %v203 = vunpack.c.l.b16 %v60
  %v204 = vunpack.c.l.b16 %v61
  %v205 = vunpack.c.l.b16 %v62
  %v206 = vunpack.c.l.b16 %v63
  %v207 = vunpack.c.l.b16 %v64
  %v208 = vunpack.c.l.b16 %v65
  %v209 = vunpack.c.l.b16 %v66
  %v210 = vunpack.c.l.b16 %v67
  %v211 = vunpack.c.l.b16 %v68
  %v212 = vunpack.c.l.b16 %v69
  %v213 = vpack.c.b16 %v160, %v159
  %v214 = vpack.c.b16 %v162, %v161
  %v215 = vpack.c.b16 %v164, %v163
  %v216 = vpack.c.b16 %v166, %v165
  %v217 = vpack.c.b16 %v168, %v167
  %v218 = vpack.c.b16 %v170, %v169
  %v219 = vpack.c.b16 %v172, %v171
  %v220 = vpack.c.b16 %v174, %v173
  %v221 = vpack.c.b16 %v176, %v175
  %v222 = vpack.c.b16 %v178, %v177
  %v223 = vpack.c.b16 %v180, %v179
  %v224 = vpack.c.b16 %v182, %v181
  %v225 = vpack.c.b16 %v184, %v183
  %v226 = vpack.c.b16 %v186, %v185
  %v227 = vpack.c.b16 %v188, %v187
  %v228 = vpack.c.b16 %v190, %v189
  %v229 = vpack.c.b16 %v192, %v191
  %v230 = vpack.c.b16 %v194, %v193
  %v231 = vpack.c.b16 %v196, %v195
  %v232 = vpack.c.b16 %v198, %v197
  %v233 = vpack.c.b16 %v200, %v199
  %v234 = vpack.c.b16 %v202, %v201
  %v235 = vpack.c.b16 %v204, %v203
  %v236 = vpack.c.b16 %v206, %v205
  %v237 = vpack.c.b16 %v208, %v207
  %v238 = vpack.c.b16 %v210, %v209
  %v239 = vpack.c.b16 %v212, %v211
  %vm267 = vcmask 392192
  %v269 = vsel %vm267, %v101, 0
  %271 = vmatprep.subr.bf16.mxu0 0
  %272 = vmatpush1.bf16.msra.mxu0 %v213
  %273 = vmatprep.subr.bf16.mxu0 0
  %274 = vmatpush1.bf16.msra.mxu0 %v214
  %275 = vmatprep.subr.bf16.mxu0 0
  %276 = vmatpush1.bf16.msra.mxu0 %v215
  %277 = vmatprep.subr.bf16.mxu0 0
  %278 = vmatpush1.bf16.msra.mxu0 %v216
  %279 = vmatprep.subr.bf16.mxu0 0
  %280 = vmatpush1.bf16.msra.mxu0 %v217
  %281 = vmatprep.subr.bf16.mxu0 0
  %282 = vmatpush1.bf16.msra.mxu0 %v218
  %283 = vmatprep.subr.bf16.mxu0 0
  %284 = vmatpush1.bf16.msra.mxu0 %v219
  %285 = vmatprep.subr.bf16.mxu0 0
  %286 = vmatpush1.bf16.msra.mxu0 %v220
  %287 = vmatprep.subr.bf16.mxu0 0
  %288 = vmatpush1.bf16.msra.mxu0 %v221
  %289 = vmatprep.subr.bf16.mxu0 0
  %290 = vmatpush1.bf16.msra.mxu0 %v222
  %291 = vmatprep.subr.bf16.mxu0 0
  %292 = vmatpush1.bf16.msra.mxu0 %v223
  %293 = vmatprep.subr.bf16.mxu0 0
  %294 = vmatpush1.bf16.msra.mxu0 %v224
  %295 = vmatprep.subr.bf16.mxu0 0
  %296 = vmatpush1.bf16.msra.mxu0 %v225
  %297 = vmatprep.subr.bf16.mxu0 0
  %298 = vmatpush1.bf16.msra.mxu0 %v226
  %299 = vmatprep.subr.bf16.mxu0 0
  %300 = vmatpush1.bf16.msra.mxu0 %v227
  %301 = vmatprep.subr.bf16.mxu0 0
  %302 = vmatpush1.bf16.msra.mxu0 %v228
  %303 = vmatprep.mubr.bf16.mxu0 %v99
  %304 = vmatmul.mubr.bf16.gmra.mrb[0].mxu0 %v92
  %v305 = vpop.f32.mrb[0].mxu0
  %v306 = vadd.f32 %v75, %v305
  %v307 = vpop.f32.mrb[0].mxu0
  %v308 = vpop.f32.mrb[0].mxu0
  %v309 = vpop.f32.mrb[0].mxu0
  %310 = vdwg.mxu0
  %311 = vmatprep.subr.bf16.mxu0 0
  %312 = vmatpush1.bf16.msra.mxu0 %v229
  %313 = vmatprep.subr.bf16.mxu0 0
  %314 = vmatpush1.bf16.msra.mxu0 %v230
  %315 = vmatprep.subr.bf16.mxu0 0
  %316 = vmatpush1.bf16.msra.mxu0 %v231
  %317 = vmatprep.subr.bf16.mxu0 0
  %318 = vmatpush1.bf16.msra.mxu0 %v232
  %319 = vmatprep.subr.bf16.mxu0 0
  %320 = vmatpush1.bf16.msra.mxu0 %v233
  %321 = vmatprep.subr.bf16.mxu0 0
  %322 = vmatpush1.bf16.msra.mxu0 %v234
  %323 = vmatprep.subr.bf16.mxu0 0
  %324 = vmatpush1.bf16.msra.mxu0 %v235
  %325 = vmatprep.subr.bf16.mxu0 0
  %326 = vmatpush1.bf16.msra.mxu0 %v236
  %327 = vmatprep.subr.bf16.mxu0 0
  %328 = vmatpush1.bf16.msra.mxu0 %v237
  %329 = vmatprep.subr.bf16.mxu0 0
  %330 = vmatpush1.bf16.msra.mxu0 %v238
  %331 = vmatprep.subr.bf16.mxu0 0
  %332 = vmatpush1.bf16.msra.mxu0 %v239
  %333 = vmatprep.subr.bf16.mxu0 0
  %334 = vmatpush1.bf16.msra.mxu0 0
  %335 = vmatprep.subr.bf16.mxu0 0
  %336 = vmatpush1.bf16.msra.mxu0 0
  %337 = vmatprep.subr.bf16.mxu0 0
  %338 = vmatpush1.bf16.msra.mxu0 0
  %339 = vmatprep.subr.bf16.mxu0 0
  %340 = vmatpush1.bf16.msra.mxu0 0
  %341 = vmatprep.subr.bf16.mxu0 0
  %342 = vmatpush1.bf16.msra.mxu0 0
  %343 = vmatprep.mubr.bf16.mxu0 %v269
  %344 = vmatmul.mubr.bf16.gmra.mrb[0].mxu0 %v100
  %v345 = vpop.f32.mrb[0].mxu0
  %v346 = vadd.f32 %v306, %v345
  %v347 = vpop.f32.mrb[0].mxu0
  %v348 = vpop.f32.mrb[0].mxu0
  %v349 = vpop.f32.mrb[0].mxu0
  %350 = vdwg.mxu0
  %v351 = vmax.f32 %v346, 0.0
  %v352 = vpack.c.bf16 %v351, %v351
  %vm353 = vcmask 385024
  %354 = vst.msk [vmem:[%s3] sm:$0x1] %vm353, %v352
  // Predicated region
  $region14: #{faceboxes_forward.20} parent=0 // pred_check
    _
  $region15: #{faceboxes_forward.20} parent=0 // pred_check_branch
    %356 = sbr.rel (0) target = $region17
  $region16: #{faceboxes_forward.20} parent=0 // pred_region
    _
  $region17: #{faceboxes_forward.20} parent=0 // pred_fallthru
    _
  // Predicated region
  $region18: #{faceboxes_forward.20} parent=0 // pred_check
    _
  $region19: #{faceboxes_forward.20} parent=0 // pred_check_branch
    %358 = sbr.rel (0) target = $region21
  $region20: #{faceboxes_forward.20} parent=0 // pred_region
    _
  $region21: #{faceboxes_forward.20} parent=0 // pred_fallthru
    _

// kernel: faceboxes_forward.23
$region0: #{faceboxes_forward.23}
  #allocation0 [shape = 'u32[]', space=smem, size = 0x4, offset = 0x4, fixed_abs, tag = 'smem constant byte address 0x4 - core index']
  #allocation1 [shape = 'u32[144,128]{1,0:T(1,128)}', space=vmem, size = 0x12000, scoped, tag = 'internal scratch']
  %s0 = inlined_call_operand.vmem [shape: bf16[12,864], index: 0, kind: input, shape index: {}]
  %s1 = inlined_call_operand.vmem [shape: bf16[864,144], index: 1, kind: input, shape index: {}]
  %s2 = inlined_call_operand.vmem [shape: f32[1,144], index: 2, kind: input, shape index: {}]
  %s3 = inlined_call_operand.vmem [shape: bf16[12,144], index: 3, kind: output, shape index: {}]
  %s4 = sld [smem:[#allocation0]]
  $region22: #{faceboxes_forward.23} parent=0
    _
  %s6 = ssub.s32 1, %s4
  %s7 = scalar_select 0, %s6, %s4
  // Predicated region
  $region2: #{faceboxes_forward.23} parent=0 // pred_check
    _
  $region3: #{faceboxes_forward.23} parent=0 // pred_check_branch
    %9 = sbr.rel (0) target = $region5
  $region4: #{faceboxes_forward.23} parent=0 // pred_region
    _
  $region5: #{faceboxes_forward.23} parent=0 // pred_fallthru
    _
  // Predicated region
  $region6: #{faceboxes_forward.23} parent=0 // pred_check
    _
  $region7: #{faceboxes_forward.23} parent=0 // pred_check_branch
    %11 = sbr.rel (0) target = $region9
  $region8: #{faceboxes_forward.23} parent=0 // pred_region
    _
  $region9: #{faceboxes_forward.23} parent=0 // pred_fallthru
    _
  // Predicated region
  $region10: #{faceboxes_forward.23} parent=0 // pred_check
    _
  $region11: #{faceboxes_forward.23} parent=0 // pred_check_branch
    %13 = sbr.rel (0) target = $region13
  $region12: #{faceboxes_forward.23} parent=0 // pred_region
    _
  $region13: #{faceboxes_forward.23} parent=0 // pred_fallthru
    _
  %v15 = vld [vmem:[%s0] sm:$0xff]
  %v16 = vld [vmem:[%s0 + $0x8] sm:$0xff]
  %v17 = vld [vmem:[%s0 + $0x10] sm:$0xff]
  %v18 = vld [vmem:[%s0 + $0x18] sm:$0xf]
  %v19 = vld [vmem:[%s0 + $0x1c] sm:$0x33]
  %v20 = vld [vmem:[%s0 + $0x24] sm:$0x33]
  %v21 = vld [vmem:[%s0 + $0x2c] sm:$0x33]
  %v22 = vld [vmem:[%s0 + $0x34] sm:$0x3]
  %v23 = vld [vmem:[%s1] sm:$0xff]
  %v24 = vld [vmem:[%s1 + $0x8] sm:$0xff]
  %v25 = vld [vmem:[%s1 + $0x10] sm:$0xff]
  %v26 = vld [vmem:[%s1 + $0x18] sm:$0xff]
  %v27 = vld [vmem:[%s1 + $0x20] sm:$0xff]
  %v28 = vld [vmem:[%s1 + $0x28] sm:$0xff]
  %v29 = vld [vmem:[%s1 + $0x30] sm:$0xff]
  %v30 = vld [vmem:[%s1 + $0x38] sm:$0xff]
  %v31 = vld [vmem:[%s1 + $0x40] sm:$0xff]
  %v32 = vld [vmem:[%s1 + $0x48] sm:$0xff]
  %v33 = vld [vmem:[%s1 + $0x50] sm:$0xff]
  %v34 = vld [vmem:[%s1 + $0x58] sm:$0xff]
  %v35 = vld [vmem:[%s1 + $0x60] sm:$0xff]
  %v36 = vld [vmem:[%s1 + $0x68] sm:$0xff]
  %v37 = vld [vmem:[%s1 + $0x70] sm:$0xff]
  %v38 = vld [vmem:[%s1 + $0x78] sm:$0xff]
  %v39 = vld [vmem:[%s1 + $0x80] sm:$0xff]
  %v40 = vld [vmem:[%s1 + $0x88] sm:$0xff]
  %v41 = vld [vmem:[%s1 + $0x90] sm:$0xff]
  %v42 = vld [vmem:[%s1 + $0x98] sm:$0xff]
  %v43 = vld [vmem:[%s1 + $0xa0] sm:$0xff]
  %v44 = vld [vmem:[%s1 + $0xa8] sm:$0xff]
  %v45 = vld [vmem:[%s1 + $0xb0] sm:$0xff]
  %v46 = vld [vmem:[%s1 + $0xb8] sm:$0xff]
  %v47 = vld [vmem:[%s1 + $0xc0] sm:$0xff]
  %v48 = vld [vmem:[%s1 + $0xc8] sm:$0xff]
  %v49 = vld [vmem:[%s1 + $0xd0] sm:$0xff]
  %v50 = vld [vmem:[%s1 + $0xd8] sm:$0xff]
  %v51 = vld [vmem:[%s1 + $0xe0] sm:$0xff]
  %v52 = vld [vmem:[%s1 + $0xe8] sm:$0xff]
  %v53 = vld [vmem:[%s1 + $0xf0] sm:$0xff]
  %v54 = vld [vmem:[%s1 + $0xf8] sm:$0xff]
  %v55 = vld [vmem:[%s1 + $0x100] sm:$0xff]
  %v56 = vld [vmem:[%s1 + $0x108] sm:$0xff]
  %v57 = vld [vmem:[%s1 + $0x110] sm:$0xff]
  %v58 = vld [vmem:[%s1 + $0x118] sm:$0xff]
  %v59 = vld [vmem:[%s1 + $0x120] sm:$0xff]
  %v60 = vld [vmem:[%s1 + $0x128] sm:$0xff]
  %v61 = vld [vmem:[%s1 + $0x130] sm:$0xff]
  %v62 = vld [vmem:[%s1 + $0x138] sm:$0xff]
  %v63 = vld [vmem:[%s1 + $0x140] sm:$0xff]
  %v64 = vld [vmem:[%s1 + $0x148] sm:$0xff]
  %v65 = vld [vmem:[%s1 + $0x150] sm:$0xff]
  %v66 = vld [vmem:[%s1 + $0x158] sm:$0xff]
  %v67 = vld [vmem:[%s1 + $0x160] sm:$0xff]
  %v68 = vld [vmem:[%s1 + $0x168] sm:$0xff]
  %v69 = vld [vmem:[%s1 + $0x170] sm:$0xff]
  %v70 = vld [vmem:[%s1 + $0x178] sm:$0xff]
  %v71 = vld [vmem:[%s1 + $0x180] sm:$0xff]
  %v72 = vld [vmem:[%s1 + $0x188] sm:$0xff]
  %v73 = vld [vmem:[%s1 + $0x190] sm:$0xff]
  %v74 = vld [vmem:[%s1 + $0x198] sm:$0xff]
  %v75 = vld [vmem:[%s1 + $0x1a0] sm:$0xff]
  %v76 = vld [vmem:[%s1 + $0x1a8] sm:$0xff]
  %v77 = vld [vmem:[%s1 + $0x1b0] sm:$0xff]
  %v78 = vld [vmem:[%s1 + $0x1b8] sm:$0xff]
  %v79 = vld [vmem:[%s1 + $0x1c0] sm:$0xff]
  %v80 = vld [vmem:[%s1 + $0x1c8] sm:$0xff]
  %v81 = vld [vmem:[%s1 + $0x1d0] sm:$0xff]
  %v82 = vld [vmem:[%s1 + $0x1d8] sm:$0xff]
  %v83 = vld [vmem:[%s1 + $0x1e0] sm:$0xff]
  %v84 = vld [vmem:[%s1 + $0x1e8] sm:$0xff]
  %v85 = vld [vmem:[%s1 + $0x1f0] sm:$0xff]
  %v86 = vld [vmem:[%s1 + $0x1f8] sm:$0xff]
  %v87 = vld [vmem:[%s1 + $0x200] sm:$0xff]
  %v88 = vld [vmem:[%s1 + $0x208] sm:$0xff]
  %v89 = vld [vmem:[%s1 + $0x210] sm:$0xff]
  %v90 = vld [vmem:[%s1 + $0x218] sm:$0xff]
  %v91 = vld [vmem:[%s1 + $0x220] sm:$0xff]
  %v92 = vld [vmem:[%s1 + $0x228] sm:$0xff]
  %v93 = vld [vmem:[%s1 + $0x230] sm:$0xff]
  %v94 = vld [vmem:[%s1 + $0x238] sm:$0xff]
  %v95 = vld [vmem:[%s1 + $0x240] sm:$0xff]
  %v96 = vld [vmem:[%s1 + $0x248] sm:$0xff]
  %v97 = vld [vmem:[%s1 + $0x250] sm:$0xff]
  %v98 = vld [vmem:[%s1 + $0x258] sm:$0xff]
  %v99 = vld [vmem:[%s1 + $0x260] sm:$0xff]
  %v100 = vld [vmem:[%s1 + $0x268] sm:$0xff]
  %v101 = vld [vmem:[%s1 + $0x270] sm:$0xff]
  %v102 = vld [vmem:[%s1 + $0x278] sm:$0xff]
  %v103 = vld [vmem:[%s1 + $0x280] sm:$0xff]
  %v104 = vld [vmem:[%s1 + $0x288] sm:$0xff]
  %v105 = vld [vmem:[%s1 + $0x290] sm:$0xff]
  %v106 = vld [vmem:[%s1 + $0x298] sm:$0xff]
  %v107 = vld [vmem:[%s1 + $0x2a0] sm:$0xff]
  %v108 = vld [vmem:[%s1 + $0x2a8] sm:$0xff]
  %v109 = vld [vmem:[%s1 + $0x2b0] sm:$0xff]
  %v110 = vld [vmem:[%s1 + $0x2b8] sm:$0xff]
  %v111 = vld [vmem:[%s1 + $0x2c0] sm:$0xff]
  %v112 = vld [vmem:[%s1 + $0x2c8] sm:$0xff]
  %v113 = vld [vmem:[%s1 + $0x2d0] sm:$0xff]
  %v114 = vld [vmem:[%s1 + $0x2d8] sm:$0xff]
  %v115 = vld [vmem:[%s1 + $0x2e0] sm:$0xff]
  %v116 = vld [vmem:[%s1 + $0x2e8] sm:$0xff]
  %v117 = vld [vmem:[%s1 + $0x2f0] sm:$0xff]
  %v118 = vld [vmem:[%s1 + $0x2f8] sm:$0xff]
  %v119 = vld [vmem:[%s1 + $0x300] sm:$0xff]
  %v120 = vld [vmem:[%s1 + $0x308] sm:$0xff]
  %v121 = vld [vmem:[%s1 + $0x310] sm:$0xff]
  %v122 = vld [vmem:[%s1 + $0x318] sm:$0xff]
  %v123 = vld [vmem:[%s1 + $0x320] sm:$0xff]
  %v124 = vld [vmem:[%s1 + $0x328] sm:$0xff]
  %v125 = vld [vmem:[%s1 + $0x330] sm:$0xff]
  %v126 = vld [vmem:[%s1 + $0x338] sm:$0xff]
  %v127 = vld [vmem:[%s1 + $0x340] sm:$0xff]
  %v128 = vld [vmem:[%s1 + $0x348] sm:$0xff]
  %v129 = vld [vmem:[%s1 + $0x350] sm:$0xff]
  %v130 = vld [vmem:[%s1 + $0x358] sm:$0xff]
  %v131 = vld [vmem:[%s2] sm:$0x3]
  %v133 = vlaneseq
  %v134 = vshrl.u32 %v133, 7
  %v135 = vsub.s32 0, %v134
  %v136 = vrot.slane %v131, %v135
  %v137 = vlaneseq
  %v138 = vshrl.u32 %v137, 7
  %v139 = vsub.s32 1, %v138
  %v140 = vrot.slane %v131, %v139
  %v151 = vunpack.c.l.b16 %v15
  %v152 = vunpack.c.h.b16 %v15
  %v153 = vunpack.c.l.b16 %v16
  %v154 = vunpack.c.h.b16 %v16
  %v155 = vunpack.c.l.b16 %v17
  %v156 = vunpack.c.h.b16 %v17
  %v157 = vunpack.c.l.b16 %v18
  %v158 = vunpack.c.l.b16 %v19
  %v159 = vunpack.c.h.b16 %v19
  %v160 = vunpack.c.l.b16 %v20
  %v161 = vunpack.c.h.b16 %v20
  %v162 = vunpack.c.l.b16 %v21
  %v163 = vunpack.c.h.b16 %v21
  %v164 = vunpack.c.l.b16 %v22
  %v165 = vpack.c.b16 %v158, %v151
  %v166 = vpack.c.b16 %v159, %v152
  %v167 = vpack.c.b16 %v160, %v153
  %v168 = vpack.c.b16 %v161, %v154
  %v169 = vpack.c.b16 %v162, %v155
  %v170 = vpack.c.b16 %v163, %v156
  %v171 = vpack.c.b16 %v164, %v157
  %v286 = vunpack.c.l.b16 %v23
  %v287 = vunpack.c.h.b16 %v23
  %v288 = vunpack.c.l.b16 %v24
  %v289 = vunpack.c.h.b16 %v24
  %v290 = vunpack.c.l.b16 %v25
  %v291 = vunpack.c.h.b16 %v25
  %v292 = vunpack.c.l.b16 %v26
  %v293 = vunpack.c.h.b16 %v26
  %v294 = vunpack.c.l.b16 %v27
  %v295 = vunpack.c.h.b16 %v27
  %v296 = vunpack.c.l.b16 %v28
  %v297 = vunpack.c.h.b16 %v28
  %v298 = vunpack.c.l.b16 %v29
  %v299 = vunpack.c.h.b16 %v29
  %v300 = vunpack.c.l.b16 %v30
  %v301 = vunpack.c.h.b16 %v30
  %v302 = vunpack.c.l.b16 %v31
  %v303 = vunpack.c.h.b16 %v31
  %v304 = vunpack.c.l.b16 %v32
  %v305 = vunpack.c.h.b16 %v32
  %v306 = vunpack.c.l.b16 %v33
  %v307 = vunpack.c.h.b16 %v33
  %v308 = vunpack.c.l.b16 %v34
  %v309 = vunpack.c.h.b16 %v34
  %v310 = vunpack.c.l.b16 %v35
  %v311 = vunpack.c.h.b16 %v35
  %v312 = vunpack.c.l.b16 %v36
  %v313 = vunpack.c.h.b16 %v36
  %v314 = vunpack.c.l.b16 %v37
  %v315 = vunpack.c.h.b16 %v37
  %v316 = vunpack.c.l.b16 %v38
  %v317 = vunpack.c.h.b16 %v38
  %v318 = vunpack.c.l.b16 %v39
  %v319 = vunpack.c.h.b16 %v39
  %v320 = vunpack.c.l.b16 %v40
  %v321 = vunpack.c.h.b16 %v40
  %v322 = vunpack.c.l.b16 %v41
  %v323 = vunpack.c.h.b16 %v41
  %v324 = vunpack.c.l.b16 %v42
  %v325 = vunpack.c.h.b16 %v42
  %v326 = vunpack.c.l.b16 %v43
  %v327 = vunpack.c.h.b16 %v43
  %v328 = vunpack.c.l.b16 %v44
  %v329 = vunpack.c.h.b16 %v44
  %v330 = vunpack.c.l.b16 %v45
  %v331 = vunpack.c.h.b16 %v45
  %v332 = vunpack.c.l.b16 %v46
  %v333 = vunpack.c.h.b16 %v46
  %v334 = vunpack.c.l.b16 %v47
  %v335 = vunpack.c.h.b16 %v47
  %v336 = vunpack.c.l.b16 %v48
  %v337 = vunpack.c.h.b16 %v48
  %v338 = vunpack.c.l.b16 %v49
  %v339 = vunpack.c.h.b16 %v49
  %v340 = vunpack.c.l.b16 %v50
  %v341 = vunpack.c.h.b16 %v50
  %v342 = vunpack.c.l.b16 %v51
  %v343 = vunpack.c.h.b16 %v51
  %v344 = vunpack.c.l.b16 %v52
  %v345 = vunpack.c.h.b16 %v52
  %v346 = vunpack.c.l.b16 %v53
  %v347 = vunpack.c.h.b16 %v53
  %v348 = vunpack.c.l.b16 %v54
  %v349 = vunpack.c.h.b16 %v54
  %v350 = vunpack.c.l.b16 %v55
  %v351 = vunpack.c.h.b16 %v55
  %v352 = vunpack.c.l.b16 %v56
  %v353 = vunpack.c.h.b16 %v56
  %v354 = vunpack.c.l.b16 %v57
  %v355 = vunpack.c.h.b16 %v57
  %v356 = vunpack.c.l.b16 %v58
  %v357 = vunpack.c.h.b16 %v58
  %v358 = vunpack.c.l.b16 %v59
  %v359 = vunpack.c.h.b16 %v59
  %v360 = vunpack.c.l.b16 %v60
  %v361 = vunpack.c.h.b16 %v60
  %v362 = vunpack.c.l.b16 %v61
  %v363 = vunpack.c.h.b16 %v61
  %v364 = vunpack.c.l.b16 %v62
  %v365 = vunpack.c.h.b16 %v62
  %v366 = vunpack.c.l.b16 %v63
  %v367 = vunpack.c.h.b16 %v63
  %v368 = vunpack.c.l.b16 %v64
  %v369 = vunpack.c.h.b16 %v64
  %v370 = vunpack.c.l.b16 %v65
  %v371 = vunpack.c.h.b16 %v65
  %v372 = vunpack.c.l.b16 %v66
  %v373 = vunpack.c.h.b16 %v66
  %v374 = vunpack.c.l.b16 %v67
  %v375 = vunpack.c.h.b16 %v67
  %v376 = vunpack.c.l.b16 %v68
  %v377 = vunpack.c.h.b16 %v68
  %v378 = vunpack.c.l.b16 %v69
  %v379 = vunpack.c.h.b16 %v69
  %v380 = vunpack.c.l.b16 %v70
  %v381 = vunpack.c.h.b16 %v70
  %v382 = vunpack.c.l.b16 %v71
  %v383 = vunpack.c.h.b16 %v71
  %v384 = vunpack.c.l.b16 %v72
  %v385 = vunpack.c.h.b16 %v72
  %v386 = vunpack.c.l.b16 %v73
  %v387 = vunpack.c.h.b16 %v73
  %v388 = vunpack.c.l.b16 %v74
  %v389 = vunpack.c.h.b16 %v74
  %v390 = vunpack.c.l.b16 %v75
  %v391 = vunpack.c.h.b16 %v75
  %v392 = vunpack.c.l.b16 %v76
  %v393 = vunpack.c.h.b16 %v76
  %v394 = vunpack.c.l.b16 %v77
  %v395 = vunpack.c.h.b16 %v77
  %v396 = vunpack.c.l.b16 %v78
  %v397 = vunpack.c.h.b16 %v78
  %v398 = vunpack.c.l.b16 %v79
  %v399 = vunpack.c.h.b16 %v79
  %v400 = vunpack.c.l.b16 %v80
  %v401 = vunpack.c.h.b16 %v80
  %v402 = vunpack.c.l.b16 %v81
  %v403 = vunpack.c.h.b16 %v81
  %v404 = vunpack.c.l.b16 %v82
  %v405 = vunpack.c.h.b16 %v82
  %v406 = vunpack.c.l.b16 %v83
  %v407 = vunpack.c.h.b16 %v83
  %v408 = vunpack.c.l.b16 %v84
  %v409 = vunpack.c.h.b16 %v84
  %v410 = vunpack.c.l.b16 %v85
  %v411 = vunpack.c.h.b16 %v85
  %v412 = vunpack.c.l.b16 %v86
  %v413 = vunpack.c.h.b16 %v86
  %v414 = vunpack.c.l.b16 %v87
  %v415 = vunpack.c.h.b16 %v87
  %v416 = vunpack.c.l.b16 %v88
  %v417 = vunpack.c.h.b16 %v88
  %v418 = vunpack.c.l.b16 %v89
  %v419 = vunpack.c.h.b16 %v89
  %v420 = vunpack.c.l.b16 %v90
  %v421 = vunpack.c.h.b16 %v90
  %v422 = vunpack.c.l.b16 %v91
  %v423 = vunpack.c.h.b16 %v91
  %v424 = vunpack.c.l.b16 %v92
  %v425 = vunpack.c.h.b16 %v92
  %v426 = vunpack.c.l.b16 %v93
  %v427 = vunpack.c.h.b16 %v93
  %v428 = vunpack.c.l.b16 %v94
  %v429 = vunpack.c.h.b16 %v94
  %v430 = vunpack.c.l.b16 %v95
  %v431 = vunpack.c.h.b16 %v95
  %v432 = vunpack.c.l.b16 %v96
  %v433 = vunpack.c.h.b16 %v96
  %v434 = vunpack.c.l.b16 %v97
  %v435 = vunpack.c.h.b16 %v97
  %v436 = vunpack.c.l.b16 %v98
  %v437 = vunpack.c.h.b16 %v98
  %v438 = vunpack.c.l.b16 %v99
  %v439 = vunpack.c.h.b16 %v99
  %v440 = vunpack.c.l.b16 %v100
  %v441 = vunpack.c.h.b16 %v100
  %v442 = vunpack.c.l.b16 %v101
  %v443 = vunpack.c.h.b16 %v101
  %v444 = vunpack.c.l.b16 %v102
  %v445 = vunpack.c.h.b16 %v102
  %v446 = vunpack.c.l.b16 %v103
  %v447 = vunpack.c.h.b16 %v103
  %v448 = vunpack.c.l.b16 %v104
  %v449 = vunpack.c.h.b16 %v104
  %v450 = vunpack.c.l.b16 %v105
  %v451 = vunpack.c.h.b16 %v105
  %v452 = vunpack.c.l.b16 %v106
  %v453 = vunpack.c.h.b16 %v106
  %v454 = vunpack.c.l.b16 %v107
  %v455 = vunpack.c.h.b16 %v107
  %v456 = vunpack.c.l.b16 %v108
  %v457 = vunpack.c.h.b16 %v108
  %v458 = vunpack.c.l.b16 %v109
  %v459 = vunpack.c.h.b16 %v109
  %v460 = vunpack.c.l.b16 %v110
  %v461 = vunpack.c.h.b16 %v110
  %v462 = vunpack.c.l.b16 %v111
  %v463 = vunpack.c.h.b16 %v111
  %v464 = vunpack.c.l.b16 %v112
  %v465 = vunpack.c.h.b16 %v112
  %v466 = vunpack.c.l.b16 %v113
  %v467 = vunpack.c.h.b16 %v113
  %v468 = vunpack.c.l.b16 %v114
  %v469 = vunpack.c.h.b16 %v114
  %v470 = vunpack.c.l.b16 %v115
  %v471 = vunpack.c.h.b16 %v115
  %v472 = vunpack.c.l.b16 %v116
  %v473 = vunpack.c.h.b16 %v116
  %v474 = vunpack.c.l.b16 %v117
  %v475 = vunpack.c.h.b16 %v117
  %v476 = vunpack.c.l.b16 %v118
  %v477 = vunpack.c.h.b16 %v118
  %v478 = vunpack.c.l.b16 %v119
  %v479 = vunpack.c.h.b16 %v119
  %v480 = vunpack.c.l.b16 %v120
  %v481 = vunpack.c.h.b16 %v120
  %v482 = vunpack.c.l.b16 %v121
  %v483 = vunpack.c.h.b16 %v121
  %v484 = vunpack.c.l.b16 %v122
  %v485 = vunpack.c.h.b16 %v122
  %v486 = vunpack.c.l.b16 %v123
  %v487 = vunpack.c.h.b16 %v123
  %v488 = vunpack.c.l.b16 %v124
  %v489 = vunpack.c.h.b16 %v124
  %v490 = vunpack.c.l.b16 %v125
  %v491 = vunpack.c.h.b16 %v125
  %v492 = vunpack.c.l.b16 %v126
  %v493 = vunpack.c.h.b16 %v126
  %v494 = vunpack.c.l.b16 %v127
  %v495 = vunpack.c.h.b16 %v127
  %v496 = vunpack.c.l.b16 %v128
  %v497 = vunpack.c.h.b16 %v128
  %v498 = vunpack.c.l.b16 %v129
  %v499 = vunpack.c.h.b16 %v129
  %v500 = vunpack.c.l.b16 %v130
  %v501 = vunpack.c.h.b16 %v130
  %v502 = vpack.c.b16 %v288, %v286
  %v503 = vpack.c.b16 %v289, %v287
  %v504 = vpack.c.b16 %v292, %v290
  %v505 = vpack.c.b16 %v293, %v291
  %v506 = vpack.c.b16 %v296, %v294
  %v507 = vpack.c.b16 %v297, %v295
  %v508 = vpack.c.b16 %v300, %v298
  %v509 = vpack.c.b16 %v301, %v299
  %v510 = vpack.c.b16 %v304, %v302
  %v511 = vpack.c.b16 %v305, %v303
  %v512 = vpack.c.b16 %v308, %v306
  %v513 = vpack.c.b16 %v309, %v307
  %v514 = vpack.c.b16 %v312, %v310
  %v515 = vpack.c.b16 %v313, %v311
  %v516 = vpack.c.b16 %v316, %v314
  %v517 = vpack.c.b16 %v317, %v315
  %v518 = vpack.c.b16 %v320, %v318
  %v519 = vpack.c.b16 %v321, %v319
  %v520 = vpack.c.b16 %v324, %v322
  %v521 = vpack.c.b16 %v325, %v323
  %v522 = vpack.c.b16 %v328, %v326
  %v523 = vpack.c.b16 %v329, %v327
  %v524 = vpack.c.b16 %v332, %v330
  %v525 = vpack.c.b16 %v333, %v331
  %v526 = vpack.c.b16 %v336, %v334
  %v527 = vpack.c.b16 %v337, %v335
  %v528 = vpack.c.b16 %v340, %v338
  %v529 = vpack.c.b16 %v341, %v339
  %v530 = vpack.c.b16 %v344, %v342
  %v531 = vpack.c.b16 %v345, %v343
  %v532 = vpack.c.b16 %v348, %v346
  %v533 = vpack.c.b16 %v349, %v347
  %v534 = vpack.c.b16 %v352, %v350
  %v535 = vpack.c.b16 %v353, %v351
  %v536 = vpack.c.b16 %v356, %v354
  %v537 = vpack.c.b16 %v357, %v355
  %v538 = vpack.c.b16 %v360, %v358
  %v539 = vpack.c.b16 %v361, %v359
  %v540 = vpack.c.b16 %v364, %v362
  %v541 = vpack.c.b16 %v365, %v363
  %v542 = vpack.c.b16 %v368, %v366
  %v543 = vpack.c.b16 %v369, %v367
  %v544 = vpack.c.b16 %v372, %v370
  %v545 = vpack.c.b16 %v373, %v371
  %v546 = vpack.c.b16 %v376, %v374
  %v547 = vpack.c.b16 %v377, %v375
  %v548 = vpack.c.b16 %v380, %v378
  %v549 = vpack.c.b16 %v381, %v379
  %v550 = vpack.c.b16 %v384, %v382
  %v551 = vpack.c.b16 %v385, %v383
  %v552 = vpack.c.b16 %v388, %v386
  %v553 = vpack.c.b16 %v389, %v387
  %v554 = vpack.c.b16 %v392, %v390
  %v555 = vpack.c.b16 %v393, %v391
  %v556 = vpack.c.b16 %v396, %v394
  %v557 = vpack.c.b16 %v397, %v395
  %v558 = vpack.c.b16 %v400, %v398
  %v559 = vpack.c.b16 %v401, %v399
  %v560 = vpack.c.b16 %v404, %v402
  %v561 = vpack.c.b16 %v405, %v403
  %v562 = vpack.c.b16 %v408, %v406
  %v563 = vpack.c.b16 %v409, %v407
  %v564 = vpack.c.b16 %v412, %v410
  %v565 = vpack.c.b16 %v413, %v411
  %v566 = vpack.c.b16 %v416, %v414
  %v567 = vpack.c.b16 %v417, %v415
  %v568 = vpack.c.b16 %v420, %v418
  %v569 = vpack.c.b16 %v421, %v419
  %v570 = vpack.c.b16 %v424, %v422
  %v571 = vpack.c.b16 %v425, %v423
  %v572 = vpack.c.b16 %v428, %v426
  %v573 = vpack.c.b16 %v429, %v427
  %v574 = vpack.c.b16 %v432, %v430
  %v575 = vpack.c.b16 %v433, %v431
  %v576 = vpack.c.b16 %v436, %v434
  %v577 = vpack.c.b16 %v437, %v435
  %v578 = vpack.c.b16 %v440, %v438
  %v579 = vpack.c.b16 %v441, %v439
  %v580 = vpack.c.b16 %v444, %v442
  %v581 = vpack.c.b16 %v445, %v443
  %v582 = vpack.c.b16 %v448, %v446
  %v583 = vpack.c.b16 %v449, %v447
  %v584 = vpack.c.b16 %v452, %v450
  %v585 = vpack.c.b16 %v453, %v451
  %v586 = vpack.c.b16 %v456, %v454
  %v587 = vpack.c.b16 %v457, %v455
  %v588 = vpack.c.b16 %v460, %v458
  %v589 = vpack.c.b16 %v461, %v459
  %v590 = vpack.c.b16 %v464, %v462
  %v591 = vpack.c.b16 %v465, %v463
  %v592 = vpack.c.b16 %v468, %v466
  %v593 = vpack.c.b16 %v469, %v467
  %v594 = vpack.c.b16 %v472, %v470
  %v595 = vpack.c.b16 %v473, %v471
  %v596 = vpack.c.b16 %v476, %v474
  %v597 = vpack.c.b16 %v477, %v475
  %v598 = vpack.c.b16 %v480, %v478
  %v599 = vpack.c.b16 %v481, %v479
  %v600 = vpack.c.b16 %v484, %v482
  %v601 = vpack.c.b16 %v485, %v483
  %v602 = vpack.c.b16 %v488, %v486
  %v603 = vpack.c.b16 %v489, %v487
  %v604 = vpack.c.b16 %v492, %v490
  %v605 = vpack.c.b16 %v493, %v491
  %v606 = vpack.c.b16 %v496, %v494
  %v607 = vpack.c.b16 %v497, %v495
  %v608 = vpack.c.b16 %v500, %v498
  %v609 = vpack.c.b16 %v501, %v499
  %vm718 = vcmask 785408
  %v720 = vsel %vm718, %v171, 0
  %722 = vmatprep.subr.bf16.mxu0 %v503
  %723 = vmatpush1.bf16.msra.mxu0 %v502
  %724 = vmatprep.subr.bf16.mxu0 %v505
  %725 = vmatpush1.bf16.msra.mxu0 %v504
  %726 = vmatprep.subr.bf16.mxu0 %v507
  %727 = vmatpush1.bf16.msra.mxu0 %v506
  %728 = vmatprep.subr.bf16.mxu0 %v509
  %729 = vmatpush1.bf16.msra.mxu0 %v508
  %730 = vmatprep.subr.bf16.mxu0 %v511
  %731 = vmatpush1.bf16.msra.mxu0 %v510
  %732 = vmatprep.subr.bf16.mxu0 %v513
  %733 = vmatpush1.bf16.msra.mxu0 %v512
  %734 = vmatprep.subr.bf16.mxu0 %v515
  %735 = vmatpush1.bf16.msra.mxu0 %v514
  %736 = vmatprep.subr.bf16.mxu0 %v517
  %737 = vmatpush1.bf16.msra.mxu0 %v516
  %738 = vmatprep.subr.bf16.mxu0 %v519
  %739 = vmatpush1.bf16.msra.mxu0 %v518
  %740 = vmatprep.subr.bf16.mxu0 %v521
  %741 = vmatpush1.bf16.msra.mxu0 %v520
  %742 = vmatprep.subr.bf16.mxu0 %v523
  %743 = vmatpush1.bf16.msra.mxu0 %v522
  %744 = vmatprep.subr.bf16.mxu0 %v525
  %745 = vmatpush1.bf16.msra.mxu0 %v524
  %746 = vmatprep.subr.bf16.mxu0 %v527
  %747 = vmatpush1.bf16.msra.mxu0 %v526
  %748 = vmatprep.subr.bf16.mxu0 %v529
  %749 = vmatpush1.bf16.msra.mxu0 %v528
  %750 = vmatprep.subr.bf16.mxu0 %v531
  %751 = vmatpush1.bf16.msra.mxu0 %v530
  %752 = vmatprep.subr.bf16.mxu0 %v533
  %753 = vmatpush1.bf16.msra.mxu0 %v532
  %754 = vmatprep.mubr.bf16.mxu0 %v166
  %755 = vmatmul.mubr.bf16.gmra.mrb[0].mxu0 %v165
  %v756 = vpop.f32.mrb[0].mxu0
  %v757 = vadd.f32 %v136, %v756
  %v758 = vpop.f32.mrb[0].mxu0
  %v759 = vadd.f32 %v140, %v758
  %v760 = vpop.f32.mrb[0].mxu0
  %v761 = vadd.f32 %v136, %v760
  %v762 = vpop.f32.mrb[0].mxu0
  %v763 = vadd.f32 %v140, %v762
  %764 = vdwg.mxu0
  %765 = vmatprep.subr.bf16.mxu0 %v535
  %766 = vmatpush1.bf16.msra.mxu0 %v534
  %767 = vmatprep.subr.bf16.mxu0 %v537
  %768 = vmatpush1.bf16.msra.mxu0 %v536
  %769 = vmatprep.subr.bf16.mxu0 %v539
  %770 = vmatpush1.bf16.msra.mxu0 %v538
  %771 = vmatprep.subr.bf16.mxu0 %v541
  %772 = vmatpush1.bf16.msra.mxu0 %v540
  %773 = vmatprep.subr.bf16.mxu0 %v543
  %774 = vmatpush1.bf16.msra.mxu0 %v542
  %775 = vmatprep.subr.bf16.mxu0 %v545
  %776 = vmatpush1.bf16.msra.mxu0 %v544
  %777 = vmatprep.subr.bf16.mxu0 %v547
  %778 = vmatpush1.bf16.msra.mxu0 %v546
  %779 = vmatprep.subr.bf16.mxu0 %v549
  %780 = vmatpush1.bf16.msra.mxu0 %v548
  %781 = vmatprep.subr.bf16.mxu0 %v551
  %782 = vmatpush1.bf16.msra.mxu0 %v550
  %783 = vmatprep.subr.bf16.mxu0 %v553
  %784 = vmatpush1.bf16.msra.mxu0 %v552
  %785 = vmatprep.subr.bf16.mxu0 %v555
  %786 = vmatpush1.bf16.msra.mxu0 %v554
  %787 = vmatprep.subr.bf16.mxu0 %v557
  %788 = vmatpush1.bf16.msra.mxu0 %v556
  %789 = vmatprep.subr.bf16.mxu0 %v559
  %790 = vmatpush1.bf16.msra.mxu0 %v558
  %791 = vmatprep.subr.bf16.mxu0 %v561
  %792 = vmatpush1.bf16.msra.mxu0 %v560
  %793 = vmatprep.subr.bf16.mxu0 %v563
  %794 = vmatpush1.bf16.msra.mxu0 %v562
  %795 = vmatprep.subr.bf16.mxu0 %v565
  %796 = vmatpush1.bf16.msra.mxu0 %v564
  %797 = vmatprep.mubr.bf16.mxu0 %v168
  %798 = vmatmul.mubr.bf16.gmra.mrb[0].mxu0 %v167
  %v799 = vpop.f32.mrb[0].mxu0
  %v800 = vadd.f32 %v757, %v799
  %v801 = vpop.f32.mrb[0].mxu0
  %v802 = vadd.f32 %v759, %v801
  %v803 = vpop.f32.mrb[0].mxu0
  %v804 = vadd.f32 %v761, %v803
  %v805 = vpop.f32.mrb[0].mxu0
  %v806 = vadd.f32 %v763, %v805
  %807 = vdwg.mxu0
  %808 = vmatprep.subr.bf16.mxu0 %v567
  %809 = vmatpush1.bf16.msra.mxu0 %v566
  %810 = vmatprep.subr.bf16.mxu0 %v569
  %811 = vmatpush1.bf16.msra.mxu0 %v568
  %812 = vmatprep.subr.bf16.mxu0 %v571
  %813 = vmatpush1.bf16.msra.mxu0 %v570
  %814 = vmatprep.subr.bf16.mxu0 %v573
  %815 = vmatpush1.bf16.msra.mxu0 %v572
  %816 = vmatprep.subr.bf16.mxu0 %v575
  %817 = vmatpush1.bf16.msra.mxu0 %v574
  %818 = vmatprep.subr.bf16.mxu0 %v577
  %819 = vmatpush1.bf16.msra.mxu0 %v576
  %820 = vmatprep.subr.bf16.mxu0 %v579
  %821 = vmatpush1.bf16.msra.mxu0 %v578
  %822 = vmatprep.subr.bf16.mxu0 %v581
  %823 = vmatpush1.bf16.msra.mxu0 %v580
  %824 = vmatprep.subr.bf16.mxu0 %v583
  %825 = vmatpush1.bf16.msra.mxu0 %v582
  %826 = vmatprep.subr.bf16.mxu0 %v585
  %827 = vmatpush1.bf16.msra.mxu0 %v584
  %828 = vmatprep.subr.bf16.mxu0 %v587
  %829 = vmatpush1.bf16.msra.mxu0 %v586
  %830 = vmatprep.subr.bf16.mxu0 %v589
  %831 = vmatpush1.bf16.msra.mxu0 %v588
  %832 = vmatprep.subr.bf16.mxu0 %v591
  %833 = vmatpush1.bf16.msra.mxu0 %v590
  %834 = vmatprep.subr.bf16.mxu0 %v593
  %835 = vmatpush1.bf16.msra.mxu0 %v592
  %836 = vmatprep.subr.bf16.mxu0 %v595
  %837 = vmatpush1.bf16.msra.mxu0 %v594
  %838 = vmatprep.subr.bf16.mxu0 %v597
  %839 = vmatpush1.bf16.msra.mxu0 %v596
  %840 = vmatprep.mubr.bf16.mxu0 %v170
  %841 = vmatmul.mubr.bf16.gmra.mrb[0].mxu0 %v169
  %v842 = vpop.f32.mrb[0].mxu0
  %v843 = vadd.f32 %v800, %v842
  %v844 = vpop.f32.mrb[0].mxu0
  %v845 = vadd.f32 %v802, %v844
  %v846 = vpop.f32.mrb[0].mxu0
  %v847 = vadd.f32 %v804, %v846
  %v848 = vpop.f32.mrb[0].mxu0
  %v849 = vadd.f32 %v806, %v848
  %850 = vdwg.mxu0
  %851 = vmatprep.subr.bf16.mxu0 %v599
  %852 = vmatpush1.bf16.msra.mxu0 %v598
  %853 = vmatprep.subr.bf16.mxu0 %v601
  %854 = vmatpush1.bf16.msra.mxu0 %v600
  %855 = vmatprep.subr.bf16.mxu0 %v603
  %856 = vmatpush1.bf16.msra.mxu0 %v602
  %857 = vmatprep.subr.bf16.mxu0 %v605
  %858 = vmatpush1.bf16.msra.mxu0 %v604
  %859 = vmatprep.subr.bf16.mxu0 %v607
  %860 = vmatpush1.bf16.msra.mxu0 %v606
  %861 = vmatprep.subr.bf16.mxu0 %v609
  %862 = vmatpush1.bf16.msra.mxu0 %v608
  %863 = vmatprep.subr.bf16.mxu0 0
  %864 = vmatpush1.bf16.msra.mxu0 0
  %865 = vmatprep.subr.bf16.mxu0 0
  %866 = vmatpush1.bf16.msra.mxu0 0
  %867 = vmatprep.subr.bf16.mxu0 0
  %868 = vmatpush1.bf16.msra.mxu0 0
  %869 = vmatprep.subr.bf16.mxu0 0
  %870 = vmatpush1.bf16.msra.mxu0 0
  %871 = vmatprep.subr.bf16.mxu0 0
  %872 = vmatpush1.bf16.msra.mxu0 0
  %873 = vmatprep.subr.bf16.mxu0 0
  %874 = vmatpush1.bf16.msra.mxu0 0
  %875 = vmatprep.subr.bf16.mxu0 0
  %876 = vmatpush1.bf16.msra.mxu0 0
  %877 = vmatprep.subr.bf16.mxu0 0
  %878 = vmatpush1.bf16.msra.mxu0 0
  %879 = vmatprep.subr.bf16.mxu0 0
  %880 = vmatpush1.bf16.msra.mxu0 0
  %881 = vmatprep.subr.bf16.mxu0 0
  %882 = vmatpush1.bf16.msra.mxu0 0
  %883 = vmatprep.mubr.bf16.mxu0 0
  %884 = vmatmul.mubr.bf16.gmra.mrb[0].mxu0 %v720
  %v885 = vpop.f32.mrb[0].mxu0
  %v886 = vadd.f32 %v843, %v885
  %v887 = vpop.f32.mrb[0].mxu0
  %v888 = vadd.f32 %v845, %v887
  %v889 = vpop.f32.mrb[0].mxu0
  %v890 = vadd.f32 %v847, %v889
  %v891 = vpop.f32.mrb[0].mxu0
  %v892 = vadd.f32 %v849, %v891
  %893 = vdwg.mxu0
  %v894 = vpack.c.bf16 %v890, %v886
  %v895 = vpack.c.bf16 %v892, %v888
  %v898 = vunpack.c.l.b16 %v894
  %v899 = vunpack.c.l.b16 %v895
  %v900 = vunpack.c.h.b16 %v894
  %v901 = vunpack.c.h.b16 %v895
  %v902 = vpack.c.b16 %v899, %v898
  %v903 = vpack.c.b16 %v901, %v900
  %vm906 = vcmask 1043456
  %vm907 = vcmask 130052
  %vm908 = vmor %vm907, %vm906
  %909 = vst.msk [vmem:[%s3] sm:$0xff] %vm908, %v902
  %vm910 = vcmask 1041408
  %vm911 = vcmask 128004
  %vm912 = vmor %vm911, %vm910
  %913 = vst.msk [vmem:[%s3 + $0x8] sm:$0x33] %vm912, %v903
  // Predicated region
  $region14: #{faceboxes_forward.23} parent=0 // pred_check
    _
  $region15: #{faceboxes_forward.23} parent=0 // pred_check_branch
    %915 = sbr.rel (0) target = $region17
  $region16: #{faceboxes_forward.23} parent=0 // pred_region
    _
  $region17: #{faceboxes_forward.23} parent=0 // pred_fallthru
    _
  // Predicated region
  $region18: #{faceboxes_forward.23} parent=0 // pred_check
    _
  $region19: #{faceboxes_forward.23} parent=0 // pred_check_branch
    %917 = sbr.rel (0) target = $region21
  $region20: #{faceboxes_forward.23} parent=0 // pred_region
    _
  $region21: #{faceboxes_forward.23} parent=0 // pred_fallthru
    _

</llo_original>
